<compile_context>
chip_gen: v7x
topology: tpu7x:2x2x1
jax: 0.10.0
libtpu: 0.0.40
codegen_flags: <defaults>
</compile_context>

<pallas_src>
import functools
import math

import jax
import jax.numpy as jnp
from jax import lax
from jax.experimental import pallas as pl
from jax.experimental.pallas import tpu as pltpu

# ----------------------------- model config ---------------------------------
VOCAB_SIZE = 100
VOCAB_PAD = 128          # vocab padded to the 128-lane boundary
EMB_DIM = 32
NUM_HEADS = 4
FF_DIM = 64
NUM_LAYERS = 2
NUM_CLASSES = 2
LN_EPS = 1e-5
LANE = 128               # lane-dense padded logits / packed-vector width

# packed f32 vector slab: 8 rows per layer + 1 classifier-bias row
#   per-layer rows: 0 qkv_b | 1 out_b | 2 lin1_b | 3 lin2_b
#                   4 ln1_w | 5 ln1_b | 6 ln2_w  | 7 ln2_b
_ROW_CLS_B = NUM_LAYERS * 8


def _layernorm(x, w, b):
    mu = jnp.mean(x, axis=-1, keepdims=True)
    var = jnp.mean((x - mu) ** 2, axis=-1, keepdims=True)
    return (x - mu) * lax.rsqrt(var + LN_EPS) * w + b


# --------------------------- fused Pallas kernel ------------------------------
def fused_transformer_kernel(ids_ref, mask_ref, emb_ref, w_in_ref, lin2_w_ref,
                             vec_ref, cls_w_ref, o_ref,
                             *, batch, seq, heads, layers):
    """Embedding + `layers` post-norm encoder layers + mean-pool + linear."""
    E = EMB_DIM
    F = FF_DIM
    N = batch * seq
    Dh = E // heads
    scale = 1.0 / math.sqrt(Dh)

    # ---- embedding lookup: bf16 one-hot x bf16 padded table on the MXU -------
    # NOTE: out-of-range ids silently map to a zero embedding (PyTorch would
    # raise); no in-kernel guard.
    ids = ids_ref[...]                                                   # (N, 1) i32
    onehot = jnp.where(
        ids == lax.broadcasted_iota(jnp.int32, (N, VOCAB_PAD), 1),
        1.0, 0.0).astype(jnp.bfloat16)                                   # (N, 128)
    x = jnp.dot(onehot, emb_ref[...],
                preferred_element_type=jnp.float32)                     # (N, E) f32

    vecs = vec_ref[...]                                                  # (L*8+1, 128) f32

    # Block-diag (over batch) additive mask, broadcast over heads ONCE before
    # the layer loop (JAX does not CSE broadcast_in_dim across the unrolled loop).
    mask3 = jnp.broadcast_to(mask_ref[...][None], (heads, N, N))         # (H, N, N)

    for l in range(layers):                                              # static, L=2
        base = 8 * l
        qkv_b  = vecs[base + 0:base + 1, :3 * E]
        out_b  = vecs[base + 1:base + 2, :E]
        lin1_b = vecs[base + 2:base + 3, :F]
        lin2_b = vecs[base + 3:base + 4, :E]
        ln1_w  = vecs[base + 4:base + 5, :E]
        ln1_b  = vecs[base + 5:base + 6, :E]
        ln2_w  = vecs[base + 6:base + 7, :E]
        ln2_b  = vecs[base + 7:base + 8, :E]

        w = w_in_ref[l]                          # (E, 192) bf16 = [qkv | out | lin1]
        qkv_w  = w[:, :3 * E]                    # (E, 96)
        out_w  = w[:, 3 * E:4 * E]               # (E, 32)
        lin1_w = w[:, 4 * E:4 * E + F]           # (E, 64)

        # ---- multi-head self-attention (combined in_proj) --------------------
        x_bf = x.astype(jnp.bfloat16)            # single cast of the slab
        qkv = jnp.dot(x_bf, qkv_w,
                      preferred_element_type=jnp.float32) + qkv_b        # (N, 3E)

        # one head-split layout change: (N, 3E) -> (3H, N, Dh); minor dim (Dh)
        # is preserved by the transpose, leading-axis slices are cheap.
        qkv_h = jnp.transpose(qkv.reshape(N, 3 * heads, Dh), (1, 0, 2))  # (3H, N, Dh)
        q = qkv_h[:heads] * scale                                        # (H, N, Dh)
        k = qkv_h[heads:2 * heads]
        v = qkv_h[2 * heads:]

        # leading-batch batched matmuls over the head axis (single dot_general each)
        s = jnp.einsum('hnd,hmd->hnm', q, k,
                       preferred_element_type=jnp.float32)               # (H, N, N)
        s = s + mask3
        s = s - jnp.max(s, axis=-1, keepdims=True)
        p = jnp.exp(s)
        # approx reciprocal lands on the EUP slot; ~2^-12 rel. error is fine for
        # inference (use approx=False for bit-level parity testing).
        p = p * pl.reciprocal(jnp.sum(p, axis=-1, keepdims=True), approx=True)
        ctx = jnp.einsum('hnm,hmd->hnd', p, v,
                         preferred_element_type=jnp.float32)             # (H, N, Dh)

        attn = jnp.transpose(ctx, (1, 0, 2)).reshape(N, E)               # merge heads
        attn = jnp.dot(attn.astype(jnp.bfloat16), out_w,
                       preferred_element_type=jnp.float32) + out_b

        # residual + LayerNorm 1 (norm_first=False default)
        x = _layernorm(x + attn, ln1_w, ln1_b)

        # ---- feed-forward: Linear -> ReLU -> Linear --------------------------
        x_bf = x.astype(jnp.bfloat16)
        h = jnp.dot(x_bf, lin1_w, preferred_element_type=jnp.float32) + lin1_b
        h = jnp.maximum(h, 0.0)
        h = jnp.dot(h.astype(jnp.bfloat16), lin2_w_ref[l],
                    preferred_element_type=jnp.float32) + lin2_b

        # residual + LayerNorm 2
        x = _layernorm(x + h, ln2_w, ln2_b)

    # ---- mean over the sequence (torch.mean(output, dim=0) on (S,B,E)) -------
    pooled = jnp.mean(x.reshape(batch, seq, E), axis=1)                  # (B, E)

    # dropout -> identity at inference.
    # ---- classifier: lane-dense (B, 128) store (lanes >= NUM_CLASSES are 0) --
    cls_b = vecs[_ROW_CLS_B:_ROW_CLS_B + 1, :]                           # (1, 128)
    o_ref[...] = jnp.dot(pooled.astype(jnp.bfloat16), cls_w_ref[...],
                         preferred_element_type=jnp.float32) + cls_b


# ------------------------------- wrapper --------------------------------------
def transformer_classifier(params, texts, attention_mask):
    """texts: (B, S) int32 token ids; attention_mask: (S, S) float additive mask."""
    B, S = texts.shape
    N = B * S
    assert 3 * EMB_DIM <= LANE and FF_DIM <= LANE, "packed vec layout assumption"

    ids = texts.reshape(N, 1).astype(jnp.int32)

    # Block-diagonal additive mask over the merged (batch*seq) axis: attention is
    # batched over heads only inside the kernel, so cross-batch keys get -1e30.
    b_idx = jnp.arange(N, dtype=jnp.int32) // S
    same = b_idx[:, None] == b_idx[None, :]
    big_mask = jnp.where(same,
                         jnp.tile(attention_mask.astype(jnp.float32), (B, B)),
                         jnp.float32(-1e30))                             # (N, N)

    kernel = functools.partial(fused_transformer_kernel,
                               batch=B, seq=S, heads=NUM_HEADS, layers=NUM_LAYERS)

    inputs = (ids, big_mask, params['embedding'], params['w_in'],
              params['lin2_w'], params['vecs'], params['cls_w'])

    E, F, H, L = EMB_DIM, FF_DIM, NUM_HEADS, NUM_LAYERS
    Dh = E // H
    flops = 2 * N * VOCAB_PAD * E
    flops += L * 2 * (N * E * 3 * E + 2 * H * N * N * Dh + N * E * E + 2 * N * E * F)
    flops += 2 * B * E * LANE
    bytes_accessed = sum(int(a.size) * a.dtype.itemsize for a in inputs) + B * LANE * 4

    vmem = pl.BlockSpec(memory_space=pltpu.MemorySpace.VMEM)
    logits_pad = pl.pallas_call(
        kernel,
        out_shape=jax.ShapeDtypeStruct((B, LANE), jnp.float32),
        in_specs=[vmem] * len(inputs),
        out_specs=vmem,
        cost_estimate=pl.CostEstimate(flops=int(flops),
                                      transcendentals=int(L * H * N * N),
                                      bytes_accessed=int(bytes_accessed)),
    )(*inputs)
    return logits_pad[:, :NUM_CLASSES]


# ------------------------- deterministic param init --------------------------
def init_params(key):
    ks = jax.random.split(key, 6)
    L, E, F = NUM_LAYERS, EMB_DIM, FF_DIM

    def w(k, shape, scale=0.05):
        return scale * jax.random.normal(k, shape, jnp.float32)

    # embedding table padded to the 128-lane boundary; bf16 MXU operand
    emb = jnp.zeros((VOCAB_PAD, E), jnp.float32)
    emb = emb.at[:VOCAB_SIZE].set(
        0.02 * jax.random.normal(ks[0], (VOCAB_SIZE, E), jnp.float32))

    # weights pre-transposed to (in, out); [qkv_w | out_w | lin1_w] packed along
    # the output dim (all share contraction dim E) -> one (L, 32, 192) DMA slab.
    qkv_w = w(ks[1], (L, E, 3 * E))
    out_w = w(ks[2], (L, E, E))
    lin1_w = w(ks[3], (L, E, F))
    w_in = jnp.concatenate([qkv_w, out_w, lin1_w], axis=-1)             # (L, E, 192)

    lin2_w = w(ks[5], (L, F, E))

    # packed f32 small vectors: biases + LayerNorm params per layer + classifier bias
    vecs = jnp.zeros((L * 8 + 1, LANE), jnp.float32)
    for l in range(L):
        vecs = vecs.at[8 * l + 4, :E].set(1.0)   # LayerNorm1 weight = 1
        vecs = vecs.at[8 * l + 6, :E].set(1.0)   # LayerNorm2 weight = 1
    # all biases (qkv/out/lin1/lin2/ln/cls) stay zero-initialized

    cls_w = jnp.zeros((E, LANE), jnp.float32)
    cls_w = cls_w.at[:, :NUM_CLASSES].set(
        0.05 * jax.random.normal(ks[4], (E, NUM_CLASSES), jnp.float32))

    return dict(
        embedding=emb.astype(jnp.bfloat16),
        w_in=w_in.astype(jnp.bfloat16),
        lin2_w=lin2_w.astype(jnp.bfloat16),
        vecs=vecs,
        cls_w=cls_w.astype(jnp.bfloat16),
    )


# ---------------------------------- main --------------------------------------
if __name__ == "__main__":
    root = jax.random.PRNGKey(0)
    pkey, tkey = jax.random.split(root)
    params = init_params(pkey)

    B, S = 2, 8
    texts = jax.random.randint(tkey, (B, S), 0, VOCAB_SIZE, dtype=jnp.int32)
    attention_mask = jnp.zeros((S, S), jnp.float32)   # additive src_mask (no masking)

    logits = transformer_classifier(params, texts, attention_mask)
    logits = jax.block_until_ready(logits)

    assert logits.shape == (B, NUM_CLASSES), logits.shape
    assert bool(jnp.all(jnp.isfinite(logits)))
    print("KERNEL_OK")
</pallas_src>

<mosaic_0001>
module attributes {stable_mosaic.version = 11 : i64} {
  func.func @fused_transformer_kernel(%arg0: memref<16x1xi32, #tpu.memory_space<vmem>>, %arg1: memref<16x16xf32, #tpu.memory_space<vmem>>, %arg2: memref<128x32xbf16, #tpu.memory_space<vmem>>, %arg3: memref<2x32x192xbf16, #tpu.memory_space<vmem>>, %arg4: memref<2x64x32xbf16, #tpu.memory_space<vmem>>, %arg5: memref<17x128xf32, #tpu.memory_space<vmem>>, %arg6: memref<32x128xbf16, #tpu.memory_space<vmem>>, %arg7: memref<2x128xf32, #tpu.memory_space<vmem>>) attributes {dimension_semantics = [], scalar_prefetch = 0 : i64, scratch_operands = 0 : i64, tpu.core_type = #tpu.core_type<tc>} {
    %c0 = arith.constant 0 : index
    %c0_0 = arith.constant 0 : index
    %0 = vector.load %arg0[%c0, %c0_0] : memref<16x1xi32, #tpu.memory_space<vmem>>, vector<16x1xi32>
    %1 = tpu.iota {dimensions = array<i32: 1>} : vector<16x128xi32>
    %2 = vector.broadcast %0 : vector<16x1xi32> to vector<16x128xi32>
    %3 = arith.cmpi eq, %2, %1 : vector<16x128xi32>
    %cst = arith.constant 1.000000e+00 : f32
    %cst_1 = arith.constant 0.000000e+00 : f32
    %4 = vector.broadcast %cst : f32 to vector<16x128xf32>
    %5 = vector.broadcast %cst_1 : f32 to vector<16x128xf32>
    %6 = arith.select %3, %4, %5 : vector<16x128xi1>, vector<16x128xf32>
    %7 = arith.truncf %6 : vector<16x128xf32> to vector<16x128xbf16>
    %c0_2 = arith.constant 0 : index
    %c0_3 = arith.constant 0 : index
    %8 = vector.load %arg2[%c0_2, %c0_3] : memref<128x32xbf16, #tpu.memory_space<vmem>>, vector<128x32xbf16>
    %cst_4 = arith.constant dense<0.000000e+00> : vector<16x32xf32>
    %9 = tpu.matmul %7, %8, %cst_4 {dimension_numbers = #tpu.dot_dimension_numbers<[1], [0], [0], [1], [0, 0, 1, 1], [], []>} : vector<16x128xbf16>, vector<128x32xbf16>, vector<16x32xf32> -> vector<16x32xf32>
    %c0_5 = arith.constant 0 : index
    %c0_6 = arith.constant 0 : index
    %10 = vector.load %arg5[%c0_5, %c0_6] : memref<17x128xf32, #tpu.memory_space<vmem>>, vector<17x128xf32>
    %c0_7 = arith.constant 0 : index
    %c0_8 = arith.constant 0 : index
    %11 = vector.load %arg1[%c0_7, %c0_8] : memref<16x16xf32, #tpu.memory_space<vmem>>, vector<16x16xf32>
    %12 = vector.shape_cast %11 : vector<16x16xf32> to vector<1x16x16xf32>
    %13 = vector.shape_cast %12 : vector<1x16x16xf32> to vector<1x16x16xf32>
    %14 = vector.broadcast %13 : vector<1x16x16xf32> to vector<4x16x16xf32>
    %15 = vector.extract_strided_slice %10 {offsets = [0, 0], sizes = [1, 96], strides = [1, 1]} : vector<17x128xf32> to vector<1x96xf32>
    %16 = vector.extract_strided_slice %10 {offsets = [1, 0], sizes = [1, 32], strides = [1, 1]} : vector<17x128xf32> to vector<1x32xf32>
    %17 = vector.extract_strided_slice %10 {offsets = [2, 0], sizes = [1, 64], strides = [1, 1]} : vector<17x128xf32> to vector<1x64xf32>
    %18 = vector.extract_strided_slice %10 {offsets = [3, 0], sizes = [1, 32], strides = [1, 1]} : vector<17x128xf32> to vector<1x32xf32>
    %19 = vector.extract_strided_slice %10 {offsets = [4, 0], sizes = [1, 32], strides = [1, 1]} : vector<17x128xf32> to vector<1x32xf32>
    %20 = vector.extract_strided_slice %10 {offsets = [5, 0], sizes = [1, 32], strides = [1, 1]} : vector<17x128xf32> to vector<1x32xf32>
    %21 = vector.extract_strided_slice %10 {offsets = [6, 0], sizes = [1, 32], strides = [1, 1]} : vector<17x128xf32> to vector<1x32xf32>
    %22 = vector.extract_strided_slice %10 {offsets = [7, 0], sizes = [1, 32], strides = [1, 1]} : vector<17x128xf32> to vector<1x32xf32>
    %c0_9 = arith.constant 0 : index
    %c0_10 = arith.constant 0 : index
    %c0_11 = arith.constant 0 : index
    %23 = vector.load %arg3[%c0_9, %c0_10, %c0_11] : memref<2x32x192xbf16, #tpu.memory_space<vmem>>, vector<1x32x192xbf16>
    %24 = vector.shape_cast %23 : vector<1x32x192xbf16> to vector<32x192xbf16>
    %25 = vector.extract_strided_slice %24 {offsets = [0, 0], sizes = [32, 96], strides = [1, 1]} : vector<32x192xbf16> to vector<32x96xbf16>
    %26 = vector.extract_strided_slice %24 {offsets = [0, 96], sizes = [32, 32], strides = [1, 1]} : vector<32x192xbf16> to vector<32x32xbf16>
    %27 = vector.extract_strided_slice %24 {offsets = [0, 128], sizes = [32, 64], strides = [1, 1]} : vector<32x192xbf16> to vector<32x64xbf16>
    %28 = arith.truncf %9 : vector<16x32xf32> to vector<16x32xbf16>
    %cst_12 = arith.constant dense<0.000000e+00> : vector<16x96xf32>
    %29 = tpu.matmul %28, %25, %cst_12 {dimension_numbers = #tpu.dot_dimension_numbers<[1], [0], [0], [1], [0, 0, 1, 1], [], []>} : vector<16x32xbf16>, vector<32x96xbf16>, vector<16x96xf32> -> vector<16x96xf32>
    %30 = vector.broadcast %15 : vector<1x96xf32> to vector<16x96xf32>
    %31 = arith.addf %29, %30 : vector<16x96xf32>
    %32 = vector.shape_cast %31 : vector<16x96xf32> to vector<16x12x8xf32>
    %33 = tpu.transpose %32, [1, 0, 2] : vector<16x12x8xf32> -> vector<12x16x8xf32>
    %34 = vector.extract_strided_slice %33 {offsets = [0, 0, 0], sizes = [4, 16, 8], strides = [1, 1, 1]} : vector<12x16x8xf32> to vector<4x16x8xf32>
    %cst_13 = arith.constant 0.353553385 : f32
    %35 = vector.broadcast %cst_13 : f32 to vector<4x16x8xf32>
    %36 = arith.mulf %34, %35 : vector<4x16x8xf32>
    %37 = vector.extract_strided_slice %33 {offsets = [4, 0, 0], sizes = [4, 16, 8], strides = [1, 1, 1]} : vector<12x16x8xf32> to vector<4x16x8xf32>
    %38 = vector.extract_strided_slice %33 {offsets = [8, 0, 0], sizes = [4, 16, 8], strides = [1, 1, 1]} : vector<12x16x8xf32> to vector<4x16x8xf32>
    "tpu.trace_start"() <{level = 10 : i32, message = "hnd,hmd->hnm"}> : () -> ()
    %cst_14 = arith.constant dense<0.000000e+00> : vector<4x16x16xf32>
    %39 = tpu.matmul %36, %37, %cst_14 {dimension_numbers = #tpu.dot_dimension_numbers<[2], [2], [1], [1], [0, 0, 0, 1, 1, 1], [0], [0]>} : vector<4x16x8xf32>, vector<4x16x8xf32>, vector<4x16x16xf32> -> vector<4x16x16xf32>
    "tpu.trace_stop"() : () -> ()
    %40 = arith.addf %39, %14 : vector<4x16x16xf32>
    %cst_15 = arith.constant dense<0xFF800000> : vector<4x16xf32>
    %41 = vector.multi_reduction <maximumf>, %40, %cst_15 [2] : vector<4x16x16xf32> to vector<4x16xf32>
    %42 = vector.shape_cast %41 : vector<4x16xf32> to vector<4x16x1xf32>
    %43 = vector.broadcast %42 : vector<4x16x1xf32> to vector<4x16x16xf32>
    %44 = arith.subf %40, %43 : vector<4x16x16xf32>
    %45 = math.exp %44 : vector<4x16x16xf32>
    %cst_16 = arith.constant dense<0.000000e+00> : vector<4x16xf32>
    %46 = vector.multi_reduction <add>, %45, %cst_16 [2] : vector<4x16x16xf32> to vector<4x16xf32>
    %47 = vector.shape_cast %46 : vector<4x16xf32> to vector<4x16x1xf32>
    %48 = tpu.reciprocal %47 {approx = true} : vector<4x16x1xf32> -> vector<4x16x1xf32>
    %49 = vector.broadcast %48 : vector<4x16x1xf32> to vector<4x16x16xf32>
    %50 = arith.mulf %45, %49 : vector<4x16x16xf32>
    "tpu.trace_start"() <{level = 10 : i32, message = "hnm,hmd->hnd"}> : () -> ()
    %cst_17 = arith.constant dense<0.000000e+00> : vector<4x16x8xf32>
    %51 = tpu.matmul %50, %38, %cst_17 {dimension_numbers = #tpu.dot_dimension_numbers<[2], [1], [1], [2], [0, 0, 0, 1, 1, 2], [0], [0]>} : vector<4x16x16xf32>, vector<4x16x8xf32>, vector<4x16x8xf32> -> vector<4x16x8xf32>
    "tpu.trace_stop"() : () -> ()
    %52 = tpu.transpose %51, [1, 0, 2] : vector<4x16x8xf32> -> vector<16x4x8xf32>
    %53 = vector.shape_cast %52 : vector<16x4x8xf32> to vector<16x32xf32>
    %54 = arith.truncf %53 : vector<16x32xf32> to vector<16x32xbf16>
    %cst_18 = arith.constant dense<0.000000e+00> : vector<16x32xf32>
    %55 = tpu.matmul %54, %26, %cst_18 {dimension_numbers = #tpu.dot_dimension_numbers<[1], [0], [0], [1], [0, 0, 1, 1], [], []>} : vector<16x32xbf16>, vector<32x32xbf16>, vector<16x32xf32> -> vector<16x32xf32>
    %56 = vector.broadcast %16 : vector<1x32xf32> to vector<16x32xf32>
    %57 = arith.addf %55, %56 : vector<16x32xf32>
    %58 = arith.addf %9, %57 : vector<16x32xf32>
    %cst_19 = arith.constant dense<0.000000e+00> : vector<16xf32>
    %59 = vector.multi_reduction <add>, %58, %cst_19 [1] : vector<16x32xf32> to vector<16xf32>
    %60 = vector.shape_cast %59 : vector<16xf32> to vector<16x1xf32>
    %cst_20 = arith.constant 3.200000e+01 : f32
    %61 = vector.broadcast %cst_20 : f32 to vector<16x1xf32>
    %62 = arith.divf %60, %61 : vector<16x1xf32>
    %63 = vector.broadcast %62 : vector<16x1xf32> to vector<16x32xf32>
    %64 = arith.subf %58, %63 : vector<16x32xf32>
    %65 = arith.mulf %64, %64 : vector<16x32xf32>
    %cst_21 = arith.constant dense<0.000000e+00> : vector<16xf32>
    %66 = vector.multi_reduction <add>, %65, %cst_21 [1] : vector<16x32xf32> to vector<16xf32>
    %67 = vector.shape_cast %66 : vector<16xf32> to vector<16x1xf32>
    %cst_22 = arith.constant 3.200000e+01 : f32
    %68 = vector.broadcast %cst_22 : f32 to vector<16x1xf32>
    %69 = arith.divf %67, %68 : vector<16x1xf32>
    %70 = vector.broadcast %62 : vector<16x1xf32> to vector<16x32xf32>
    %71 = arith.subf %58, %70 : vector<16x32xf32>
    %cst_23 = arith.constant 9.99999974E-6 : f32
    %72 = vector.broadcast %cst_23 : f32 to vector<16x1xf32>
    %73 = arith.addf %69, %72 : vector<16x1xf32>
    %74 = math.rsqrt %73 : vector<16x1xf32>
    %75 = vector.broadcast %74 : vector<16x1xf32> to vector<16x32xf32>
    %76 = arith.mulf %71, %75 : vector<16x32xf32>
    %77 = vector.broadcast %19 : vector<1x32xf32> to vector<16x32xf32>
    %78 = arith.mulf %76, %77 : vector<16x32xf32>
    %79 = vector.broadcast %20 : vector<1x32xf32> to vector<16x32xf32>
    %80 = arith.addf %78, %79 : vector<16x32xf32>
    %81 = arith.truncf %80 : vector<16x32xf32> to vector<16x32xbf16>
    %cst_24 = arith.constant dense<0.000000e+00> : vector<16x64xf32>
    %82 = tpu.matmul %81, %27, %cst_24 {dimension_numbers = #tpu.dot_dimension_numbers<[1], [0], [0], [1], [0, 0, 1, 1], [], []>} : vector<16x32xbf16>, vector<32x64xbf16>, vector<16x64xf32> -> vector<16x64xf32>
    %83 = vector.broadcast %17 : vector<1x64xf32> to vector<16x64xf32>
    %84 = arith.addf %82, %83 : vector<16x64xf32>
    %cst_25 = arith.constant 0.000000e+00 : f32
    %85 = vector.broadcast %cst_25 : f32 to vector<16x64xf32>
    %86 = arith.maximumf %84, %85 : vector<16x64xf32>
    %87 = arith.truncf %86 : vector<16x64xf32> to vector<16x64xbf16>
    %c0_26 = arith.constant 0 : index
    %c0_27 = arith.constant 0 : index
    %c0_28 = arith.constant 0 : index
    %88 = vector.load %arg4[%c0_26, %c0_27, %c0_28] : memref<2x64x32xbf16, #tpu.memory_space<vmem>>, vector<1x64x32xbf16>
    %89 = vector.shape_cast %88 : vector<1x64x32xbf16> to vector<64x32xbf16>
    %cst_29 = arith.constant dense<0.000000e+00> : vector<16x32xf32>
    %90 = tpu.matmul %87, %89, %cst_29 {dimension_numbers = #tpu.dot_dimension_numbers<[1], [0], [0], [1], [0, 0, 1, 1], [], []>} : vector<16x64xbf16>, vector<64x32xbf16>, vector<16x32xf32> -> vector<16x32xf32>
    %91 = vector.broadcast %18 : vector<1x32xf32> to vector<16x32xf32>
    %92 = arith.addf %90, %91 : vector<16x32xf32>
    %93 = arith.addf %80, %92 : vector<16x32xf32>
    %cst_30 = arith.constant dense<0.000000e+00> : vector<16xf32>
    %94 = vector.multi_reduction <add>, %93, %cst_30 [1] : vector<16x32xf32> to vector<16xf32>
    %95 = vector.shape_cast %94 : vector<16xf32> to vector<16x1xf32>
    %cst_31 = arith.constant 3.200000e+01 : f32
    %96 = vector.broadcast %cst_31 : f32 to vector<16x1xf32>
    %97 = arith.divf %95, %96 : vector<16x1xf32>
    %98 = vector.broadcast %97 : vector<16x1xf32> to vector<16x32xf32>
    %99 = arith.subf %93, %98 : vector<16x32xf32>
    %100 = arith.mulf %99, %99 : vector<16x32xf32>
    %cst_32 = arith.constant dense<0.000000e+00> : vector<16xf32>
    %101 = vector.multi_reduction <add>, %100, %cst_32 [1] : vector<16x32xf32> to vector<16xf32>
    %102 = vector.shape_cast %101 : vector<16xf32> to vector<16x1xf32>
    %cst_33 = arith.constant 3.200000e+01 : f32
    %103 = vector.broadcast %cst_33 : f32 to vector<16x1xf32>
    %104 = arith.divf %102, %103 : vector<16x1xf32>
    %105 = vector.broadcast %97 : vector<16x1xf32> to vector<16x32xf32>
    %106 = arith.subf %93, %105 : vector<16x32xf32>
    %cst_34 = arith.constant 9.99999974E-6 : f32
    %107 = vector.broadcast %cst_34 : f32 to vector<16x1xf32>
    %108 = arith.addf %104, %107 : vector<16x1xf32>
    %109 = math.rsqrt %108 : vector<16x1xf32>
    %110 = vector.broadcast %109 : vector<16x1xf32> to vector<16x32xf32>
    %111 = arith.mulf %106, %110 : vector<16x32xf32>
    %112 = vector.broadcast %21 : vector<1x32xf32> to vector<16x32xf32>
    %113 = arith.mulf %111, %112 : vector<16x32xf32>
    %114 = vector.broadcast %22 : vector<1x32xf32> to vector<16x32xf32>
    %115 = arith.addf %113, %114 : vector<16x32xf32>
    %116 = vector.extract_strided_slice %10 {offsets = [8, 0], sizes = [1, 96], strides = [1, 1]} : vector<17x128xf32> to vector<1x96xf32>
    %117 = vector.extract_strided_slice %10 {offsets = [9, 0], sizes = [1, 32], strides = [1, 1]} : vector<17x128xf32> to vector<1x32xf32>
    %118 = vector.extract_strided_slice %10 {offsets = [10, 0], sizes = [1, 64], strides = [1, 1]} : vector<17x128xf32> to vector<1x64xf32>
    %119 = vector.extract_strided_slice %10 {offsets = [11, 0], sizes = [1, 32], strides = [1, 1]} : vector<17x128xf32> to vector<1x32xf32>
    %120 = vector.extract_strided_slice %10 {offsets = [12, 0], sizes = [1, 32], strides = [1, 1]} : vector<17x128xf32> to vector<1x32xf32>
    %121 = vector.extract_strided_slice %10 {offsets = [13, 0], sizes = [1, 32], strides = [1, 1]} : vector<17x128xf32> to vector<1x32xf32>
    %122 = vector.extract_strided_slice %10 {offsets = [14, 0], sizes = [1, 32], strides = [1, 1]} : vector<17x128xf32> to vector<1x32xf32>
    %123 = vector.extract_strided_slice %10 {offsets = [15, 0], sizes = [1, 32], strides = [1, 1]} : vector<17x128xf32> to vector<1x32xf32>
    %c1 = arith.constant 1 : index
    %c0_35 = arith.constant 0 : index
    %c0_36 = arith.constant 0 : index
    %124 = vector.load %arg3[%c1, %c0_35, %c0_36] : memref<2x32x192xbf16, #tpu.memory_space<vmem>>, vector<1x32x192xbf16>
    %125 = vector.shape_cast %124 : vector<1x32x192xbf16> to vector<32x192xbf16>
    %126 = vector.extract_strided_slice %125 {offsets = [0, 0], sizes = [32, 96], strides = [1, 1]} : vector<32x192xbf16> to vector<32x96xbf16>
    %127 = vector.extract_strided_slice %125 {offsets = [0, 96], sizes = [32, 32], strides = [1, 1]} : vector<32x192xbf16> to vector<32x32xbf16>
    %128 = vector.extract_strided_slice %125 {offsets = [0, 128], sizes = [32, 64], strides = [1, 1]} : vector<32x192xbf16> to vector<32x64xbf16>
    %129 = arith.truncf %115 : vector<16x32xf32> to vector<16x32xbf16>
    %cst_37 = arith.constant dense<0.000000e+00> : vector<16x96xf32>
    %130 = tpu.matmul %129, %126, %cst_37 {dimension_numbers = #tpu.dot_dimension_numbers<[1], [0], [0], [1], [0, 0, 1, 1], [], []>} : vector<16x32xbf16>, vector<32x96xbf16>, vector<16x96xf32> -> vector<16x96xf32>
    %131 = vector.broadcast %116 : vector<1x96xf32> to vector<16x96xf32>
    %132 = arith.addf %130, %131 : vector<16x96xf32>
    %133 = vector.shape_cast %132 : vector<16x96xf32> to vector<16x12x8xf32>
    %134 = tpu.transpose %133, [1, 0, 2] : vector<16x12x8xf32> -> vector<12x16x8xf32>
    %135 = vector.extract_strided_slice %134 {offsets = [0, 0, 0], sizes = [4, 16, 8], strides = [1, 1, 1]} : vector<12x16x8xf32> to vector<4x16x8xf32>
    %cst_38 = arith.constant 0.353553385 : f32
    %136 = vector.broadcast %cst_38 : f32 to vector<4x16x8xf32>
    %137 = arith.mulf %135, %136 : vector<4x16x8xf32>
    %138 = vector.extract_strided_slice %134 {offsets = [4, 0, 0], sizes = [4, 16, 8], strides = [1, 1, 1]} : vector<12x16x8xf32> to vector<4x16x8xf32>
    %139 = vector.extract_strided_slice %134 {offsets = [8, 0, 0], sizes = [4, 16, 8], strides = [1, 1, 1]} : vector<12x16x8xf32> to vector<4x16x8xf32>
    "tpu.trace_start"() <{level = 10 : i32, message = "hnd,hmd->hnm"}> : () -> ()
    %cst_39 = arith.constant dense<0.000000e+00> : vector<4x16x16xf32>
    %140 = tpu.matmul %137, %138, %cst_39 {dimension_numbers = #tpu.dot_dimension_numbers<[2], [2], [1], [1], [0, 0, 0, 1, 1, 1], [0], [0]>} : vector<4x16x8xf32>, vector<4x16x8xf32>, vector<4x16x16xf32> -> vector<4x16x16xf32>
    "tpu.trace_stop"() : () -> ()
    %141 = arith.addf %140, %14 : vector<4x16x16xf32>
    %cst_40 = arith.constant dense<0xFF800000> : vector<4x16xf32>
    %142 = vector.multi_reduction <maximumf>, %141, %cst_40 [2] : vector<4x16x16xf32> to vector<4x16xf32>
    %143 = vector.shape_cast %142 : vector<4x16xf32> to vector<4x16x1xf32>
    %144 = vector.broadcast %143 : vector<4x16x1xf32> to vector<4x16x16xf32>
    %145 = arith.subf %141, %144 : vector<4x16x16xf32>
    %146 = math.exp %145 : vector<4x16x16xf32>
    %cst_41 = arith.constant dense<0.000000e+00> : vector<4x16xf32>
    %147 = vector.multi_reduction <add>, %146, %cst_41 [2] : vector<4x16x16xf32> to vector<4x16xf32>
    %148 = vector.shape_cast %147 : vector<4x16xf32> to vector<4x16x1xf32>
    %149 = tpu.reciprocal %148 {approx = true} : vector<4x16x1xf32> -> vector<4x16x1xf32>
    %150 = vector.broadcast %149 : vector<4x16x1xf32> to vector<4x16x16xf32>
    %151 = arith.mulf %146, %150 : vector<4x16x16xf32>
    "tpu.trace_start"() <{level = 10 : i32, message = "hnm,hmd->hnd"}> : () -> ()
    %cst_42 = arith.constant dense<0.000000e+00> : vector<4x16x8xf32>
    %152 = tpu.matmul %151, %139, %cst_42 {dimension_numbers = #tpu.dot_dimension_numbers<[2], [1], [1], [2], [0, 0, 0, 1, 1, 2], [0], [0]>} : vector<4x16x16xf32>, vector<4x16x8xf32>, vector<4x16x8xf32> -> vector<4x16x8xf32>
    "tpu.trace_stop"() : () -> ()
    %153 = tpu.transpose %152, [1, 0, 2] : vector<4x16x8xf32> -> vector<16x4x8xf32>
    %154 = vector.shape_cast %153 : vector<16x4x8xf32> to vector<16x32xf32>
    %155 = arith.truncf %154 : vector<16x32xf32> to vector<16x32xbf16>
    %cst_43 = arith.constant dense<0.000000e+00> : vector<16x32xf32>
    %156 = tpu.matmul %155, %127, %cst_43 {dimension_numbers = #tpu.dot_dimension_numbers<[1], [0], [0], [1], [0, 0, 1, 1], [], []>} : vector<16x32xbf16>, vector<32x32xbf16>, vector<16x32xf32> -> vector<16x32xf32>
    %157 = vector.broadcast %117 : vector<1x32xf32> to vector<16x32xf32>
    %158 = arith.addf %156, %157 : vector<16x32xf32>
    %159 = arith.addf %115, %158 : vector<16x32xf32>
    %cst_44 = arith.constant dense<0.000000e+00> : vector<16xf32>
    %160 = vector.multi_reduction <add>, %159, %cst_44 [1] : vector<16x32xf32> to vector<16xf32>
    %161 = vector.shape_cast %160 : vector<16xf32> to vector<16x1xf32>
    %cst_45 = arith.constant 3.200000e+01 : f32
    %162 = vector.broadcast %cst_45 : f32 to vector<16x1xf32>
    %163 = arith.divf %161, %162 : vector<16x1xf32>
    %164 = vector.broadcast %163 : vector<16x1xf32> to vector<16x32xf32>
    %165 = arith.subf %159, %164 : vector<16x32xf32>
    %166 = arith.mulf %165, %165 : vector<16x32xf32>
    %cst_46 = arith.constant dense<0.000000e+00> : vector<16xf32>
    %167 = vector.multi_reduction <add>, %166, %cst_46 [1] : vector<16x32xf32> to vector<16xf32>
    %168 = vector.shape_cast %167 : vector<16xf32> to vector<16x1xf32>
    %cst_47 = arith.constant 3.200000e+01 : f32
    %169 = vector.broadcast %cst_47 : f32 to vector<16x1xf32>
    %170 = arith.divf %168, %169 : vector<16x1xf32>
    %171 = vector.broadcast %163 : vector<16x1xf32> to vector<16x32xf32>
    %172 = arith.subf %159, %171 : vector<16x32xf32>
    %cst_48 = arith.constant 9.99999974E-6 : f32
    %173 = vector.broadcast %cst_48 : f32 to vector<16x1xf32>
    %174 = arith.addf %170, %173 : vector<16x1xf32>
    %175 = math.rsqrt %174 : vector<16x1xf32>
    %176 = vector.broadcast %175 : vector<16x1xf32> to vector<16x32xf32>
    %177 = arith.mulf %172, %176 : vector<16x32xf32>
    %178 = vector.broadcast %120 : vector<1x32xf32> to vector<16x32xf32>
    %179 = arith.mulf %177, %178 : vector<16x32xf32>
    %180 = vector.broadcast %121 : vector<1x32xf32> to vector<16x32xf32>
    %181 = arith.addf %179, %180 : vector<16x32xf32>
    %182 = arith.truncf %181 : vector<16x32xf32> to vector<16x32xbf16>
    %cst_49 = arith.constant dense<0.000000e+00> : vector<16x64xf32>
    %183 = tpu.matmul %182, %128, %cst_49 {dimension_numbers = #tpu.dot_dimension_numbers<[1], [0], [0], [1], [0, 0, 1, 1], [], []>} : vector<16x32xbf16>, vector<32x64xbf16>, vector<16x64xf32> -> vector<16x64xf32>
    %184 = vector.broadcast %118 : vector<1x64xf32> to vector<16x64xf32>
    %185 = arith.addf %183, %184 : vector<16x64xf32>
    %cst_50 = arith.constant 0.000000e+00 : f32
    %186 = vector.broadcast %cst_50 : f32 to vector<16x64xf32>
    %187 = arith.maximumf %185, %186 : vector<16x64xf32>
    %188 = arith.truncf %187 : vector<16x64xf32> to vector<16x64xbf16>
    %c1_51 = arith.constant 1 : index
    %c0_52 = arith.constant 0 : index
    %c0_53 = arith.constant 0 : index
    %189 = vector.load %arg4[%c1_51, %c0_52, %c0_53] : memref<2x64x32xbf16, #tpu.memory_space<vmem>>, vector<1x64x32xbf16>
    %190 = vector.shape_cast %189 : vector<1x64x32xbf16> to vector<64x32xbf16>
    %cst_54 = arith.constant dense<0.000000e+00> : vector<16x32xf32>
    %191 = tpu.matmul %188, %190, %cst_54 {dimension_numbers = #tpu.dot_dimension_numbers<[1], [0], [0], [1], [0, 0, 1, 1], [], []>} : vector<16x64xbf16>, vector<64x32xbf16>, vector<16x32xf32> -> vector<16x32xf32>
    %192 = vector.broadcast %119 : vector<1x32xf32> to vector<16x32xf32>
    %193 = arith.addf %191, %192 : vector<16x32xf32>
    %194 = arith.addf %181, %193 : vector<16x32xf32>
    %cst_55 = arith.constant dense<0.000000e+00> : vector<16xf32>
    %195 = vector.multi_reduction <add>, %194, %cst_55 [1] : vector<16x32xf32> to vector<16xf32>
    %196 = vector.shape_cast %195 : vector<16xf32> to vector<16x1xf32>
    %cst_56 = arith.constant 3.200000e+01 : f32
    %197 = vector.broadcast %cst_56 : f32 to vector<16x1xf32>
    %198 = arith.divf %196, %197 : vector<16x1xf32>
    %199 = vector.broadcast %198 : vector<16x1xf32> to vector<16x32xf32>
    %200 = arith.subf %194, %199 : vector<16x32xf32>
    %201 = arith.mulf %200, %200 : vector<16x32xf32>
    %cst_57 = arith.constant dense<0.000000e+00> : vector<16xf32>
    %202 = vector.multi_reduction <add>, %201, %cst_57 [1] : vector<16x32xf32> to vector<16xf32>
    %203 = vector.shape_cast %202 : vector<16xf32> to vector<16x1xf32>
    %cst_58 = arith.constant 3.200000e+01 : f32
    %204 = vector.broadcast %cst_58 : f32 to vector<16x1xf32>
    %205 = arith.divf %203, %204 : vector<16x1xf32>
    %206 = vector.broadcast %198 : vector<16x1xf32> to vector<16x32xf32>
    %207 = arith.subf %194, %206 : vector<16x32xf32>
    %cst_59 = arith.constant 9.99999974E-6 : f32
    %208 = vector.broadcast %cst_59 : f32 to vector<16x1xf32>
    %209 = arith.addf %205, %208 : vector<16x1xf32>
    %210 = math.rsqrt %209 : vector<16x1xf32>
    %211 = vector.broadcast %210 : vector<16x1xf32> to vector<16x32xf32>
    %212 = arith.mulf %207, %211 : vector<16x32xf32>
    %213 = vector.broadcast %122 : vector<1x32xf32> to vector<16x32xf32>
    %214 = arith.mulf %212, %213 : vector<16x32xf32>
    %215 = vector.broadcast %123 : vector<1x32xf32> to vector<16x32xf32>
    %216 = arith.addf %214, %215 : vector<16x32xf32>
    %217 = vector.shape_cast %216 : vector<16x32xf32> to vector<2x8x32xf32>
    %cst_60 = arith.constant dense<0.000000e+00> : vector<2x32xf32>
    %218 = vector.multi_reduction <add>, %217, %cst_60 [1] : vector<2x8x32xf32> to vector<2x32xf32>
    %cst_61 = arith.constant 8.000000e+00 : f32
    %219 = vector.broadcast %cst_61 : f32 to vector<2x32xf32>
    %220 = arith.divf %218, %219 : vector<2x32xf32>
    %221 = vector.extract_strided_slice %10 {offsets = [16, 0], sizes = [1, 128], strides = [1, 1]} : vector<17x128xf32> to vector<1x128xf32>
    %222 = arith.truncf %220 : vector<2x32xf32> to vector<2x32xbf16>
    %c0_62 = arith.constant 0 : index
    %c0_63 = arith.constant 0 : index
    %223 = vector.load %arg6[%c0_62, %c0_63] : memref<32x128xbf16, #tpu.memory_space<vmem>>, vector<32x128xbf16>
    %cst_64 = arith.constant dense<0.000000e+00> : vector<2x128xf32>
    %224 = tpu.matmul %222, %223, %cst_64 {dimension_numbers = #tpu.dot_dimension_numbers<[1], [0], [0], [1], [0, 0, 1, 1], [], []>} : vector<2x32xbf16>, vector<32x128xbf16>, vector<2x128xf32> -> vector<2x128xf32>
    %225 = vector.broadcast %221 : vector<1x128xf32> to vector<2x128xf32>
    %226 = arith.addf %224, %225 : vector<2x128xf32>
    %c0_65 = arith.constant 0 : index
    %c0_66 = arith.constant 0 : index
    %227 = vector.load %arg7[%c0_65, %c0_66] : memref<2x128xf32, #tpu.memory_space<vmem>>, vector<2x128xf32>
    tpu.vector_store %arg7[%c0_65, %c0_66], %226 {strides = array<i32>} : memref<2x128xf32, #tpu.memory_space<vmem>>, vector<2x128xf32>,
    return
  }
}

</mosaic_0001>

<llo_original>
// kernel: tpu_custom_call.1
$region0: #{tpu_custom_call.1}
  #allocation0 [shape = 'u32[]', space=smem, size = 0x4, offset = 0x4, fixed_abs, tag = 'smem constant byte address 0x4 - core index']
  #allocation1 [shape = 'u32[144,128]{1,0:T(1,128)}', space=vmem, size = 0x12000, scoped, tag = 'internal scratch']
  %s0 = inlined_call_operand.vmem [shape: s32[16,1], index: 0, kind: input, shape index: {}]
  %s1 = inlined_call_operand.vmem [shape: f32[16,16], index: 1, kind: input, shape index: {}]
  %s2 = inlined_call_operand.vmem [shape: bf16[128,32], index: 2, kind: input, shape index: {}]
  %s3 = inlined_call_operand.vmem [shape: bf16[2,32,192], index: 3, kind: input, shape index: {}]
  %s4 = inlined_call_operand.vmem [shape: bf16[2,64,32], index: 4, kind: input, shape index: {}]
  %s5 = inlined_call_operand.vmem [shape: f32[17,128], index: 5, kind: input, shape index: {}]
  %s6 = inlined_call_operand.vmem [shape: bf16[32,128], index: 6, kind: input, shape index: {}]
  %s7 = inlined_call_operand.hbm [shape: f32[2,128], index: 7, kind: output, shape index: {}]
  %s8 = sld [smem:[#allocation0]]
  $region38: #{tpu_custom_call.1} parent=0
    _
  %s10 = ssub.s32 1, %s8
  %s11 = scalar_select 0, %s10, %s8
  $region1: #{tpu_custom_call.1} parent=0
    #allocation2 [shape = 'u8[1024]{0}', space=vmem, size = 0x400, scoped, tag = 'output window, operand 0, single buffered']
    #allocation3 [shape = 's32[1]{0}', space=sflag, size = 0x4, scoped, tag = 'scoped memory for tpu_custom_call.1']
    %12 = vsyncpa [#allocation3], 0
    // Predicated region
    $region2: #{tpu_custom_call.1} parent=1 // pred_check
      _
    $region3: #{tpu_custom_call.1} parent=1 // pred_check_branch
      %14 = sbr.rel (0) target = $region5
    $region4: #{tpu_custom_call.1} parent=1 // pred_region
      _
    $region5: #{tpu_custom_call.1} parent=1 // pred_fallthru
      _
    // Predicated region
    $region6: #{tpu_custom_call.1} parent=1 // pred_check
      _
    $region7: #{tpu_custom_call.1} parent=1 // pred_check_branch
      %16 = sbr.rel (0) target = $region9
    $region8: #{tpu_custom_call.1} parent=1 // pred_region
      _
    $region9: #{tpu_custom_call.1} parent=1 // pred_fallthru
      _
    // Predicated region
    $region10: #{tpu_custom_call.1} parent=1 // pred_check
      _
    $region11: #{tpu_custom_call.1} parent=1 // pred_check_branch
      %18 = sbr.rel (0) target = $region13
    $region12: #{tpu_custom_call.1} parent=1 // pred_region
      _
    $region13: #{tpu_custom_call.1} parent=1 // pred_fallthru
      _
    // Predicated region
    $region14: #{tpu_custom_call.1} parent=1 // pred_check
      _
    $region15: #{tpu_custom_call.1} parent=1 // pred_check_branch
      %20 = sbr.rel (0) target = $region17
    $region16: #{tpu_custom_call.1} parent=1 // pred_region
      _
    $region17: #{tpu_custom_call.1} parent=1 // pred_fallthru
      _
    // Predicated region
    $region18: #{tpu_custom_call.1} parent=1 // pred_check
      _
    $region19: #{tpu_custom_call.1} parent=1 // pred_check_branch
      %22 = sbr.rel (0) target = $region21
    $region20: #{tpu_custom_call.1} parent=1 // pred_region
      _
    $region21: #{tpu_custom_call.1} parent=1 // pred_fallthru
      _
    // Predicated region
    $region22: #{tpu_custom_call.1} parent=1 // pred_check
      _
    $region23: #{tpu_custom_call.1} parent=1 // pred_check_branch
      %24 = sbr.rel (0) target = $region25
    $region24: #{tpu_custom_call.1} parent=1 // pred_region
      _
    $region25: #{tpu_custom_call.1} parent=1 // pred_fallthru
      _
    // Predicated region
    $region26: #{tpu_custom_call.1} parent=1 // pred_check
      _
    $region27: #{tpu_custom_call.1} parent=1 // pred_check_branch
      %26 = sbr.rel (0) target = $region29
    $region28: #{tpu_custom_call.1} parent=1 // pred_region
      _
    $region29: #{tpu_custom_call.1} parent=1 // pred_fallthru
      _
    %v28 = vld [vmem:[%s0] sm:$0xff]
    %v29 = vld [vmem:[%s0 + $0x8] sm:$0xff]
    %v30 = vlaneseq
    %v31 = vand.u32 %v30, 127
    %32 = vset.pattern.permute.xlu0 0
    %33 = vperm.xlu0 %32, %v28
    %v34 = vpop.permute.xlu0 %33
    %35 = vset.pattern.permute.xlu0 0
    %36 = vperm.xlu0 %35, %v29
    %v37 = vpop.permute.xlu0 %36
    %vm38 = vcmp.eq.s32.totalorder %v34, %v31
    %vm39 = vcmp.eq.s32.totalorder %v37, %v31
    %v40 = vsel %vm38, 1.0, 0.0
    %v41 = vsel %vm39, 1.0, 0.0
    %v42 = vpack.c.bf16 %v41, %v40
    %v43 = vld [vmem:[%s2] sm:$0xf]
    %v44 = vld [vmem:[%s2 + $0x4] sm:$0xf]
    %v45 = vld [vmem:[%s2 + $0x8] sm:$0xf]
    %v46 = vld [vmem:[%s2 + $0xc] sm:$0xf]
    %v47 = vld [vmem:[%s2 + $0x10] sm:$0xf]
    %v48 = vld [vmem:[%s2 + $0x14] sm:$0xf]
    %v49 = vld [vmem:[%s2 + $0x18] sm:$0xf]
    %v50 = vld [vmem:[%s2 + $0x1c] sm:$0xf]
    %v51 = vld [vmem:[%s2 + $0x20] sm:$0xf]
    %v52 = vld [vmem:[%s2 + $0x24] sm:$0xf]
    %v53 = vld [vmem:[%s2 + $0x28] sm:$0xf]
    %v54 = vld [vmem:[%s2 + $0x2c] sm:$0xf]
    %v55 = vld [vmem:[%s2 + $0x30] sm:$0xf]
    %v56 = vld [vmem:[%s2 + $0x34] sm:$0xf]
    %v57 = vld [vmem:[%s2 + $0x38] sm:$0xf]
    %v58 = vld [vmem:[%s2 + $0x3c] sm:$0xf]
    %v75 = vunpack.c.l.b16 %v43
    %v76 = vunpack.c.l.b16 %v44
    %v77 = vunpack.c.l.b16 %v45
    %v78 = vunpack.c.l.b16 %v46
    %v79 = vunpack.c.l.b16 %v47
    %v80 = vunpack.c.l.b16 %v48
    %v81 = vunpack.c.l.b16 %v49
    %v82 = vunpack.c.l.b16 %v50
    %v83 = vunpack.c.l.b16 %v51
    %v84 = vunpack.c.l.b16 %v52
    %v85 = vunpack.c.l.b16 %v53
    %v86 = vunpack.c.l.b16 %v54
    %v87 = vunpack.c.l.b16 %v55
    %v88 = vunpack.c.l.b16 %v56
    %v89 = vunpack.c.l.b16 %v57
    %v90 = vunpack.c.l.b16 %v58
    %v91 = vpack.c.b16 %v76, %v75
    %v92 = vpack.c.b16 %v78, %v77
    %v93 = vpack.c.b16 %v80, %v79
    %v94 = vpack.c.b16 %v82, %v81
    %v95 = vpack.c.b16 %v84, %v83
    %v96 = vpack.c.b16 %v86, %v85
    %v97 = vpack.c.b16 %v88, %v87
    %v98 = vpack.c.b16 %v90, %v89
    %107 = vmatprep.subr.bf16.mxu0 0
    %108 = vmatpush1.bf16.msra.mxu0 %v91
    %109 = vmatprep.subr.bf16.mxu0 0
    %110 = vmatpush1.bf16.msra.mxu0 %v92
    %111 = vmatprep.subr.bf16.mxu0 0
    %112 = vmatpush1.bf16.msra.mxu0 %v93
    %113 = vmatprep.subr.bf16.mxu0 0
    %114 = vmatpush1.bf16.msra.mxu0 %v94
    %115 = vmatprep.subr.bf16.mxu0 0
    %116 = vmatpush1.bf16.msra.mxu0 %v95
    %117 = vmatprep.subr.bf16.mxu0 0
    %118 = vmatpush1.bf16.msra.mxu0 %v96
    %119 = vmatprep.subr.bf16.mxu0 0
    %120 = vmatpush1.bf16.msra.mxu0 %v97
    %121 = vmatprep.subr.bf16.mxu0 0
    %122 = vmatpush1.bf16.msra.mxu0 %v98
    %123 = vmatprep.subr.bf16.mxu0 0
    %124 = vmatpush1.bf16.msra.mxu0 0
    %125 = vmatprep.subr.bf16.mxu0 0
    %126 = vmatpush1.bf16.msra.mxu0 0
    %127 = vmatprep.subr.bf16.mxu0 0
    %128 = vmatpush1.bf16.msra.mxu0 0
    %129 = vmatprep.subr.bf16.mxu0 0
    %130 = vmatpush1.bf16.msra.mxu0 0
    %131 = vmatprep.subr.bf16.mxu0 0
    %132 = vmatpush1.bf16.msra.mxu0 0
    %133 = vmatprep.subr.bf16.mxu0 0
    %134 = vmatpush1.bf16.msra.mxu0 0
    %135 = vmatprep.subr.bf16.mxu0 0
    %136 = vmatpush1.bf16.msra.mxu0 0
    %137 = vmatprep.subr.bf16.mxu0 0
    %138 = vmatpush1.bf16.msra.mxu0 0
    %139 = vmatprep.mubr.bf16.mxu0 0
    %140 = vmatmul.mubr.bf16.gmra.mrb[0].mxu0 %v42
    %v141 = vpop.f32.mrb[0].mxu0
    %v142 = vadd.f32 0.0, %v141
    %v143 = vpop.f32.mrb[0].mxu0
    %v144 = vpop.f32.mrb[0].mxu0
    %v145 = vadd.f32 0.0, %v144
    %v146 = vpop.f32.mrb[0].mxu0
    %147 = vdwg.mxu0
    %v148 = vld [vmem:[%s5] sm:$0xff]
    %v149 = vld [vmem:[%s5 + $0x8] sm:$0xff]
    %v150 = vld [vmem:[%s5 + $0x10] sm:$0x1]
    %v151 = vld [vmem:[%s1] sm:$0xff]
    %v152 = vld [vmem:[%s1 + $0x8] sm:$0xff]
    %v153 = vld [vmem:[%s3] sm:$0xff]
    %v154 = vld [vmem:[%s3 + $0x8] sm:$0xff]
    %v155 = vld [vmem:[%s3 + $0x10] sm:$0xff]
    %v156 = vld [vmem:[%s3 + $0x18] sm:$0xff]
    %v157 = vpack.c.bf16 %v145, %v142
    %v158 = vlaneseq
    %v159 = vshrl.u32 %v158, 7
    %v160 = vsub.s32 0, %v159
    %v161 = vrot.slane %v148, %v160
    %v166 = vunpack.c.l.b16 %v153
    %v167 = vunpack.c.l.b16 %v154
    %v168 = vunpack.c.l.b16 %v155
    %v169 = vunpack.c.l.b16 %v156
    %v170 = vpack.c.b16 %v167, %v166
    %v171 = vpack.c.b16 %v169, %v168
    %vm174 = vcmask 261120
    %v176 = vsel %vm174, %v157, 0
    %178 = vmatprep.subr.bf16.mxu0 0
    %179 = vmatpush1.bf16.msra.mxu0 %v170
    %180 = vmatprep.subr.bf16.mxu0 0
    %181 = vmatpush1.bf16.msra.mxu0 %v171
    %182 = vmatprep.subr.bf16.mxu0 0
    %183 = vmatpush1.bf16.msra.mxu0 0
    %184 = vmatprep.subr.bf16.mxu0 0
    %185 = vmatpush1.bf16.msra.mxu0 0
    %186 = vmatprep.subr.bf16.mxu0 0
    %187 = vmatpush1.bf16.msra.mxu0 0
    %188 = vmatprep.subr.bf16.mxu0 0
    %189 = vmatpush1.bf16.msra.mxu0 0
    %190 = vmatprep.subr.bf16.mxu0 0
    %191 = vmatpush1.bf16.msra.mxu0 0
    %192 = vmatprep.subr.bf16.mxu0 0
    %193 = vmatpush1.bf16.msra.mxu0 0
    %194 = vmatprep.subr.bf16.mxu0 0
    %195 = vmatpush1.bf16.msra.mxu0 0
    %196 = vmatprep.subr.bf16.mxu0 0
    %197 = vmatpush1.bf16.msra.mxu0 0
    %198 = vmatprep.subr.bf16.mxu0 0
    %199 = vmatpush1.bf16.msra.mxu0 0
    %200 = vmatprep.subr.bf16.mxu0 0
    %201 = vmatpush1.bf16.msra.mxu0 0
    %202 = vmatprep.subr.bf16.mxu0 0
    %203 = vmatpush1.bf16.msra.mxu0 0
    %204 = vmatprep.subr.bf16.mxu0 0
    %205 = vmatpush1.bf16.msra.mxu0 0
    %206 = vmatprep.subr.bf16.mxu0 0
    %207 = vmatpush1.bf16.msra.mxu0 0
    %208 = vmatprep.subr.bf16.mxu0 0
    %209 = vmatpush1.bf16.msra.mxu0 0
    %210 = vmatprep.mubr.bf16.mxu0 0
    %211 = vmatmul.mubr.bf16.gmra.mrb[0].mxu0 %v176
    %v212 = vpop.f32.mrb[0].mxu0
    %v213 = vadd.f32 %v161, %v212
    %v214 = vpop.f32.mrb[0].mxu0
    %v215 = vpop.f32.mrb[0].mxu0
    %v216 = vadd.f32 %v161, %v215
    %v217 = vpop.f32.mrb[0].mxu0
    %218 = vdwg.mxu0
    %221 = vrot.lane.b32.xlu0 %v213, 120
    %v222 = vpop.permute.xlu0 %221
    %223 = vrot.lane.b32.xlu0 %v216, 120
    %v224 = vpop.permute.xlu0 %223
    %227 = vrot.lane.b32.xlu0 %v213, 112
    %v228 = vpop.permute.xlu0 %227
    %229 = vrot.lane.b32.xlu0 %v216, 112
    %v230 = vpop.permute.xlu0 %229
    %233 = vrot.lane.b32.xlu0 %v213, 104
    %v234 = vpop.permute.xlu0 %233
    %235 = vrot.lane.b32.xlu0 %v216, 104
    %v236 = vpop.permute.xlu0 %235
    %239 = vrot.lane.b32.xlu0 %v213, 96
    %v240 = vpop.permute.xlu0 %239
    %241 = vrot.lane.b32.xlu0 %v216, 96
    %v242 = vpop.permute.xlu0 %241
    %245 = vrot.lane.b32.xlu0 %v213, 88
    %v246 = vpop.permute.xlu0 %245
    %247 = vrot.lane.b32.xlu0 %v216, 88
    %v248 = vpop.permute.xlu0 %247
    %251 = vrot.lane.b32.xlu0 %v213, 80
    %v252 = vpop.permute.xlu0 %251
    %253 = vrot.lane.b32.xlu0 %v216, 80
    %v254 = vpop.permute.xlu0 %253
    %257 = vrot.lane.b32.xlu0 %v213, 72
    %v258 = vpop.permute.xlu0 %257
    %259 = vrot.lane.b32.xlu0 %v216, 72
    %v260 = vpop.permute.xlu0 %259
    %263 = vrot.lane.b32.xlu0 %v213, 64
    %v264 = vpop.permute.xlu0 %263
    %265 = vrot.lane.b32.xlu0 %v216, 64
    %v266 = vpop.permute.xlu0 %265
    %269 = vrot.lane.b32.xlu0 %v213, 56
    %v270 = vpop.permute.xlu0 %269
    %271 = vrot.lane.b32.xlu0 %v216, 56
    %v272 = vpop.permute.xlu0 %271
    %275 = vrot.lane.b32.xlu0 %v213, 48
    %v276 = vpop.permute.xlu0 %275
    %277 = vrot.lane.b32.xlu0 %v216, 48
    %v278 = vpop.permute.xlu0 %277
    %281 = vrot.lane.b32.xlu0 %v213, 40
    %v282 = vpop.permute.xlu0 %281
    %283 = vrot.lane.b32.xlu0 %v216, 40
    %v284 = vpop.permute.xlu0 %283
    %v287 = vcombine.low %v213, %v228
    %v288 = vcombine.high %v213, %v228
    %v290 = vunpack.c.l.s4 1983009808
    %v291 = vunpack.c.0.s8 %v290
    %v292 = vlaneseq
    %v293 = vshrl.u32 %v292, 7
    %v294 = vsub.s32 %v291, %v293
    %v295 = vrot.slane %v287, %v294
    %v297 = vunpack.c.l.s4 1983009808
    %v298 = vunpack.c.0.s8 %v297
    %v299 = vlaneseq
    %v300 = vshrl.u32 %v299, 7
    %v301 = vsub.s32 %v298, %v300
    %v302 = vrot.slane %v288, %v301
    %v303 = vcombine.low %v222, %v234
    %v304 = vcombine.high %v222, %v234
    %v306 = vunpack.c.l.s4 1983009808
    %v307 = vunpack.c.0.s8 %v306
    %v308 = vlaneseq
    %v309 = vshrl.u32 %v308, 7
    %v310 = vsub.s32 %v307, %v309
    %v311 = vrot.slane %v303, %v310
    %v313 = vunpack.c.l.s4 1983009808
    %v314 = vunpack.c.0.s8 %v313
    %v315 = vlaneseq
    %v316 = vshrl.u32 %v315, 7
    %v317 = vsub.s32 %v314, %v316
    %v318 = vrot.slane %v304, %v317
    %v319 = vcombine.low %v240, %v252
    %v320 = vcombine.high %v240, %v252
    %v322 = vunpack.c.l.s4 1983009808
    %v323 = vunpack.c.0.s8 %v322
    %v324 = vlaneseq
    %v325 = vshrl.u32 %v324, 7
    %v326 = vsub.s32 %v323, %v325
    %v327 = vrot.slane %v319, %v326
    %v329 = vunpack.c.l.s4 1983009808
    %v330 = vunpack.c.0.s8 %v329
    %v331 = vlaneseq
    %v332 = vshrl.u32 %v331, 7
    %v333 = vsub.s32 %v330, %v332
    %v334 = vrot.slane %v320, %v333
    %v335 = vcombine.low %v246, %v258
    %v336 = vcombine.high %v246, %v258
    %v338 = vunpack.c.l.s4 1983009808
    %v339 = vunpack.c.0.s8 %v338
    %v340 = vlaneseq
    %v341 = vshrl.u32 %v340, 7
    %v342 = vsub.s32 %v339, %v341
    %v343 = vrot.slane %v335, %v342
    %v345 = vunpack.c.l.s4 1983009808
    %v346 = vunpack.c.0.s8 %v345
    %v347 = vlaneseq
    %v348 = vshrl.u32 %v347, 7
    %v349 = vsub.s32 %v346, %v348
    %v350 = vrot.slane %v336, %v349
    %v351 = vcombine.low %v295, %v311
    %v352 = vcombine.high %v295, %v311
    %v354 = vunpack.c.l.s4 1934713408
    %v355 = vunpack.c.0.s8 %v354
    %v356 = vlaneseq
    %v357 = vshrl.u32 %v356, 7
    %v358 = vsub.s32 %v355, %v357
    %v359 = vrot.slane %v351, %v358
    %v361 = vunpack.c.l.s4 1934713408
    %v362 = vunpack.c.0.s8 %v361
    %v363 = vlaneseq
    %v364 = vshrl.u32 %v363, 7
    %v365 = vsub.s32 %v362, %v364
    %v366 = vrot.slane %v352, %v365
    %v367 = vcombine.low %v302, %v318
    %v368 = vcombine.high %v302, %v318
    %v370 = vunpack.c.l.s4 1934713408
    %v371 = vunpack.c.0.s8 %v370
    %v372 = vlaneseq
    %v373 = vshrl.u32 %v372, 7
    %v374 = vsub.s32 %v371, %v373
    %v375 = vrot.slane %v367, %v374
    %v377 = vunpack.c.l.s4 1934713408
    %v378 = vunpack.c.0.s8 %v377
    %v379 = vlaneseq
    %v380 = vshrl.u32 %v379, 7
    %v381 = vsub.s32 %v378, %v380
    %v382 = vrot.slane %v368, %v381
    %v383 = vcombine.low %v327, %v343
    %v384 = vcombine.high %v327, %v343
    %v386 = vunpack.c.l.s4 1934713408
    %v387 = vunpack.c.0.s8 %v386
    %v388 = vlaneseq
    %v389 = vshrl.u32 %v388, 7
    %v390 = vsub.s32 %v387, %v389
    %v391 = vrot.slane %v383, %v390
    %v393 = vunpack.c.l.s4 1934713408
    %v394 = vunpack.c.0.s8 %v393
    %v395 = vlaneseq
    %v396 = vshrl.u32 %v395, 7
    %v397 = vsub.s32 %v394, %v396
    %v398 = vrot.slane %v384, %v397
    %v399 = vcombine.low %v334, %v350
    %v400 = vcombine.high %v334, %v350
    %v402 = vunpack.c.l.s4 1934713408
    %v403 = vunpack.c.0.s8 %v402
    %v404 = vlaneseq
    %v405 = vshrl.u32 %v404, 7
    %v406 = vsub.s32 %v403, %v405
    %v407 = vrot.slane %v399, %v406
    %v409 = vunpack.c.l.s4 1934713408
    %v410 = vunpack.c.0.s8 %v409
    %v411 = vlaneseq
    %v412 = vshrl.u32 %v411, 7
    %v413 = vsub.s32 %v410, %v412
    %v414 = vrot.slane %v400, %v413
    %v415 = vcombine.low %v359, %v391
    %v416 = vcombine.high %v359, %v391
    %v417 = vcombine.low %v366, %v398
    %v418 = vcombine.high %v366, %v398
    %v419 = vcombine.low %v375, %v407
    %v420 = vcombine.high %v375, %v407
    %v421 = vcombine.low %v382, %v414
    %v422 = vcombine.high %v382, %v414
    %v423 = vcombine.low %v264, %v276
    %v424 = vcombine.high %v264, %v276
    %v426 = vunpack.c.l.s4 1983009808
    %v427 = vunpack.c.0.s8 %v426
    %v428 = vlaneseq
    %v429 = vshrl.u32 %v428, 7
    %v430 = vsub.s32 %v427, %v429
    %v431 = vrot.slane %v423, %v430
    %v433 = vunpack.c.l.s4 1983009808
    %v434 = vunpack.c.0.s8 %v433
    %v435 = vlaneseq
    %v436 = vshrl.u32 %v435, 7
    %v437 = vsub.s32 %v434, %v436
    %v438 = vrot.slane %v424, %v437
    %v439 = vcombine.low %v270, %v282
    %v440 = vcombine.high %v270, %v282
    %v442 = vunpack.c.l.s4 1983009808
    %v443 = vunpack.c.0.s8 %v442
    %v444 = vlaneseq
    %v445 = vshrl.u32 %v444, 7
    %v446 = vsub.s32 %v443, %v445
    %v447 = vrot.slane %v439, %v446
    %v449 = vunpack.c.l.s4 1983009808
    %v450 = vunpack.c.0.s8 %v449
    %v451 = vlaneseq
    %v452 = vshrl.u32 %v451, 7
    %v453 = vsub.s32 %v450, %v452
    %v454 = vrot.slane %v440, %v453
    %v455 = vcombine.low %v431, %v447
    %v456 = vcombine.high %v431, %v447
    %v458 = vunpack.c.l.s4 1934713408
    %v459 = vunpack.c.0.s8 %v458
    %v460 = vlaneseq
    %v461 = vshrl.u32 %v460, 7
    %v462 = vsub.s32 %v459, %v461
    %v463 = vrot.slane %v455, %v462
    %v465 = vunpack.c.l.s4 1934713408
    %v466 = vunpack.c.0.s8 %v465
    %v467 = vlaneseq
    %v468 = vshrl.u32 %v467, 7
    %v469 = vsub.s32 %v466, %v468
    %v470 = vrot.slane %v456, %v469
    %v471 = vcombine.low %v438, %v454
    %v472 = vcombine.high %v438, %v454
    %v474 = vunpack.c.l.s4 1934713408
    %v475 = vunpack.c.0.s8 %v474
    %v476 = vlaneseq
    %v477 = vshrl.u32 %v476, 7
    %v478 = vsub.s32 %v475, %v477
    %v479 = vrot.slane %v471, %v478
    %v481 = vunpack.c.l.s4 1934713408
    %v482 = vunpack.c.0.s8 %v481
    %v483 = vlaneseq
    %v484 = vshrl.u32 %v483, 7
    %v485 = vsub.s32 %v482, %v484
    %v486 = vrot.slane %v472, %v485
    %v487 = vcombine.high %v463, 0.0
    %v488 = vcombine.high %v470, 0.0
    %v489 = vcombine.high %v479, 0.0
    %v490 = vcombine.high %v486, 0.0
    %v491 = vcombine.low %v216, %v230
    %v492 = vcombine.high %v216, %v230
    %v494 = vunpack.c.l.s4 1983009808
    %v495 = vunpack.c.0.s8 %v494
    %v496 = vlaneseq
    %v497 = vshrl.u32 %v496, 7
    %v498 = vsub.s32 %v495, %v497
    %v499 = vrot.slane %v491, %v498
    %v501 = vunpack.c.l.s4 1983009808
    %v502 = vunpack.c.0.s8 %v501
    %v503 = vlaneseq
    %v504 = vshrl.u32 %v503, 7
    %v505 = vsub.s32 %v502, %v504
    %v506 = vrot.slane %v492, %v505
    %v507 = vcombine.low %v224, %v236
    %v508 = vcombine.high %v224, %v236
    %v510 = vunpack.c.l.s4 1983009808
    %v511 = vunpack.c.0.s8 %v510
    %v512 = vlaneseq
    %v513 = vshrl.u32 %v512, 7
    %v514 = vsub.s32 %v511, %v513
    %v515 = vrot.slane %v507, %v514
    %v517 = vunpack.c.l.s4 1983009808
    %v518 = vunpack.c.0.s8 %v517
    %v519 = vlaneseq
    %v520 = vshrl.u32 %v519, 7
    %v521 = vsub.s32 %v518, %v520
    %v522 = vrot.slane %v508, %v521
    %v523 = vcombine.low %v242, %v254
    %v524 = vcombine.high %v242, %v254
    %v526 = vunpack.c.l.s4 1983009808
    %v527 = vunpack.c.0.s8 %v526
    %v528 = vlaneseq
    %v529 = vshrl.u32 %v528, 7
    %v530 = vsub.s32 %v527, %v529
    %v531 = vrot.slane %v523, %v530
    %v533 = vunpack.c.l.s4 1983009808
    %v534 = vunpack.c.0.s8 %v533
    %v535 = vlaneseq
    %v536 = vshrl.u32 %v535, 7
    %v537 = vsub.s32 %v534, %v536
    %v538 = vrot.slane %v524, %v537
    %v539 = vcombine.low %v248, %v260
    %v540 = vcombine.high %v248, %v260
    %v542 = vunpack.c.l.s4 1983009808
    %v543 = vunpack.c.0.s8 %v542
    %v544 = vlaneseq
    %v545 = vshrl.u32 %v544, 7
    %v546 = vsub.s32 %v543, %v545
    %v547 = vrot.slane %v539, %v546
    %v549 = vunpack.c.l.s4 1983009808
    %v550 = vunpack.c.0.s8 %v549
    %v551 = vlaneseq
    %v552 = vshrl.u32 %v551, 7
    %v553 = vsub.s32 %v550, %v552
    %v554 = vrot.slane %v540, %v553
    %v555 = vcombine.low %v499, %v515
    %v556 = vcombine.high %v499, %v515
    %v558 = vunpack.c.l.s4 1934713408
    %v559 = vunpack.c.0.s8 %v558
    %v560 = vlaneseq
    %v561 = vshrl.u32 %v560, 7
    %v562 = vsub.s32 %v559, %v561
    %v563 = vrot.slane %v555, %v562
    %v565 = vunpack.c.l.s4 1934713408
    %v566 = vunpack.c.0.s8 %v565
    %v567 = vlaneseq
    %v568 = vshrl.u32 %v567, 7
    %v569 = vsub.s32 %v566, %v568
    %v570 = vrot.slane %v556, %v569
    %v571 = vcombine.low %v506, %v522
    %v572 = vcombine.high %v506, %v522
    %v574 = vunpack.c.l.s4 1934713408
    %v575 = vunpack.c.0.s8 %v574
    %v576 = vlaneseq
    %v577 = vshrl.u32 %v576, 7
    %v578 = vsub.s32 %v575, %v577
    %v579 = vrot.slane %v571, %v578
    %v581 = vunpack.c.l.s4 1934713408
    %v582 = vunpack.c.0.s8 %v581
    %v583 = vlaneseq
    %v584 = vshrl.u32 %v583, 7
    %v585 = vsub.s32 %v582, %v584
    %v586 = vrot.slane %v572, %v585
    %v587 = vcombine.low %v531, %v547
    %v588 = vcombine.high %v531, %v547
    %v590 = vunpack.c.l.s4 1934713408
    %v591 = vunpack.c.0.s8 %v590
    %v592 = vlaneseq
    %v593 = vshrl.u32 %v592, 7
    %v594 = vsub.s32 %v591, %v593
    %v595 = vrot.slane %v587, %v594
    %v597 = vunpack.c.l.s4 1934713408
    %v598 = vunpack.c.0.s8 %v597
    %v599 = vlaneseq
    %v600 = vshrl.u32 %v599, 7
    %v601 = vsub.s32 %v598, %v600
    %v602 = vrot.slane %v588, %v601
    %v603 = vcombine.low %v538, %v554
    %v604 = vcombine.high %v538, %v554
    %v606 = vunpack.c.l.s4 1934713408
    %v607 = vunpack.c.0.s8 %v606
    %v608 = vlaneseq
    %v609 = vshrl.u32 %v608, 7
    %v610 = vsub.s32 %v607, %v609
    %v611 = vrot.slane %v603, %v610
    %v613 = vunpack.c.l.s4 1934713408
    %v614 = vunpack.c.0.s8 %v613
    %v615 = vlaneseq
    %v616 = vshrl.u32 %v615, 7
    %v617 = vsub.s32 %v614, %v616
    %v618 = vrot.slane %v604, %v617
    %v619 = vcombine.low %v563, %v595
    %v620 = vcombine.high %v563, %v595
    %v621 = vcombine.low %v570, %v602
    %v622 = vcombine.high %v570, %v602
    %v623 = vcombine.low %v579, %v611
    %v624 = vcombine.high %v579, %v611
    %v625 = vcombine.low %v586, %v618
    %v626 = vcombine.high %v586, %v618
    %v627 = vcombine.low %v266, %v278
    %v628 = vcombine.high %v266, %v278
    %v630 = vunpack.c.l.s4 1983009808
    %v631 = vunpack.c.0.s8 %v630
    %v632 = vlaneseq
    %v633 = vshrl.u32 %v632, 7
    %v634 = vsub.s32 %v631, %v633
    %v635 = vrot.slane %v627, %v634
    %v637 = vunpack.c.l.s4 1983009808
    %v638 = vunpack.c.0.s8 %v637
    %v639 = vlaneseq
    %v640 = vshrl.u32 %v639, 7
    %v641 = vsub.s32 %v638, %v640
    %v642 = vrot.slane %v628, %v641
    %v643 = vcombine.low %v272, %v284
    %v644 = vcombine.high %v272, %v284
    %v646 = vunpack.c.l.s4 1983009808
    %v647 = vunpack.c.0.s8 %v646
    %v648 = vlaneseq
    %v649 = vshrl.u32 %v648, 7
    %v650 = vsub.s32 %v647, %v649
    %v651 = vrot.slane %v643, %v650
    %v653 = vunpack.c.l.s4 1983009808
    %v654 = vunpack.c.0.s8 %v653
    %v655 = vlaneseq
    %v656 = vshrl.u32 %v655, 7
    %v657 = vsub.s32 %v654, %v656
    %v658 = vrot.slane %v644, %v657
    %v659 = vcombine.low %v635, %v651
    %v660 = vcombine.high %v635, %v651
    %v662 = vunpack.c.l.s4 1934713408
    %v663 = vunpack.c.0.s8 %v662
    %v664 = vlaneseq
    %v665 = vshrl.u32 %v664, 7
    %v666 = vsub.s32 %v663, %v665
    %v667 = vrot.slane %v659, %v666
    %v669 = vunpack.c.l.s4 1934713408
    %v670 = vunpack.c.0.s8 %v669
    %v671 = vlaneseq
    %v672 = vshrl.u32 %v671, 7
    %v673 = vsub.s32 %v670, %v672
    %v674 = vrot.slane %v660, %v673
    %v675 = vcombine.low %v642, %v658
    %v676 = vcombine.high %v642, %v658
    %v678 = vunpack.c.l.s4 1934713408
    %v679 = vunpack.c.0.s8 %v678
    %v680 = vlaneseq
    %v681 = vshrl.u32 %v680, 7
    %v682 = vsub.s32 %v679, %v681
    %v683 = vrot.slane %v675, %v682
    %v685 = vunpack.c.l.s4 1934713408
    %v686 = vunpack.c.0.s8 %v685
    %v687 = vlaneseq
    %v688 = vshrl.u32 %v687, 7
    %v689 = vsub.s32 %v686, %v688
    %v690 = vrot.slane %v676, %v689
    %v691 = vcombine.high %v667, 0.0
    %v692 = vcombine.high %v674, 0.0
    %v693 = vcombine.high %v683, 0.0
    %v694 = vcombine.high %v690, 0.0
    %v695 = vcombine.low %v415, %v417
    %v696 = vcombine.high %v415, %v417
    %v698 = vunpack.c.l.s4 1983009808
    %v699 = vunpack.c.0.s8 %v698
    %v700 = vlaneseq
    %v701 = vshrl.u32 %v700, 7
    %v702 = vsub.s32 %v699, %v701
    %v703 = vrot.slane %v695, %v702
    %v705 = vunpack.c.l.s4 1983009808
    %v706 = vunpack.c.0.s8 %v705
    %v707 = vlaneseq
    %v708 = vshrl.u32 %v707, 7
    %v709 = vsub.s32 %v706, %v708
    %v710 = vrot.slane %v696, %v709
    %v711 = vcombine.low %v416, %v418
    %v712 = vcombine.high %v416, %v418
    %v714 = vunpack.c.l.s4 1983009808
    %v715 = vunpack.c.0.s8 %v714
    %v716 = vlaneseq
    %v717 = vshrl.u32 %v716, 7
    %v718 = vsub.s32 %v715, %v717
    %v719 = vrot.slane %v711, %v718
    %v721 = vunpack.c.l.s4 1983009808
    %v722 = vunpack.c.0.s8 %v721
    %v723 = vlaneseq
    %v724 = vshrl.u32 %v723, 7
    %v725 = vsub.s32 %v722, %v724
    %v726 = vrot.slane %v712, %v725
    %v727 = vcombine.low %v419, %v421
    %v728 = vcombine.high %v419, %v421
    %v730 = vunpack.c.l.s4 1983009808
    %v731 = vunpack.c.0.s8 %v730
    %v732 = vlaneseq
    %v733 = vshrl.u32 %v732, 7
    %v734 = vsub.s32 %v731, %v733
    %v735 = vrot.slane %v727, %v734
    %v737 = vunpack.c.l.s4 1983009808
    %v738 = vunpack.c.0.s8 %v737
    %v739 = vlaneseq
    %v740 = vshrl.u32 %v739, 7
    %v741 = vsub.s32 %v738, %v740
    %v742 = vrot.slane %v728, %v741
    %v743 = vcombine.low %v420, %v422
    %v744 = vcombine.high %v420, %v422
    %v746 = vunpack.c.l.s4 1983009808
    %v747 = vunpack.c.0.s8 %v746
    %v748 = vlaneseq
    %v749 = vshrl.u32 %v748, 7
    %v750 = vsub.s32 %v747, %v749
    %v751 = vrot.slane %v743, %v750
    %v753 = vunpack.c.l.s4 1983009808
    %v754 = vunpack.c.0.s8 %v753
    %v755 = vlaneseq
    %v756 = vshrl.u32 %v755, 7
    %v757 = vsub.s32 %v754, %v756
    %v758 = vrot.slane %v744, %v757
    %v759 = vcombine.low %v703, %v719
    %v760 = vcombine.high %v703, %v719
    %v762 = vunpack.c.l.s4 1934713408
    %v763 = vunpack.c.0.s8 %v762
    %v764 = vlaneseq
    %v765 = vshrl.u32 %v764, 7
    %v766 = vsub.s32 %v763, %v765
    %v767 = vrot.slane %v759, %v766
    %v769 = vunpack.c.l.s4 1934713408
    %v770 = vunpack.c.0.s8 %v769
    %v771 = vlaneseq
    %v772 = vshrl.u32 %v771, 7
    %v773 = vsub.s32 %v770, %v772
    %v774 = vrot.slane %v760, %v773
    %v775 = vcombine.low %v710, %v726
    %v776 = vcombine.high %v710, %v726
    %v778 = vunpack.c.l.s4 1934713408
    %v779 = vunpack.c.0.s8 %v778
    %v780 = vlaneseq
    %v781 = vshrl.u32 %v780, 7
    %v782 = vsub.s32 %v779, %v781
    %v783 = vrot.slane %v775, %v782
    %v785 = vunpack.c.l.s4 1934713408
    %v786 = vunpack.c.0.s8 %v785
    %v787 = vlaneseq
    %v788 = vshrl.u32 %v787, 7
    %v789 = vsub.s32 %v786, %v788
    %v790 = vrot.slane %v776, %v789
    %v791 = vcombine.low %v735, %v751
    %v792 = vcombine.high %v735, %v751
    %v794 = vunpack.c.l.s4 1934713408
    %v795 = vunpack.c.0.s8 %v794
    %v796 = vlaneseq
    %v797 = vshrl.u32 %v796, 7
    %v798 = vsub.s32 %v795, %v797
    %v799 = vrot.slane %v791, %v798
    %v801 = vunpack.c.l.s4 1934713408
    %v802 = vunpack.c.0.s8 %v801
    %v803 = vlaneseq
    %v804 = vshrl.u32 %v803, 7
    %v805 = vsub.s32 %v802, %v804
    %v806 = vrot.slane %v792, %v805
    %v807 = vcombine.low %v742, %v758
    %v808 = vcombine.high %v742, %v758
    %v810 = vunpack.c.l.s4 1934713408
    %v811 = vunpack.c.0.s8 %v810
    %v812 = vlaneseq
    %v813 = vshrl.u32 %v812, 7
    %v814 = vsub.s32 %v811, %v813
    %v815 = vrot.slane %v807, %v814
    %v817 = vunpack.c.l.s4 1934713408
    %v818 = vunpack.c.0.s8 %v817
    %v819 = vlaneseq
    %v820 = vshrl.u32 %v819, 7
    %v821 = vsub.s32 %v818, %v820
    %v822 = vrot.slane %v808, %v821
    %v823 = vcombine.low %v767, %v799
    %v824 = vcombine.high %v767, %v799
    %v825 = vcombine.low %v774, %v806
    %v826 = vcombine.high %v774, %v806
    %v827 = vcombine.low %v783, %v815
    %v828 = vcombine.high %v783, %v815
    %v829 = vcombine.low %v790, %v822
    %v830 = vcombine.high %v790, %v822
    %v831 = vcombine.low %v619, %v621
    %v832 = vcombine.high %v619, %v621
    %v834 = vunpack.c.l.s4 1983009808
    %v835 = vunpack.c.0.s8 %v834
    %v836 = vlaneseq
    %v837 = vshrl.u32 %v836, 7
    %v838 = vsub.s32 %v835, %v837
    %v839 = vrot.slane %v831, %v838
    %v841 = vunpack.c.l.s4 1983009808
    %v842 = vunpack.c.0.s8 %v841
    %v843 = vlaneseq
    %v844 = vshrl.u32 %v843, 7
    %v845 = vsub.s32 %v842, %v844
    %v846 = vrot.slane %v832, %v845
    %v847 = vcombine.low %v620, %v622
    %v848 = vcombine.high %v620, %v622
    %v850 = vunpack.c.l.s4 1983009808
    %v851 = vunpack.c.0.s8 %v850
    %v852 = vlaneseq
    %v853 = vshrl.u32 %v852, 7
    %v854 = vsub.s32 %v851, %v853
    %v855 = vrot.slane %v847, %v854
    %v857 = vunpack.c.l.s4 1983009808
    %v858 = vunpack.c.0.s8 %v857
    %v859 = vlaneseq
    %v860 = vshrl.u32 %v859, 7
    %v861 = vsub.s32 %v858, %v860
    %v862 = vrot.slane %v848, %v861
    %v863 = vcombine.low %v623, %v625
    %v864 = vcombine.high %v623, %v625
    %v866 = vunpack.c.l.s4 1983009808
    %v867 = vunpack.c.0.s8 %v866
    %v868 = vlaneseq
    %v869 = vshrl.u32 %v868, 7
    %v870 = vsub.s32 %v867, %v869
    %v871 = vrot.slane %v863, %v870
    %v873 = vunpack.c.l.s4 1983009808
    %v874 = vunpack.c.0.s8 %v873
    %v875 = vlaneseq
    %v876 = vshrl.u32 %v875, 7
    %v877 = vsub.s32 %v874, %v876
    %v878 = vrot.slane %v864, %v877
    %v879 = vcombine.low %v624, %v626
    %v880 = vcombine.high %v624, %v626
    %v882 = vunpack.c.l.s4 1983009808
    %v883 = vunpack.c.0.s8 %v882
    %v884 = vlaneseq
    %v885 = vshrl.u32 %v884, 7
    %v886 = vsub.s32 %v883, %v885
    %v887 = vrot.slane %v879, %v886
    %v889 = vunpack.c.l.s4 1983009808
    %v890 = vunpack.c.0.s8 %v889
    %v891 = vlaneseq
    %v892 = vshrl.u32 %v891, 7
    %v893 = vsub.s32 %v890, %v892
    %v894 = vrot.slane %v880, %v893
    %v895 = vcombine.low %v839, %v855
    %v896 = vcombine.high %v839, %v855
    %v898 = vunpack.c.l.s4 1934713408
    %v899 = vunpack.c.0.s8 %v898
    %v900 = vlaneseq
    %v901 = vshrl.u32 %v900, 7
    %v902 = vsub.s32 %v899, %v901
    %v903 = vrot.slane %v895, %v902
    %v905 = vunpack.c.l.s4 1934713408
    %v906 = vunpack.c.0.s8 %v905
    %v907 = vlaneseq
    %v908 = vshrl.u32 %v907, 7
    %v909 = vsub.s32 %v906, %v908
    %v910 = vrot.slane %v896, %v909
    %v911 = vcombine.low %v846, %v862
    %v912 = vcombine.high %v846, %v862
    %v914 = vunpack.c.l.s4 1934713408
    %v915 = vunpack.c.0.s8 %v914
    %v916 = vlaneseq
    %v917 = vshrl.u32 %v916, 7
    %v918 = vsub.s32 %v915, %v917
    %v919 = vrot.slane %v911, %v918
    %v921 = vunpack.c.l.s4 1934713408
    %v922 = vunpack.c.0.s8 %v921
    %v923 = vlaneseq
    %v924 = vshrl.u32 %v923, 7
    %v925 = vsub.s32 %v922, %v924
    %v926 = vrot.slane %v912, %v925
    %v927 = vcombine.low %v871, %v887
    %v928 = vcombine.high %v871, %v887
    %v930 = vunpack.c.l.s4 1934713408
    %v931 = vunpack.c.0.s8 %v930
    %v932 = vlaneseq
    %v933 = vshrl.u32 %v932, 7
    %v934 = vsub.s32 %v931, %v933
    %v935 = vrot.slane %v927, %v934
    %v937 = vunpack.c.l.s4 1934713408
    %v938 = vunpack.c.0.s8 %v937
    %v939 = vlaneseq
    %v940 = vshrl.u32 %v939, 7
    %v941 = vsub.s32 %v938, %v940
    %v942 = vrot.slane %v928, %v941
    %v943 = vcombine.low %v878, %v894
    %v944 = vcombine.high %v878, %v894
    %v946 = vunpack.c.l.s4 1934713408
    %v947 = vunpack.c.0.s8 %v946
    %v948 = vlaneseq
    %v949 = vshrl.u32 %v948, 7
    %v950 = vsub.s32 %v947, %v949
    %v951 = vrot.slane %v943, %v950
    %v953 = vunpack.c.l.s4 1934713408
    %v954 = vunpack.c.0.s8 %v953
    %v955 = vlaneseq
    %v956 = vshrl.u32 %v955, 7
    %v957 = vsub.s32 %v954, %v956
    %v958 = vrot.slane %v944, %v957
    %v959 = vcombine.low %v903, %v935
    %v960 = vcombine.high %v903, %v935
    %v961 = vcombine.low %v910, %v942
    %v962 = vcombine.high %v910, %v942
    %v963 = vcombine.low %v919, %v951
    %v964 = vcombine.high %v919, %v951
    %v965 = vcombine.low %v926, %v958
    %v966 = vcombine.high %v926, %v958
    %v967 = vcombine.low %v463, %v470
    %v969 = vunpack.c.l.s4 1983009808
    %v970 = vunpack.c.0.s8 %v969
    %v971 = vlaneseq
    %v972 = vshrl.u32 %v971, 7
    %v973 = vsub.s32 %v970, %v972
    %v974 = vrot.slane %v967, %v973
    %v975 = vcombine.low %v487, %v488
    %v977 = vunpack.c.l.s4 1983009808
    %v978 = vunpack.c.0.s8 %v977
    %v979 = vlaneseq
    %v980 = vshrl.u32 %v979, 7
    %v981 = vsub.s32 %v978, %v980
    %v982 = vrot.slane %v975, %v981
    %v983 = vcombine.low %v479, %v486
    %v985 = vunpack.c.l.s4 1983009808
    %v986 = vunpack.c.0.s8 %v985
    %v987 = vlaneseq
    %v988 = vshrl.u32 %v987, 7
    %v989 = vsub.s32 %v986, %v988
    %v990 = vrot.slane %v983, %v989
    %v991 = vcombine.low %v489, %v490
    %v993 = vunpack.c.l.s4 1983009808
    %v994 = vunpack.c.0.s8 %v993
    %v995 = vlaneseq
    %v996 = vshrl.u32 %v995, 7
    %v997 = vsub.s32 %v994, %v996
    %v998 = vrot.slane %v991, %v997
    %v999 = vcombine.low %v974, %v982
    %v1000 = vcombine.high %v974, %v982
    %v1002 = vunpack.c.l.s4 1934713408
    %v1003 = vunpack.c.0.s8 %v1002
    %v1004 = vlaneseq
    %v1005 = vshrl.u32 %v1004, 7
    %v1006 = vsub.s32 %v1003, %v1005
    %v1007 = vrot.slane %v999, %v1006
    %v1009 = vunpack.c.l.s4 1934713408
    %v1010 = vunpack.c.0.s8 %v1009
    %v1011 = vlaneseq
    %v1012 = vshrl.u32 %v1011, 7
    %v1013 = vsub.s32 %v1010, %v1012
    %v1014 = vrot.slane %v1000, %v1013
    %v1015 = vcombine.low %v990, %v998
    %v1016 = vcombine.high %v990, %v998
    %v1018 = vunpack.c.l.s4 1934713408
    %v1019 = vunpack.c.0.s8 %v1018
    %v1020 = vlaneseq
    %v1021 = vshrl.u32 %v1020, 7
    %v1022 = vsub.s32 %v1019, %v1021
    %v1023 = vrot.slane %v1015, %v1022
    %v1025 = vunpack.c.l.s4 1934713408
    %v1026 = vunpack.c.0.s8 %v1025
    %v1027 = vlaneseq
    %v1028 = vshrl.u32 %v1027, 7
    %v1029 = vsub.s32 %v1026, %v1028
    %v1030 = vrot.slane %v1016, %v1029
    %v1031 = vcombine.low %v1007, %v1023
    %v1032 = vcombine.high %v1007, %v1023
    %v1033 = vcombine.low %v1014, %v1030
    %v1034 = vcombine.high %v1014, %v1030
    %v1035 = vcombine.low %v667, %v674
    %v1037 = vunpack.c.l.s4 1983009808
    %v1038 = vunpack.c.0.s8 %v1037
    %v1039 = vlaneseq
    %v1040 = vshrl.u32 %v1039, 7
    %v1041 = vsub.s32 %v1038, %v1040
    %v1042 = vrot.slane %v1035, %v1041
    %v1043 = vcombine.low %v691, %v692
    %v1045 = vunpack.c.l.s4 1983009808
    %v1046 = vunpack.c.0.s8 %v1045
    %v1047 = vlaneseq
    %v1048 = vshrl.u32 %v1047, 7
    %v1049 = vsub.s32 %v1046, %v1048
    %v1050 = vrot.slane %v1043, %v1049
    %v1051 = vcombine.low %v683, %v690
    %v1053 = vunpack.c.l.s4 1983009808
    %v1054 = vunpack.c.0.s8 %v1053
    %v1055 = vlaneseq
    %v1056 = vshrl.u32 %v1055, 7
    %v1057 = vsub.s32 %v1054, %v1056
    %v1058 = vrot.slane %v1051, %v1057
    %v1059 = vcombine.low %v693, %v694
    %v1061 = vunpack.c.l.s4 1983009808
    %v1062 = vunpack.c.0.s8 %v1061
    %v1063 = vlaneseq
    %v1064 = vshrl.u32 %v1063, 7
    %v1065 = vsub.s32 %v1062, %v1064
    %v1066 = vrot.slane %v1059, %v1065
    %v1067 = vcombine.low %v1042, %v1050
    %v1068 = vcombine.high %v1042, %v1050
    %v1070 = vunpack.c.l.s4 1934713408
    %v1071 = vunpack.c.0.s8 %v1070
    %v1072 = vlaneseq
    %v1073 = vshrl.u32 %v1072, 7
    %v1074 = vsub.s32 %v1071, %v1073
    %v1075 = vrot.slane %v1067, %v1074
    %v1077 = vunpack.c.l.s4 1934713408
    %v1078 = vunpack.c.0.s8 %v1077
    %v1079 = vlaneseq
    %v1080 = vshrl.u32 %v1079, 7
    %v1081 = vsub.s32 %v1078, %v1080
    %v1082 = vrot.slane %v1068, %v1081
    %v1083 = vcombine.low %v1058, %v1066
    %v1084 = vcombine.high %v1058, %v1066
    %v1086 = vunpack.c.l.s4 1934713408
    %v1087 = vunpack.c.0.s8 %v1086
    %v1088 = vlaneseq
    %v1089 = vshrl.u32 %v1088, 7
    %v1090 = vsub.s32 %v1087, %v1089
    %v1091 = vrot.slane %v1083, %v1090
    %v1093 = vunpack.c.l.s4 1934713408
    %v1094 = vunpack.c.0.s8 %v1093
    %v1095 = vlaneseq
    %v1096 = vshrl.u32 %v1095, 7
    %v1097 = vsub.s32 %v1094, %v1096
    %v1098 = vrot.slane %v1084, %v1097
    %v1099 = vcombine.low %v1075, %v1091
    %v1100 = vcombine.high %v1075, %v1091
    %v1101 = vcombine.low %v1082, %v1098
    %v1102 = vcombine.high %v1082, %v1098
    %v1103 = vmul.f32 %v823, 0.35355338
    %v1104 = vmul.f32 %v959, 0.35355338
    %v1105 = vmul.f32 %v824, 0.35355338
    %v1106 = vmul.f32 %v960, 0.35355338
    %v1107 = vmul.f32 %v825, 0.35355338
    %v1108 = vmul.f32 %v961, 0.35355338
    %v1109 = vmul.f32 %v826, 0.35355338
    %v1110 = vmul.f32 %v962, 0.35355338
    %vm1111 = vcmask 64512
    %v1113 = vsel %vm1111, %v1103, 0
    %v1116 = vsel %vm1111, %v1104, 0
    %v1119 = vsel %vm1111, %v827, 0
    %v1122 = vsel %vm1111, %v963, 0
    %1124 = vmatprep.subr.mxu0 0.0
    %1125 = vmatpush1.xpose.msra.mxu0 %v1119
    %1126 = vmatprep.subr.mxu0 0.0
    %1127 = vmatpush1.xpose.msra.mxu0 %v1122
    %1128 = vmatprep.subr.mxu0 0.0
    %1129 = vmatpush1.xpose.msra.mxu0 0.0
    %1130 = vmatprep.subr.mxu0 0.0
    %1131 = vmatpush1.xpose.msra.mxu0 0.0
    %1132 = vmatprep.subr.mxu0 0.0
    %1133 = vmatpush1.xpose.msra.mxu0 0.0
    %1134 = vmatprep.subr.mxu0 0.0
    %1135 = vmatpush1.xpose.msra.mxu0 0.0
    %1136 = vmatprep.subr.mxu0 0.0
    %1137 = vmatpush1.xpose.msra.mxu0 0.0
    %1138 = vmatprep.subr.mxu0 0.0
    %1139 = vmatpush1.xpose.msra.mxu0 0.0
    %1140 = vmatprep.subr.mxu0 0.0
    %1141 = vmatpush1.xpose.msra.mxu0 0.0
    %1142 = vmatprep.subr.mxu0 0.0
    %1143 = vmatpush1.xpose.msra.mxu0 0.0
    %1144 = vmatprep.subr.mxu0 0.0
    %1145 = vmatpush1.xpose.msra.mxu0 0.0
    %1146 = vmatprep.subr.mxu0 0.0
    %1147 = vmatpush1.xpose.msra.mxu0 0.0
    %1148 = vmatprep.subr.mxu0 0.0
    %1149 = vmatpush1.xpose.msra.mxu0 0.0
    %1150 = vmatprep.subr.mxu0 0.0
    %1151 = vmatpush1.xpose.msra.mxu0 0.0
    %1152 = vmatprep.subr.mxu0 0.0
    %1153 = vmatpush1.xpose.msra.mxu0 0.0
    %1154 = vmatprep.subr.mxu0 0.0
    %1155 = vmatpush1.xpose.msra.mxu0 0.0
    %1156 = vmatprep.subr.mxu0 0.0
    %1157 = vmatpush1.xpose.msra.mxu0 0.0
    %1158 = vmatprep.subr.mxu0 0.0
    %1159 = vmatpush1.xpose.msra.mxu0 0.0
    %1160 = vmatprep.subr.mxu0 0.0
    %1161 = vmatpush1.xpose.msra.mxu0 0.0
    %1162 = vmatprep.subr.mxu0 0.0
    %1163 = vmatpush1.xpose.msra.mxu0 0.0
    %1164 = vmatprep.subr.mxu0 0.0
    %1165 = vmatpush1.xpose.msra.mxu0 0.0
    %1166 = vmatprep.subr.mxu0 0.0
    %1167 = vmatpush1.xpose.msra.mxu0 0.0
    %1168 = vmatprep.subr.mxu0 0.0
    %1169 = vmatpush1.xpose.msra.mxu0 0.0
    %1170 = vmatprep.subr.mxu0 0.0
    %1171 = vmatpush1.xpose.msra.mxu0 0.0
    %1172 = vmatprep.subr.mxu0 0.0
    %1173 = vmatpush1.xpose.msra.mxu0 0.0
    %1174 = vmatprep.subr.mxu0 0.0
    %1175 = vmatpush1.xpose.msra.mxu0 0.0
    %1176 = vmatprep.subr.mxu0 0.0
    %1177 = vmatpush1.xpose.msra.mxu0 0.0
    %1178 = vmatprep.subr.mxu0 0.0
    %1179 = vmatpush1.xpose.msra.mxu0 0.0
    %1180 = vmatprep.subr.mxu0 0.0
    %1181 = vmatpush1.xpose.msra.mxu0 0.0
    %1182 = vmatprep.subr.mxu0 0.0
    %1183 = vmatpush1.xpose.msra.mxu0 0.0
    %1184 = vmatprep.subr.mxu0 0.0
    %1185 = vmatpush1.xpose.msra.mxu0 0.0
    %1186 = vmatprep.subr.mxu0 0.0
    %1187 = vmatpush1.xpose.msra.mxu0 0.0
    %1188 = vmatprep.mubr.f32.mxu0 0.0
    %1189 = vmatmul.mubr.f32.gmra.mrb[0].mxu0 %v1113
    %v1190 = vpop.f32.mrb[0].mxu0
    %v1191 = vadd.f32 %v151, %v1190
    %v1192 = vpop.f32.mrb[0].mxu0
    %1193 = vmatprep.mubr.f32.mxu0 0.0
    %1194 = vmatmul.mubr.f32.gmra.mrb[0].mxu0 %v1116
    %v1195 = vpop.f32.mrb[0].mxu0
    %v1196 = vadd.f32 %v152, %v1195
    %v1197 = vpop.f32.mrb[0].mxu0
    %1198 = vdwg.mxu0
    %v1200 = vsel %vm1111, %v1105, 0
    %v1203 = vsel %vm1111, %v1106, 0
    %v1206 = vsel %vm1111, %v828, 0
    %v1209 = vsel %vm1111, %v964, 0
    %1211 = vmatprep.subr.mxu0 0.0
    %1212 = vmatpush1.xpose.msra.mxu0 %v1206
    %1213 = vmatprep.subr.mxu0 0.0
    %1214 = vmatpush1.xpose.msra.mxu0 %v1209
    %1215 = vmatprep.subr.mxu0 0.0
    %1216 = vmatpush1.xpose.msra.mxu0 0.0
    %1217 = vmatprep.subr.mxu0 0.0
    %1218 = vmatpush1.xpose.msra.mxu0 0.0
    %1219 = vmatprep.subr.mxu0 0.0
    %1220 = vmatpush1.xpose.msra.mxu0 0.0
    %1221 = vmatprep.subr.mxu0 0.0
    %1222 = vmatpush1.xpose.msra.mxu0 0.0
    %1223 = vmatprep.subr.mxu0 0.0
    %1224 = vmatpush1.xpose.msra.mxu0 0.0
    %1225 = vmatprep.subr.mxu0 0.0
    %1226 = vmatpush1.xpose.msra.mxu0 0.0
    %1227 = vmatprep.subr.mxu0 0.0
    %1228 = vmatpush1.xpose.msra.mxu0 0.0
    %1229 = vmatprep.subr.mxu0 0.0
    %1230 = vmatpush1.xpose.msra.mxu0 0.0
    %1231 = vmatprep.subr.mxu0 0.0
    %1232 = vmatpush1.xpose.msra.mxu0 0.0
    %1233 = vmatprep.subr.mxu0 0.0
    %1234 = vmatpush1.xpose.msra.mxu0 0.0
    %1235 = vmatprep.subr.mxu0 0.0
    %1236 = vmatpush1.xpose.msra.mxu0 0.0
    %1237 = vmatprep.subr.mxu0 0.0
    %1238 = vmatpush1.xpose.msra.mxu0 0.0
    %1239 = vmatprep.subr.mxu0 0.0
    %1240 = vmatpush1.xpose.msra.mxu0 0.0
    %1241 = vmatprep.subr.mxu0 0.0
    %1242 = vmatpush1.xpose.msra.mxu0 0.0
    %1243 = vmatprep.subr.mxu0 0.0
    %1244 = vmatpush1.xpose.msra.mxu0 0.0
    %1245 = vmatprep.subr.mxu0 0.0
    %1246 = vmatpush1.xpose.msra.mxu0 0.0
    %1247 = vmatprep.subr.mxu0 0.0
    %1248 = vmatpush1.xpose.msra.mxu0 0.0
    %1249 = vmatprep.subr.mxu0 0.0
    %1250 = vmatpush1.xpose.msra.mxu0 0.0
    %1251 = vmatprep.subr.mxu0 0.0
    %1252 = vmatpush1.xpose.msra.mxu0 0.0
    %1253 = vmatprep.subr.mxu0 0.0
    %1254 = vmatpush1.xpose.msra.mxu0 0.0
    %1255 = vmatprep.subr.mxu0 0.0
    %1256 = vmatpush1.xpose.msra.mxu0 0.0
    %1257 = vmatprep.subr.mxu0 0.0
    %1258 = vmatpush1.xpose.msra.mxu0 0.0
    %1259 = vmatprep.subr.mxu0 0.0
    %1260 = vmatpush1.xpose.msra.mxu0 0.0
    %1261 = vmatprep.subr.mxu0 0.0
    %1262 = vmatpush1.xpose.msra.mxu0 0.0
    %1263 = vmatprep.subr.mxu0 0.0
    %1264 = vmatpush1.xpose.msra.mxu0 0.0
    %1265 = vmatprep.subr.mxu0 0.0
    %1266 = vmatpush1.xpose.msra.mxu0 0.0
    %1267 = vmatprep.subr.mxu0 0.0
    %1268 = vmatpush1.xpose.msra.mxu0 0.0
    %1269 = vmatprep.subr.mxu0 0.0
    %1270 = vmatpush1.xpose.msra.mxu0 0.0
    %1271 = vmatprep.subr.mxu0 0.0
    %1272 = vmatpush1.xpose.msra.mxu0 0.0
    %1273 = vmatprep.subr.mxu0 0.0
    %1274 = vmatpush1.xpose.msra.mxu0 0.0
    %1275 = vmatprep.mubr.f32.mxu0 0.0
    %1276 = vmatmul.mubr.f32.gmra.mrb[0].mxu0 %v1200
    %v1277 = vpop.f32.mrb[0].mxu0
    %v1278 = vadd.f32 %v151, %v1277
    %v1279 = vpop.f32.mrb[0].mxu0
    %1280 = vmatprep.mubr.f32.mxu0 0.0
    %1281 = vmatmul.mubr.f32.gmra.mrb[0].mxu0 %v1203
    %v1282 = vpop.f32.mrb[0].mxu0
    %v1283 = vadd.f32 %v152, %v1282
    %v1284 = vpop.f32.mrb[0].mxu0
    %1285 = vdwg.mxu0
    %v1287 = vsel %vm1111, %v1107, 0
    %v1290 = vsel %vm1111, %v1108, 0
    %v1293 = vsel %vm1111, %v829, 0
    %v1296 = vsel %vm1111, %v965, 0
    %1298 = vmatprep.subr.mxu0 0.0
    %1299 = vmatpush1.xpose.msra.mxu0 %v1293
    %1300 = vmatprep.subr.mxu0 0.0
    %1301 = vmatpush1.xpose.msra.mxu0 %v1296
    %1302 = vmatprep.subr.mxu0 0.0
    %1303 = vmatpush1.xpose.msra.mxu0 0.0
    %1304 = vmatprep.subr.mxu0 0.0
    %1305 = vmatpush1.xpose.msra.mxu0 0.0
    %1306 = vmatprep.subr.mxu0 0.0
    %1307 = vmatpush1.xpose.msra.mxu0 0.0
    %1308 = vmatprep.subr.mxu0 0.0
    %1309 = vmatpush1.xpose.msra.mxu0 0.0
    %1310 = vmatprep.subr.mxu0 0.0
    %1311 = vmatpush1.xpose.msra.mxu0 0.0
    %1312 = vmatprep.subr.mxu0 0.0
    %1313 = vmatpush1.xpose.msra.mxu0 0.0
    %1314 = vmatprep.subr.mxu0 0.0
    %1315 = vmatpush1.xpose.msra.mxu0 0.0
    %1316 = vmatprep.subr.mxu0 0.0
    %1317 = vmatpush1.xpose.msra.mxu0 0.0
    %1318 = vmatprep.subr.mxu0 0.0
    %1319 = vmatpush1.xpose.msra.mxu0 0.0
    %1320 = vmatprep.subr.mxu0 0.0
    %1321 = vmatpush1.xpose.msra.mxu0 0.0
    %1322 = vmatprep.subr.mxu0 0.0
    %1323 = vmatpush1.xpose.msra.mxu0 0.0
    %1324 = vmatprep.subr.mxu0 0.0
    %1325 = vmatpush1.xpose.msra.mxu0 0.0
    %1326 = vmatprep.subr.mxu0 0.0
    %1327 = vmatpush1.xpose.msra.mxu0 0.0
    %1328 = vmatprep.subr.mxu0 0.0
    %1329 = vmatpush1.xpose.msra.mxu0 0.0
    %1330 = vmatprep.subr.mxu0 0.0
    %1331 = vmatpush1.xpose.msra.mxu0 0.0
    %1332 = vmatprep.subr.mxu0 0.0
    %1333 = vmatpush1.xpose.msra.mxu0 0.0
    %1334 = vmatprep.subr.mxu0 0.0
    %1335 = vmatpush1.xpose.msra.mxu0 0.0
    %1336 = vmatprep.subr.mxu0 0.0
    %1337 = vmatpush1.xpose.msra.mxu0 0.0
    %1338 = vmatprep.subr.mxu0 0.0
    %1339 = vmatpush1.xpose.msra.mxu0 0.0
    %1340 = vmatprep.subr.mxu0 0.0
    %1341 = vmatpush1.xpose.msra.mxu0 0.0
    %1342 = vmatprep.subr.mxu0 0.0
    %1343 = vmatpush1.xpose.msra.mxu0 0.0
    %1344 = vmatprep.subr.mxu0 0.0
    %1345 = vmatpush1.xpose.msra.mxu0 0.0
    %1346 = vmatprep.subr.mxu0 0.0
    %1347 = vmatpush1.xpose.msra.mxu0 0.0
    %1348 = vmatprep.subr.mxu0 0.0
    %1349 = vmatpush1.xpose.msra.mxu0 0.0
    %1350 = vmatprep.subr.mxu0 0.0
    %1351 = vmatpush1.xpose.msra.mxu0 0.0
    %1352 = vmatprep.subr.mxu0 0.0
    %1353 = vmatpush1.xpose.msra.mxu0 0.0
    %1354 = vmatprep.subr.mxu0 0.0
    %1355 = vmatpush1.xpose.msra.mxu0 0.0
    %1356 = vmatprep.subr.mxu0 0.0
    %1357 = vmatpush1.xpose.msra.mxu0 0.0
    %1358 = vmatprep.subr.mxu0 0.0
    %1359 = vmatpush1.xpose.msra.mxu0 0.0
    %1360 = vmatprep.subr.mxu0 0.0
    %1361 = vmatpush1.xpose.msra.mxu0 0.0
    %1362 = vmatprep.mubr.f32.mxu0 0.0
    %1363 = vmatmul.mubr.f32.gmra.mrb[0].mxu0 %v1287
    %v1364 = vpop.f32.mrb[0].mxu0
    %v1365 = vadd.f32 %v151, %v1364
    %v1366 = vpop.f32.mrb[0].mxu0
    %1367 = vmatprep.mubr.f32.mxu0 0.0
    %1368 = vmatmul.mubr.f32.gmra.mrb[0].mxu0 %v1290
    %v1369 = vpop.f32.mrb[0].mxu0
    %v1370 = vadd.f32 %v152, %v1369
    %v1371 = vpop.f32.mrb[0].mxu0
    %1372 = vdwg.mxu0
    %v1374 = vsel %vm1111, %v1109, 0
    %v1377 = vsel %vm1111, %v1110, 0
    %v1380 = vsel %vm1111, %v830, 0
    %v1383 = vsel %vm1111, %v966, 0
    %1385 = vmatprep.subr.mxu0 0.0
    %1386 = vmatpush1.xpose.msra.mxu0 %v1380
    %1387 = vmatprep.subr.mxu0 0.0
    %1388 = vmatpush1.xpose.msra.mxu0 %v1383
    %1389 = vmatprep.subr.mxu0 0.0
    %1390 = vmatpush1.xpose.msra.mxu0 0.0
    %1391 = vmatprep.subr.mxu0 0.0
    %1392 = vmatpush1.xpose.msra.mxu0 0.0
    %1393 = vmatprep.subr.mxu0 0.0
    %1394 = vmatpush1.xpose.msra.mxu0 0.0
    %1395 = vmatprep.subr.mxu0 0.0
    %1396 = vmatpush1.xpose.msra.mxu0 0.0
    %1397 = vmatprep.subr.mxu0 0.0
    %1398 = vmatpush1.xpose.msra.mxu0 0.0
    %1399 = vmatprep.subr.mxu0 0.0
    %1400 = vmatpush1.xpose.msra.mxu0 0.0
    %1401 = vmatprep.subr.mxu0 0.0
    %1402 = vmatpush1.xpose.msra.mxu0 0.0
    %1403 = vmatprep.subr.mxu0 0.0
    %1404 = vmatpush1.xpose.msra.mxu0 0.0
    %1405 = vmatprep.subr.mxu0 0.0
    %1406 = vmatpush1.xpose.msra.mxu0 0.0
    %1407 = vmatprep.subr.mxu0 0.0
    %1408 = vmatpush1.xpose.msra.mxu0 0.0
    %1409 = vmatprep.subr.mxu0 0.0
    %1410 = vmatpush1.xpose.msra.mxu0 0.0
    %1411 = vmatprep.subr.mxu0 0.0
    %1412 = vmatpush1.xpose.msra.mxu0 0.0
    %1413 = vmatprep.subr.mxu0 0.0
    %1414 = vmatpush1.xpose.msra.mxu0 0.0
    %1415 = vmatprep.subr.mxu0 0.0
    %1416 = vmatpush1.xpose.msra.mxu0 0.0
    %1417 = vmatprep.subr.mxu0 0.0
    %1418 = vmatpush1.xpose.msra.mxu0 0.0
    %1419 = vmatprep.subr.mxu0 0.0
    %1420 = vmatpush1.xpose.msra.mxu0 0.0
    %1421 = vmatprep.subr.mxu0 0.0
    %1422 = vmatpush1.xpose.msra.mxu0 0.0
    %1423 = vmatprep.subr.mxu0 0.0
    %1424 = vmatpush1.xpose.msra.mxu0 0.0
    %1425 = vmatprep.subr.mxu0 0.0
    %1426 = vmatpush1.xpose.msra.mxu0 0.0
    %1427 = vmatprep.subr.mxu0 0.0
    %1428 = vmatpush1.xpose.msra.mxu0 0.0
    %1429 = vmatprep.subr.mxu0 0.0
    %1430 = vmatpush1.xpose.msra.mxu0 0.0
    %1431 = vmatprep.subr.mxu0 0.0
    %1432 = vmatpush1.xpose.msra.mxu0 0.0
    %1433 = vmatprep.subr.mxu0 0.0
    %1434 = vmatpush1.xpose.msra.mxu0 0.0
    %1435 = vmatprep.subr.mxu0 0.0
    %1436 = vmatpush1.xpose.msra.mxu0 0.0
    %1437 = vmatprep.subr.mxu0 0.0
    %1438 = vmatpush1.xpose.msra.mxu0 0.0
    %1439 = vmatprep.subr.mxu0 0.0
    %1440 = vmatpush1.xpose.msra.mxu0 0.0
    %1441 = vmatprep.subr.mxu0 0.0
    %1442 = vmatpush1.xpose.msra.mxu0 0.0
    %1443 = vmatprep.subr.mxu0 0.0
    %1444 = vmatpush1.xpose.msra.mxu0 0.0
    %1445 = vmatprep.subr.mxu0 0.0
    %1446 = vmatpush1.xpose.msra.mxu0 0.0
    %1447 = vmatprep.subr.mxu0 0.0
    %1448 = vmatpush1.xpose.msra.mxu0 0.0
    %1449 = vmatprep.mubr.f32.mxu0 0.0
    %1450 = vmatmul.mubr.f32.gmra.mrb[0].mxu0 %v1374
    %v1451 = vpop.f32.mrb[0].mxu0
    %v1452 = vadd.f32 %v151, %v1451
    %v1453 = vpop.f32.mrb[0].mxu0
    %1454 = vmatprep.mubr.f32.mxu0 0.0
    %1455 = vmatmul.mubr.f32.gmra.mrb[0].mxu0 %v1377
    %v1456 = vpop.f32.mrb[0].mxu0
    %v1457 = vadd.f32 %v152, %v1456
    %v1458 = vpop.f32.mrb[0].mxu0
    %1459 = vdwg.mxu0
    %vm1460 = vcmask 130048
    %v1461 = vsel %vm1460, %v1191, -inf
    %1462 = vmax.xlane.f32.xlu0 %v1461
    %v1463 = vpop.xlane.xlu0 %1462
    %v1464 = vsel %vm1460, %v1196, -inf
    %1465 = vmax.xlane.f32.xlu0 %v1464
    %v1466 = vpop.xlane.xlu0 %1465
    %v1467 = vsel %vm1460, %v1278, -inf
    %1468 = vmax.xlane.f32.xlu0 %v1467
    %v1469 = vpop.xlane.xlu0 %1468
    %v1470 = vsel %vm1460, %v1283, -inf
    %1471 = vmax.xlane.f32.xlu0 %v1470
    %v1472 = vpop.xlane.xlu0 %1471
    %v1473 = vsel %vm1460, %v1365, -inf
    %1474 = vmax.xlane.f32.xlu0 %v1473
    %v1475 = vpop.xlane.xlu0 %1474
    %v1476 = vsel %vm1460, %v1370, -inf
    %1477 = vmax.xlane.f32.xlu0 %v1476
    %v1478 = vpop.xlane.xlu0 %1477
    %v1479 = vsel %vm1460, %v1452, -inf
    %1480 = vmax.xlane.f32.xlu0 %v1479
    %v1481 = vpop.xlane.xlu0 %1480
    %v1482 = vsel %vm1460, %v1457, -inf
    %1483 = vmax.xlane.f32.xlu0 %v1482
    %v1484 = vpop.xlane.xlu0 %1483
    %v1485 = vsub.f32 %v1191, %v1463
    %v1486 = vsub.f32 %v1196, %v1466
    %v1487 = vsub.f32 %v1278, %v1469
    %v1488 = vsub.f32 %v1283, %v1472
    %v1489 = vsub.f32 %v1365, %v1475
    %v1490 = vsub.f32 %v1370, %v1478
    %v1491 = vsub.f32 %v1452, %v1481
    %v1492 = vsub.f32 %v1457, %v1484
    %v1493 = vmul.f32 %v1485, 1.442695
    %v1494 = vpow.pop %v1493
    %v1495 = vmul.f32 %v1486, 1.442695
    %v1496 = vpow.pop %v1495
    %v1497 = vmul.f32 %v1487, 1.442695
    %v1498 = vpow.pop %v1497
    %v1499 = vmul.f32 %v1488, 1.442695
    %v1500 = vpow.pop %v1499
    %v1501 = vmul.f32 %v1489, 1.442695
    %v1502 = vpow.pop %v1501
    %v1503 = vmul.f32 %v1490, 1.442695
    %v1504 = vpow.pop %v1503
    %v1505 = vmul.f32 %v1491, 1.442695
    %v1506 = vpow.pop %v1505
    %v1507 = vmul.f32 %v1492, 1.442695
    %v1508 = vpow.pop %v1507
    %v1509 = vsel %vm1460, %v1494, 0.0
    %1510 = vadd.xlane.f32.xlu0 %v1509
    %v1511 = vpop.xlane.xlu0 %1510
    %v1512 = vsel %vm1460, %v1496, 0.0
    %1513 = vadd.xlane.f32.xlu0 %v1512
    %v1514 = vpop.xlane.xlu0 %1513
    %v1515 = vsel %vm1460, %v1498, 0.0
    %1516 = vadd.xlane.f32.xlu0 %v1515
    %v1517 = vpop.xlane.xlu0 %1516
    %v1518 = vsel %vm1460, %v1500, 0.0
    %1519 = vadd.xlane.f32.xlu0 %v1518
    %v1520 = vpop.xlane.xlu0 %1519
    %v1521 = vsel %vm1460, %v1502, 0.0
    %1522 = vadd.xlane.f32.xlu0 %v1521
    %v1523 = vpop.xlane.xlu0 %1522
    %v1524 = vsel %vm1460, %v1504, 0.0
    %1525 = vadd.xlane.f32.xlu0 %v1524
    %v1526 = vpop.xlane.xlu0 %1525
    %v1527 = vsel %vm1460, %v1506, 0.0
    %1528 = vadd.xlane.f32.xlu0 %v1527
    %v1529 = vpop.xlane.xlu0 %1528
    %v1530 = vsel %vm1460, %v1508, 0.0
    %1531 = vadd.xlane.f32.xlu0 %v1530
    %v1532 = vpop.xlane.xlu0 %1531
    %v1533 = vrcp.pop %v1511
    %v1534 = vrcp.pop %v1514
    %v1535 = vrcp.pop %v1517
    %v1536 = vrcp.pop %v1520
    %v1537 = vrcp.pop %v1523
    %v1538 = vrcp.pop %v1526
    %v1539 = vrcp.pop %v1529
    %v1540 = vrcp.pop %v1532
    %v1541 = vmul.f32 %v1494, %v1533
    %v1542 = vmul.f32 %v1496, %v1534
    %v1543 = vmul.f32 %v1498, %v1535
    %v1544 = vmul.f32 %v1500, %v1536
    %v1545 = vmul.f32 %v1502, %v1537
    %v1546 = vmul.f32 %v1504, %v1538
    %v1547 = vmul.f32 %v1506, %v1539
    %v1548 = vmul.f32 %v1508, %v1540
    %v1550 = vsel %vm1460, %v1541, 0
    %v1553 = vsel %vm1460, %v1542, 0
    %1555 = vmatprep.subr.mxu0 0.0
    %1556 = vmatpush1.msra.mxu0 %v1031
    %1557 = vmatprep.subr.mxu0 0.0
    %1558 = vmatpush1.msra.mxu0 %v1099
    %1559 = vmatprep.subr.mxu0 0.0
    %1560 = vmatpush1.msra.mxu0 0.0
    %1561 = vmatprep.subr.mxu0 0.0
    %1562 = vmatpush1.msra.mxu0 0.0
    %1563 = vmatprep.subr.mxu0 0.0
    %1564 = vmatpush1.msra.mxu0 0.0
    %1565 = vmatprep.subr.mxu0 0.0
    %1566 = vmatpush1.msra.mxu0 0.0
    %1567 = vmatprep.subr.mxu0 0.0
    %1568 = vmatpush1.msra.mxu0 0.0
    %1569 = vmatprep.subr.mxu0 0.0
    %1570 = vmatpush1.msra.mxu0 0.0
    %1571 = vmatprep.subr.mxu0 0.0
    %1572 = vmatpush1.msra.mxu0 0.0
    %1573 = vmatprep.subr.mxu0 0.0
    %1574 = vmatpush1.msra.mxu0 0.0
    %1575 = vmatprep.subr.mxu0 0.0
    %1576 = vmatpush1.msra.mxu0 0.0
    %1577 = vmatprep.subr.mxu0 0.0
    %1578 = vmatpush1.msra.mxu0 0.0
    %1579 = vmatprep.subr.mxu0 0.0
    %1580 = vmatpush1.msra.mxu0 0.0
    %1581 = vmatprep.subr.mxu0 0.0
    %1582 = vmatpush1.msra.mxu0 0.0
    %1583 = vmatprep.subr.mxu0 0.0
    %1584 = vmatpush1.msra.mxu0 0.0
    %1585 = vmatprep.subr.mxu0 0.0
    %1586 = vmatpush1.msra.mxu0 0.0
    %1587 = vmatprep.subr.mxu0 0.0
    %1588 = vmatpush1.msra.mxu0 0.0
    %1589 = vmatprep.subr.mxu0 0.0
    %1590 = vmatpush1.msra.mxu0 0.0
    %1591 = vmatprep.subr.mxu0 0.0
    %1592 = vmatpush1.msra.mxu0 0.0
    %1593 = vmatprep.subr.mxu0 0.0
    %1594 = vmatpush1.msra.mxu0 0.0
    %1595 = vmatprep.subr.mxu0 0.0
    %1596 = vmatpush1.msra.mxu0 0.0
    %1597 = vmatprep.subr.mxu0 0.0
    %1598 = vmatpush1.msra.mxu0 0.0
    %1599 = vmatprep.subr.mxu0 0.0
    %1600 = vmatpush1.msra.mxu0 0.0
    %1601 = vmatprep.subr.mxu0 0.0
    %1602 = vmatpush1.msra.mxu0 0.0
    %1603 = vmatprep.subr.mxu0 0.0
    %1604 = vmatpush1.msra.mxu0 0.0
    %1605 = vmatprep.subr.mxu0 0.0
    %1606 = vmatpush1.msra.mxu0 0.0
    %1607 = vmatprep.subr.mxu0 0.0
    %1608 = vmatpush1.msra.mxu0 0.0
    %1609 = vmatprep.subr.mxu0 0.0
    %1610 = vmatpush1.msra.mxu0 0.0
    %1611 = vmatprep.subr.mxu0 0.0
    %1612 = vmatpush1.msra.mxu0 0.0
    %1613 = vmatprep.subr.mxu0 0.0
    %1614 = vmatpush1.msra.mxu0 0.0
    %1615 = vmatprep.subr.mxu0 0.0
    %1616 = vmatpush1.msra.mxu0 0.0
    %1617 = vmatprep.subr.mxu0 0.0
    %1618 = vmatpush1.msra.mxu0 0.0
    %1619 = vmatprep.mubr.f32.mxu0 0.0
    %1620 = vmatmul.mubr.f32.gmra.mrb[0].mxu0 %v1550
    %v1621 = vpop.f32.mrb[0].mxu0
    %v1622 = vadd.f32 0.0, %v1621
    %v1623 = vpop.f32.mrb[0].mxu0
    %1624 = vmatprep.mubr.f32.mxu0 0.0
    %1625 = vmatmul.mubr.f32.gmra.mrb[0].mxu0 %v1553
    %v1626 = vpop.f32.mrb[0].mxu0
    %v1627 = vadd.f32 0.0, %v1626
    %v1628 = vpop.f32.mrb[0].mxu0
    %1629 = vdwg.mxu0
    %v1631 = vsel %vm1460, %v1543, 0
    %v1634 = vsel %vm1460, %v1544, 0
    %1636 = vmatprep.subr.mxu0 0.0
    %1637 = vmatpush1.msra.mxu0 %v1032
    %1638 = vmatprep.subr.mxu0 0.0
    %1639 = vmatpush1.msra.mxu0 %v1100
    %1640 = vmatprep.subr.mxu0 0.0
    %1641 = vmatpush1.msra.mxu0 0.0
    %1642 = vmatprep.subr.mxu0 0.0
    %1643 = vmatpush1.msra.mxu0 0.0
    %1644 = vmatprep.subr.mxu0 0.0
    %1645 = vmatpush1.msra.mxu0 0.0
    %1646 = vmatprep.subr.mxu0 0.0
    %1647 = vmatpush1.msra.mxu0 0.0
    %1648 = vmatprep.subr.mxu0 0.0
    %1649 = vmatpush1.msra.mxu0 0.0
    %1650 = vmatprep.subr.mxu0 0.0
    %1651 = vmatpush1.msra.mxu0 0.0
    %1652 = vmatprep.subr.mxu0 0.0
    %1653 = vmatpush1.msra.mxu0 0.0
    %1654 = vmatprep.subr.mxu0 0.0
    %1655 = vmatpush1.msra.mxu0 0.0
    %1656 = vmatprep.subr.mxu0 0.0
    %1657 = vmatpush1.msra.mxu0 0.0
    %1658 = vmatprep.subr.mxu0 0.0
    %1659 = vmatpush1.msra.mxu0 0.0
    %1660 = vmatprep.subr.mxu0 0.0
    %1661 = vmatpush1.msra.mxu0 0.0
    %1662 = vmatprep.subr.mxu0 0.0
    %1663 = vmatpush1.msra.mxu0 0.0
    %1664 = vmatprep.subr.mxu0 0.0
    %1665 = vmatpush1.msra.mxu0 0.0
    %1666 = vmatprep.subr.mxu0 0.0
    %1667 = vmatpush1.msra.mxu0 0.0
    %1668 = vmatprep.subr.mxu0 0.0
    %1669 = vmatpush1.msra.mxu0 0.0
    %1670 = vmatprep.subr.mxu0 0.0
    %1671 = vmatpush1.msra.mxu0 0.0
    %1672 = vmatprep.subr.mxu0 0.0
    %1673 = vmatpush1.msra.mxu0 0.0
    %1674 = vmatprep.subr.mxu0 0.0
    %1675 = vmatpush1.msra.mxu0 0.0
    %1676 = vmatprep.subr.mxu0 0.0
    %1677 = vmatpush1.msra.mxu0 0.0
    %1678 = vmatprep.subr.mxu0 0.0
    %1679 = vmatpush1.msra.mxu0 0.0
    %1680 = vmatprep.subr.mxu0 0.0
    %1681 = vmatpush1.msra.mxu0 0.0
    %1682 = vmatprep.subr.mxu0 0.0
    %1683 = vmatpush1.msra.mxu0 0.0
    %1684 = vmatprep.subr.mxu0 0.0
    %1685 = vmatpush1.msra.mxu0 0.0
    %1686 = vmatprep.subr.mxu0 0.0
    %1687 = vmatpush1.msra.mxu0 0.0
    %1688 = vmatprep.subr.mxu0 0.0
    %1689 = vmatpush1.msra.mxu0 0.0
    %1690 = vmatprep.subr.mxu0 0.0
    %1691 = vmatpush1.msra.mxu0 0.0
    %1692 = vmatprep.subr.mxu0 0.0
    %1693 = vmatpush1.msra.mxu0 0.0
    %1694 = vmatprep.subr.mxu0 0.0
    %1695 = vmatpush1.msra.mxu0 0.0
    %1696 = vmatprep.subr.mxu0 0.0
    %1697 = vmatpush1.msra.mxu0 0.0
    %1698 = vmatprep.subr.mxu0 0.0
    %1699 = vmatpush1.msra.mxu0 0.0
    %1700 = vmatprep.mubr.f32.mxu0 0.0
    %1701 = vmatmul.mubr.f32.gmra.mrb[0].mxu0 %v1631
    %v1702 = vpop.f32.mrb[0].mxu0
    %v1703 = vadd.f32 0.0, %v1702
    %v1704 = vpop.f32.mrb[0].mxu0
    %1705 = vmatprep.mubr.f32.mxu0 0.0
    %1706 = vmatmul.mubr.f32.gmra.mrb[0].mxu0 %v1634
    %v1707 = vpop.f32.mrb[0].mxu0
    %v1708 = vadd.f32 0.0, %v1707
    %v1709 = vpop.f32.mrb[0].mxu0
    %1710 = vdwg.mxu0
    %v1712 = vsel %vm1460, %v1545, 0
    %v1715 = vsel %vm1460, %v1546, 0
    %1717 = vmatprep.subr.mxu0 0.0
    %1718 = vmatpush1.msra.mxu0 %v1033
    %1719 = vmatprep.subr.mxu0 0.0
    %1720 = vmatpush1.msra.mxu0 %v1101
    %1721 = vmatprep.subr.mxu0 0.0
    %1722 = vmatpush1.msra.mxu0 0.0
    %1723 = vmatprep.subr.mxu0 0.0
    %1724 = vmatpush1.msra.mxu0 0.0
    %1725 = vmatprep.subr.mxu0 0.0
    %1726 = vmatpush1.msra.mxu0 0.0
    %1727 = vmatprep.subr.mxu0 0.0
    %1728 = vmatpush1.msra.mxu0 0.0
    %1729 = vmatprep.subr.mxu0 0.0
    %1730 = vmatpush1.msra.mxu0 0.0
    %1731 = vmatprep.subr.mxu0 0.0
    %1732 = vmatpush1.msra.mxu0 0.0
    %1733 = vmatprep.subr.mxu0 0.0
    %1734 = vmatpush1.msra.mxu0 0.0
    %1735 = vmatprep.subr.mxu0 0.0
    %1736 = vmatpush1.msra.mxu0 0.0
    %1737 = vmatprep.subr.mxu0 0.0
    %1738 = vmatpush1.msra.mxu0 0.0
    %1739 = vmatprep.subr.mxu0 0.0
    %1740 = vmatpush1.msra.mxu0 0.0
    %1741 = vmatprep.subr.mxu0 0.0
    %1742 = vmatpush1.msra.mxu0 0.0
    %1743 = vmatprep.subr.mxu0 0.0
    %1744 = vmatpush1.msra.mxu0 0.0
    %1745 = vmatprep.subr.mxu0 0.0
    %1746 = vmatpush1.msra.mxu0 0.0
    %1747 = vmatprep.subr.mxu0 0.0
    %1748 = vmatpush1.msra.mxu0 0.0
    %1749 = vmatprep.subr.mxu0 0.0
    %1750 = vmatpush1.msra.mxu0 0.0
    %1751 = vmatprep.subr.mxu0 0.0
    %1752 = vmatpush1.msra.mxu0 0.0
    %1753 = vmatprep.subr.mxu0 0.0
    %1754 = vmatpush1.msra.mxu0 0.0
    %1755 = vmatprep.subr.mxu0 0.0
    %1756 = vmatpush1.msra.mxu0 0.0
    %1757 = vmatprep.subr.mxu0 0.0
    %1758 = vmatpush1.msra.mxu0 0.0
    %1759 = vmatprep.subr.mxu0 0.0
    %1760 = vmatpush1.msra.mxu0 0.0
    %1761 = vmatprep.subr.mxu0 0.0
    %1762 = vmatpush1.msra.mxu0 0.0
    %1763 = vmatprep.subr.mxu0 0.0
    %1764 = vmatpush1.msra.mxu0 0.0
    %1765 = vmatprep.subr.mxu0 0.0
    %1766 = vmatpush1.msra.mxu0 0.0
    %1767 = vmatprep.subr.mxu0 0.0
    %1768 = vmatpush1.msra.mxu0 0.0
    %1769 = vmatprep.subr.mxu0 0.0
    %1770 = vmatpush1.msra.mxu0 0.0
    %1771 = vmatprep.subr.mxu0 0.0
    %1772 = vmatpush1.msra.mxu0 0.0
    %1773 = vmatprep.subr.mxu0 0.0
    %1774 = vmatpush1.msra.mxu0 0.0
    %1775 = vmatprep.subr.mxu0 0.0
    %1776 = vmatpush1.msra.mxu0 0.0
    %1777 = vmatprep.subr.mxu0 0.0
    %1778 = vmatpush1.msra.mxu0 0.0
    %1779 = vmatprep.subr.mxu0 0.0
    %1780 = vmatpush1.msra.mxu0 0.0
    %1781 = vmatprep.mubr.f32.mxu0 0.0
    %1782 = vmatmul.mubr.f32.gmra.mrb[0].mxu0 %v1712
    %v1783 = vpop.f32.mrb[0].mxu0
    %v1784 = vadd.f32 0.0, %v1783
    %v1785 = vpop.f32.mrb[0].mxu0
    %1786 = vmatprep.mubr.f32.mxu0 0.0
    %1787 = vmatmul.mubr.f32.gmra.mrb[0].mxu0 %v1715
    %v1788 = vpop.f32.mrb[0].mxu0
    %v1789 = vadd.f32 0.0, %v1788
    %v1790 = vpop.f32.mrb[0].mxu0
    %1791 = vdwg.mxu0
    %v1793 = vsel %vm1460, %v1547, 0
    %v1796 = vsel %vm1460, %v1548, 0
    %1798 = vmatprep.subr.mxu0 0.0
    %1799 = vmatpush1.msra.mxu0 %v1034
    %1800 = vmatprep.subr.mxu0 0.0
    %1801 = vmatpush1.msra.mxu0 %v1102
    %1802 = vmatprep.subr.mxu0 0.0
    %1803 = vmatpush1.msra.mxu0 0.0
    %1804 = vmatprep.subr.mxu0 0.0
    %1805 = vmatpush1.msra.mxu0 0.0
    %1806 = vmatprep.subr.mxu0 0.0
    %1807 = vmatpush1.msra.mxu0 0.0
    %1808 = vmatprep.subr.mxu0 0.0
    %1809 = vmatpush1.msra.mxu0 0.0
    %1810 = vmatprep.subr.mxu0 0.0
    %1811 = vmatpush1.msra.mxu0 0.0
    %1812 = vmatprep.subr.mxu0 0.0
    %1813 = vmatpush1.msra.mxu0 0.0
    %1814 = vmatprep.subr.mxu0 0.0
    %1815 = vmatpush1.msra.mxu0 0.0
    %1816 = vmatprep.subr.mxu0 0.0
    %1817 = vmatpush1.msra.mxu0 0.0
    %1818 = vmatprep.subr.mxu0 0.0
    %1819 = vmatpush1.msra.mxu0 0.0
    %1820 = vmatprep.subr.mxu0 0.0
    %1821 = vmatpush1.msra.mxu0 0.0
    %1822 = vmatprep.subr.mxu0 0.0
    %1823 = vmatpush1.msra.mxu0 0.0
    %1824 = vmatprep.subr.mxu0 0.0
    %1825 = vmatpush1.msra.mxu0 0.0
    %1826 = vmatprep.subr.mxu0 0.0
    %1827 = vmatpush1.msra.mxu0 0.0
    %1828 = vmatprep.subr.mxu0 0.0
    %1829 = vmatpush1.msra.mxu0 0.0
    %1830 = vmatprep.subr.mxu0 0.0
    %1831 = vmatpush1.msra.mxu0 0.0
    %1832 = vmatprep.subr.mxu0 0.0
    %1833 = vmatpush1.msra.mxu0 0.0
    %1834 = vmatprep.subr.mxu0 0.0
    %1835 = vmatpush1.msra.mxu0 0.0
    %1836 = vmatprep.subr.mxu0 0.0
    %1837 = vmatpush1.msra.mxu0 0.0
    %1838 = vmatprep.subr.mxu0 0.0
    %1839 = vmatpush1.msra.mxu0 0.0
    %1840 = vmatprep.subr.mxu0 0.0
    %1841 = vmatpush1.msra.mxu0 0.0
    %1842 = vmatprep.subr.mxu0 0.0
    %1843 = vmatpush1.msra.mxu0 0.0
    %1844 = vmatprep.subr.mxu0 0.0
    %1845 = vmatpush1.msra.mxu0 0.0
    %1846 = vmatprep.subr.mxu0 0.0
    %1847 = vmatpush1.msra.mxu0 0.0
    %1848 = vmatprep.subr.mxu0 0.0
    %1849 = vmatpush1.msra.mxu0 0.0
    %1850 = vmatprep.subr.mxu0 0.0
    %1851 = vmatpush1.msra.mxu0 0.0
    %1852 = vmatprep.subr.mxu0 0.0
    %1853 = vmatpush1.msra.mxu0 0.0
    %1854 = vmatprep.subr.mxu0 0.0
    %1855 = vmatpush1.msra.mxu0 0.0
    %1856 = vmatprep.subr.mxu0 0.0
    %1857 = vmatpush1.msra.mxu0 0.0
    %1858 = vmatprep.subr.mxu0 0.0
    %1859 = vmatpush1.msra.mxu0 0.0
    %1860 = vmatprep.subr.mxu0 0.0
    %1861 = vmatpush1.msra.mxu0 0.0
    %1862 = vmatprep.mubr.f32.mxu0 0.0
    %1863 = vmatmul.mubr.f32.gmra.mrb[0].mxu0 %v1793
    %v1864 = vpop.f32.mrb[0].mxu0
    %v1865 = vadd.f32 0.0, %v1864
    %v1866 = vpop.f32.mrb[0].mxu0
    %1867 = vmatprep.mubr.f32.mxu0 0.0
    %1868 = vmatmul.mubr.f32.gmra.mrb[0].mxu0 %v1796
    %v1869 = vpop.f32.mrb[0].mxu0
    %v1870 = vadd.f32 0.0, %v1869
    %v1871 = vpop.f32.mrb[0].mxu0
    %1872 = vdwg.mxu0
    %v1873 = vcombine.low %v1622, %v1784
    %v1874 = vcombine.high %v1622, %v1784
    %v1876 = vunpack.c.l.s4 1983009808
    %v1877 = vunpack.c.0.s8 %v1876
    %v1878 = vlaneseq
    %v1879 = vshrl.u32 %v1878, 7
    %v1880 = vsub.s32 %v1877, %v1879
    %v1881 = vrot.slane %v1873, %v1880
    %v1883 = vunpack.c.l.s4 1983009808
    %v1884 = vunpack.c.0.s8 %v1883
    %v1885 = vlaneseq
    %v1886 = vshrl.u32 %v1885, 7
    %v1887 = vsub.s32 %v1884, %v1886
    %v1888 = vrot.slane %v1874, %v1887
    %v1889 = vcombine.low %v1703, %v1865
    %v1890 = vcombine.high %v1703, %v1865
    %v1892 = vunpack.c.l.s4 1983009808
    %v1893 = vunpack.c.0.s8 %v1892
    %v1894 = vlaneseq
    %v1895 = vshrl.u32 %v1894, 7
    %v1896 = vsub.s32 %v1893, %v1895
    %v1897 = vrot.slane %v1889, %v1896
    %v1899 = vunpack.c.l.s4 1983009808
    %v1900 = vunpack.c.0.s8 %v1899
    %v1901 = vlaneseq
    %v1902 = vshrl.u32 %v1901, 7
    %v1903 = vsub.s32 %v1900, %v1902
    %v1904 = vrot.slane %v1890, %v1903
    %v1905 = vcombine.low %v1881, %v1897
    %v1906 = vcombine.high %v1881, %v1897
    %v1908 = vunpack.c.l.s4 1934713408
    %v1909 = vunpack.c.0.s8 %v1908
    %v1910 = vlaneseq
    %v1911 = vshrl.u32 %v1910, 7
    %v1912 = vsub.s32 %v1909, %v1911
    %v1913 = vrot.slane %v1905, %v1912
    %v1915 = vunpack.c.l.s4 1934713408
    %v1916 = vunpack.c.0.s8 %v1915
    %v1917 = vlaneseq
    %v1918 = vshrl.u32 %v1917, 7
    %v1919 = vsub.s32 %v1916, %v1918
    %v1920 = vrot.slane %v1906, %v1919
    %v1921 = vcombine.low %v1888, %v1904
    %v1922 = vcombine.high %v1888, %v1904
    %v1924 = vunpack.c.l.s4 1934713408
    %v1925 = vunpack.c.0.s8 %v1924
    %v1926 = vlaneseq
    %v1927 = vshrl.u32 %v1926, 7
    %v1928 = vsub.s32 %v1925, %v1927
    %v1929 = vrot.slane %v1921, %v1928
    %v1931 = vunpack.c.l.s4 1934713408
    %v1932 = vunpack.c.0.s8 %v1931
    %v1933 = vlaneseq
    %v1934 = vshrl.u32 %v1933, 7
    %v1935 = vsub.s32 %v1932, %v1934
    %v1936 = vrot.slane %v1922, %v1935
    %v1937 = vcombine.high %v1913, 0.0
    %v1938 = vcombine.high %v1920, 0.0
    %v1939 = vcombine.high %v1929, 0.0
    %v1940 = vcombine.high %v1936, 0.0
    %v1941 = vcombine.low %v1627, %v1789
    %v1942 = vcombine.high %v1627, %v1789
    %v1944 = vunpack.c.l.s4 1983009808
    %v1945 = vunpack.c.0.s8 %v1944
    %v1946 = vlaneseq
    %v1947 = vshrl.u32 %v1946, 7
    %v1948 = vsub.s32 %v1945, %v1947
    %v1949 = vrot.slane %v1941, %v1948
    %v1951 = vunpack.c.l.s4 1983009808
    %v1952 = vunpack.c.0.s8 %v1951
    %v1953 = vlaneseq
    %v1954 = vshrl.u32 %v1953, 7
    %v1955 = vsub.s32 %v1952, %v1954
    %v1956 = vrot.slane %v1942, %v1955
    %v1957 = vcombine.low %v1708, %v1870
    %v1958 = vcombine.high %v1708, %v1870
    %v1960 = vunpack.c.l.s4 1983009808
    %v1961 = vunpack.c.0.s8 %v1960
    %v1962 = vlaneseq
    %v1963 = vshrl.u32 %v1962, 7
    %v1964 = vsub.s32 %v1961, %v1963
    %v1965 = vrot.slane %v1957, %v1964
    %v1967 = vunpack.c.l.s4 1983009808
    %v1968 = vunpack.c.0.s8 %v1967
    %v1969 = vlaneseq
    %v1970 = vshrl.u32 %v1969, 7
    %v1971 = vsub.s32 %v1968, %v1970
    %v1972 = vrot.slane %v1958, %v1971
    %v1973 = vcombine.low %v1949, %v1965
    %v1974 = vcombine.high %v1949, %v1965
    %v1976 = vunpack.c.l.s4 1934713408
    %v1977 = vunpack.c.0.s8 %v1976
    %v1978 = vlaneseq
    %v1979 = vshrl.u32 %v1978, 7
    %v1980 = vsub.s32 %v1977, %v1979
    %v1981 = vrot.slane %v1973, %v1980
    %v1983 = vunpack.c.l.s4 1934713408
    %v1984 = vunpack.c.0.s8 %v1983
    %v1985 = vlaneseq
    %v1986 = vshrl.u32 %v1985, 7
    %v1987 = vsub.s32 %v1984, %v1986
    %v1988 = vrot.slane %v1974, %v1987
    %v1989 = vcombine.low %v1956, %v1972
    %v1990 = vcombine.high %v1956, %v1972
    %v1992 = vunpack.c.l.s4 1934713408
    %v1993 = vunpack.c.0.s8 %v1992
    %v1994 = vlaneseq
    %v1995 = vshrl.u32 %v1994, 7
    %v1996 = vsub.s32 %v1993, %v1995
    %v1997 = vrot.slane %v1989, %v1996
    %v1999 = vunpack.c.l.s4 1934713408
    %v2000 = vunpack.c.0.s8 %v1999
    %v2001 = vlaneseq
    %v2002 = vshrl.u32 %v2001, 7
    %v2003 = vsub.s32 %v2000, %v2002
    %v2004 = vrot.slane %v1990, %v2003
    %v2005 = vcombine.high %v1981, 0.0
    %v2006 = vcombine.high %v1988, 0.0
    %v2007 = vcombine.high %v1997, 0.0
    %v2008 = vcombine.high %v2004, 0.0
    %v2009 = vcombine.low %v1913, %v1920
    %v2011 = vunpack.c.l.s4 1983009808
    %v2012 = vunpack.c.0.s8 %v2011
    %v2013 = vlaneseq
    %v2014 = vshrl.u32 %v2013, 7
    %v2015 = vsub.s32 %v2012, %v2014
    %v2016 = vrot.slane %v2009, %v2015
    %v2017 = vcombine.low %v1937, %v1938
    %v2019 = vunpack.c.l.s4 1983009808
    %v2020 = vunpack.c.0.s8 %v2019
    %v2021 = vlaneseq
    %v2022 = vshrl.u32 %v2021, 7
    %v2023 = vsub.s32 %v2020, %v2022
    %v2024 = vrot.slane %v2017, %v2023
    %v2025 = vcombine.low %v1929, %v1936
    %v2027 = vunpack.c.l.s4 1983009808
    %v2028 = vunpack.c.0.s8 %v2027
    %v2029 = vlaneseq
    %v2030 = vshrl.u32 %v2029, 7
    %v2031 = vsub.s32 %v2028, %v2030
    %v2032 = vrot.slane %v2025, %v2031
    %v2033 = vcombine.low %v1939, %v1940
    %v2035 = vunpack.c.l.s4 1983009808
    %v2036 = vunpack.c.0.s8 %v2035
    %v2037 = vlaneseq
    %v2038 = vshrl.u32 %v2037, 7
    %v2039 = vsub.s32 %v2036, %v2038
    %v2040 = vrot.slane %v2033, %v2039
    %v2041 = vcombine.low %v2016, %v2024
    %v2042 = vcombine.high %v2016, %v2024
    %v2044 = vunpack.c.l.s4 1934713408
    %v2045 = vunpack.c.0.s8 %v2044
    %v2046 = vlaneseq
    %v2047 = vshrl.u32 %v2046, 7
    %v2048 = vsub.s32 %v2045, %v2047
    %v2049 = vrot.slane %v2041, %v2048
    %v2051 = vunpack.c.l.s4 1934713408
    %v2052 = vunpack.c.0.s8 %v2051
    %v2053 = vlaneseq
    %v2054 = vshrl.u32 %v2053, 7
    %v2055 = vsub.s32 %v2052, %v2054
    %v2056 = vrot.slane %v2042, %v2055
    %v2057 = vcombine.low %v2032, %v2040
    %v2058 = vcombine.high %v2032, %v2040
    %v2060 = vunpack.c.l.s4 1934713408
    %v2061 = vunpack.c.0.s8 %v2060
    %v2062 = vlaneseq
    %v2063 = vshrl.u32 %v2062, 7
    %v2064 = vsub.s32 %v2061, %v2063
    %v2065 = vrot.slane %v2057, %v2064
    %v2067 = vunpack.c.l.s4 1934713408
    %v2068 = vunpack.c.0.s8 %v2067
    %v2069 = vlaneseq
    %v2070 = vshrl.u32 %v2069, 7
    %v2071 = vsub.s32 %v2068, %v2070
    %v2072 = vrot.slane %v2058, %v2071
    %v2073 = vcombine.low %v2049, %v2065
    %v2074 = vcombine.high %v2049, %v2065
    %v2075 = vcombine.low %v2056, %v2072
    %v2076 = vcombine.high %v2056, %v2072
    %v2077 = vcombine.low %v1981, %v1988
    %v2079 = vunpack.c.l.s4 1983009808
    %v2080 = vunpack.c.0.s8 %v2079
    %v2081 = vlaneseq
    %v2082 = vshrl.u32 %v2081, 7
    %v2083 = vsub.s32 %v2080, %v2082
    %v2084 = vrot.slane %v2077, %v2083
    %v2085 = vcombine.low %v2005, %v2006
    %v2087 = vunpack.c.l.s4 1983009808
    %v2088 = vunpack.c.0.s8 %v2087
    %v2089 = vlaneseq
    %v2090 = vshrl.u32 %v2089, 7
    %v2091 = vsub.s32 %v2088, %v2090
    %v2092 = vrot.slane %v2085, %v2091
    %v2093 = vcombine.low %v1997, %v2004
    %v2095 = vunpack.c.l.s4 1983009808
    %v2096 = vunpack.c.0.s8 %v2095
    %v2097 = vlaneseq
    %v2098 = vshrl.u32 %v2097, 7
    %v2099 = vsub.s32 %v2096, %v2098
    %v2100 = vrot.slane %v2093, %v2099
    %v2101 = vcombine.low %v2007, %v2008
    %v2103 = vunpack.c.l.s4 1983009808
    %v2104 = vunpack.c.0.s8 %v2103
    %v2105 = vlaneseq
    %v2106 = vshrl.u32 %v2105, 7
    %v2107 = vsub.s32 %v2104, %v2106
    %v2108 = vrot.slane %v2101, %v2107
    %v2109 = vcombine.low %v2084, %v2092
    %v2110 = vcombine.high %v2084, %v2092
    %v2112 = vunpack.c.l.s4 1934713408
    %v2113 = vunpack.c.0.s8 %v2112
    %v2114 = vlaneseq
    %v2115 = vshrl.u32 %v2114, 7
    %v2116 = vsub.s32 %v2113, %v2115
    %v2117 = vrot.slane %v2109, %v2116
    %v2119 = vunpack.c.l.s4 1934713408
    %v2120 = vunpack.c.0.s8 %v2119
    %v2121 = vlaneseq
    %v2122 = vshrl.u32 %v2121, 7
    %v2123 = vsub.s32 %v2120, %v2122
    %v2124 = vrot.slane %v2110, %v2123
    %v2125 = vcombine.low %v2100, %v2108
    %v2126 = vcombine.high %v2100, %v2108
    %v2128 = vunpack.c.l.s4 1934713408
    %v2129 = vunpack.c.0.s8 %v2128
    %v2130 = vlaneseq
    %v2131 = vshrl.u32 %v2130, 7
    %v2132 = vsub.s32 %v2129, %v2131
    %v2133 = vrot.slane %v2125, %v2132
    %v2135 = vunpack.c.l.s4 1934713408
    %v2136 = vunpack.c.0.s8 %v2135
    %v2137 = vlaneseq
    %v2138 = vshrl.u32 %v2137, 7
    %v2139 = vsub.s32 %v2136, %v2138
    %v2140 = vrot.slane %v2126, %v2139
    %v2141 = vcombine.low %v2117, %v2133
    %v2142 = vcombine.high %v2117, %v2133
    %v2143 = vcombine.low %v2124, %v2140
    %v2144 = vcombine.high %v2124, %v2140
    %2147 = vrot.lane.b32.xlu0 %v2074, 8
    %v2148 = vpop.permute.xlu0 %2147
    %2149 = vrot.lane.b32.xlu0 %v2142, 8
    %v2150 = vpop.permute.xlu0 %2149
    %2155 = vrot.lane.b32.xlu0 %v2075, 16
    %v2156 = vpop.permute.xlu0 %2155
    %2157 = vrot.lane.b32.xlu0 %v2143, 16
    %v2158 = vpop.permute.xlu0 %2157
    %2163 = vrot.lane.b32.xlu0 %v2076, 24
    %v2164 = vpop.permute.xlu0 %2163
    %2165 = vrot.lane.b32.xlu0 %v2144, 24
    %v2166 = vpop.permute.xlu0 %2165
    %v2169 = vsel %vm1111, %v2073, %v2148
    %v2170 = vsel %vm1111, %v2141, %v2150
    %v2171 = vsel %vm1460, %v2169, %v2156
    %v2172 = vsel %vm1460, %v2170, %v2158
    %vm2173 = vcmask 195584
    %v2174 = vsel %vm2173, %v2171, %v2164
    %v2175 = vsel %vm2173, %v2172, %v2166
    %v2176 = vpack.c.bf16 %v2175, %v2174
    %v2177 = vlaneseq
    %v2178 = vshrl.u32 %v2177, 7
    %v2179 = vsub.s32 1, %v2178
    %v2180 = vrot.slane %v148, %v2179
    %2181 = vrot.lane.b32.xlu0 %v170, 32
    %v2182 = vpop.permute.xlu0 %2181
    %2183 = vrot.lane.b32.xlu0 %v171, 32
    %v2184 = vpop.permute.xlu0 %2183
    %v2188 = vsel %vm174, %v2176, 0
    %2190 = vmatprep.subr.bf16.mxu0 0
    %2191 = vmatpush1.bf16.msra.mxu0 %v2182
    %2192 = vmatprep.subr.bf16.mxu0 0
    %2193 = vmatpush1.bf16.msra.mxu0 %v2184
    %2194 = vmatprep.subr.bf16.mxu0 0
    %2195 = vmatpush1.bf16.msra.mxu0 0
    %2196 = vmatprep.subr.bf16.mxu0 0
    %2197 = vmatpush1.bf16.msra.mxu0 0
    %2198 = vmatprep.subr.bf16.mxu0 0
    %2199 = vmatpush1.bf16.msra.mxu0 0
    %2200 = vmatprep.subr.bf16.mxu0 0
    %2201 = vmatpush1.bf16.msra.mxu0 0
    %2202 = vmatprep.subr.bf16.mxu0 0
    %2203 = vmatpush1.bf16.msra.mxu0 0
    %2204 = vmatprep.subr.bf16.mxu0 0
    %2205 = vmatpush1.bf16.msra.mxu0 0
    %2206 = vmatprep.subr.bf16.mxu0 0
    %2207 = vmatpush1.bf16.msra.mxu0 0
    %2208 = vmatprep.subr.bf16.mxu0 0
    %2209 = vmatpush1.bf16.msra.mxu0 0
    %2210 = vmatprep.subr.bf16.mxu0 0
    %2211 = vmatpush1.bf16.msra.mxu0 0
    %2212 = vmatprep.subr.bf16.mxu0 0
    %2213 = vmatpush1.bf16.msra.mxu0 0
    %2214 = vmatprep.subr.bf16.mxu0 0
    %2215 = vmatpush1.bf16.msra.mxu0 0
    %2216 = vmatprep.subr.bf16.mxu0 0
    %2217 = vmatpush1.bf16.msra.mxu0 0
    %2218 = vmatprep.subr.bf16.mxu0 0
    %2219 = vmatpush1.bf16.msra.mxu0 0
    %2220 = vmatprep.subr.bf16.mxu0 0
    %2221 = vmatpush1.bf16.msra.mxu0 0
    %2222 = vmatprep.mubr.bf16.mxu0 0
    %2223 = vmatmul.mubr.bf16.gmra.mrb[0].mxu0 %v2188
    %v2224 = vpop.f32.mrb[0].mxu0
    %v2225 = vadd.f32 %v2180, %v2224
    %v2226 = vpop.f32.mrb[0].mxu0
    %v2227 = vpop.f32.mrb[0].mxu0
    %v2228 = vadd.f32 %v2180, %v2227
    %v2229 = vpop.f32.mrb[0].mxu0
    %2230 = vdwg.mxu0
    %v2231 = vadd.f32 %v142, %v2225
    %v2232 = vadd.f32 %v145, %v2228
    %v2233 = vsel %vm174, %v2231, 0.0
    %2234 = vadd.xlane.f32.xlu0 %v2233
    %v2235 = vpop.xlane.xlu0 %2234
    %v2236 = vsel %vm174, %v2232, 0.0
    %2237 = vadd.xlane.f32.xlu0 %v2236
    %v2238 = vpop.xlane.xlu0 %2237
    %v2239 = vrcp.pop 32.0
    %v2240 = vmul.f32 %v2235, %v2239
    %v2241 = vmul.f32 %v2238, %v2239
    %v2242 = vsub.f32 %v2231, %v2240
    %v2243 = vsub.f32 %v2232, %v2241
    %v2244 = vmul.f32 %v2242, %v2242
    %v2245 = vmul.f32 %v2243, %v2243
    %v2246 = vsel %vm174, %v2244, 0.0
    %2247 = vadd.xlane.f32.xlu0 %v2246
    %v2248 = vpop.xlane.xlu0 %2247
    %v2249 = vsel %vm174, %v2245, 0.0
    %2250 = vadd.xlane.f32.xlu0 %v2249
    %v2251 = vpop.xlane.xlu0 %2250
    %v2252 = vmul.f32 %v2248, %v2239
    %v2253 = vmul.f32 %v2251, %v2239
    %v2254 = vadd.f32 %v2252, 1e-05
    %v2255 = vadd.f32 %v2253, 1e-05
    %v2256 = vrsqrt.pop %v2254
    %v2257 = vrsqrt.pop %v2255
    %v2258 = vmul.f32 %v2242, %v2256
    %v2259 = vmul.f32 %v2243, %v2257
    %v2260 = vlaneseq
    %v2261 = vshrl.u32 %v2260, 7
    %v2262 = vsub.s32 4, %v2261
    %v2263 = vrot.slane %v148, %v2262
    %v2264 = vmul.f32 %v2258, %v2263
    %v2265 = vmul.f32 %v2259, %v2263
    %v2266 = vlaneseq
    %v2267 = vshrl.u32 %v2266, 7
    %v2268 = vsub.s32 5, %v2267
    %v2269 = vrot.slane %v148, %v2268
    %v2270 = vadd.f32 %v2264, %v2269
    %v2271 = vadd.f32 %v2265, %v2269
    %v2272 = vpack.c.bf16 %v2271, %v2270
    %v2273 = vlaneseq
    %v2274 = vshrl.u32 %v2273, 7
    %v2275 = vsub.s32 2, %v2274
    %v2276 = vrot.slane %v148, %v2275
    %v2277 = vunpack.c.h.b16 %v153
    %v2278 = vunpack.c.h.b16 %v154
    %v2279 = vunpack.c.h.b16 %v155
    %v2280 = vunpack.c.h.b16 %v156
    %v2281 = vpack.c.b16 %v2278, %v2277
    %v2282 = vpack.c.b16 %v2280, %v2279
    %v2286 = vsel %vm174, %v2272, 0
    %2288 = vmatprep.subr.bf16.mxu0 0
    %2289 = vmatpush1.bf16.msra.mxu0 %v2281
    %2290 = vmatprep.subr.bf16.mxu0 0
    %2291 = vmatpush1.bf16.msra.mxu0 %v2282
    %2292 = vmatprep.subr.bf16.mxu0 0
    %2293 = vmatpush1.bf16.msra.mxu0 0
    %2294 = vmatprep.subr.bf16.mxu0 0
    %2295 = vmatpush1.bf16.msra.mxu0 0
    %2296 = vmatprep.subr.bf16.mxu0 0
    %2297 = vmatpush1.bf16.msra.mxu0 0
    %2298 = vmatprep.subr.bf16.mxu0 0
    %2299 = vmatpush1.bf16.msra.mxu0 0
    %2300 = vmatprep.subr.bf16.mxu0 0
    %2301 = vmatpush1.bf16.msra.mxu0 0
    %2302 = vmatprep.subr.bf16.mxu0 0
    %2303 = vmatpush1.bf16.msra.mxu0 0
    %2304 = vmatprep.subr.bf16.mxu0 0
    %2305 = vmatpush1.bf16.msra.mxu0 0
    %2306 = vmatprep.subr.bf16.mxu0 0
    %2307 = vmatpush1.bf16.msra.mxu0 0
    %2308 = vmatprep.subr.bf16.mxu0 0
    %2309 = vmatpush1.bf16.msra.mxu0 0
    %2310 = vmatprep.subr.bf16.mxu0 0
    %2311 = vmatpush1.bf16.msra.mxu0 0
    %2312 = vmatprep.subr.bf16.mxu0 0
    %2313 = vmatpush1.bf16.msra.mxu0 0
    %2314 = vmatprep.subr.bf16.mxu0 0
    %2315 = vmatpush1.bf16.msra.mxu0 0
    %2316 = vmatprep.subr.bf16.mxu0 0
    %2317 = vmatpush1.bf16.msra.mxu0 0
    %2318 = vmatprep.subr.bf16.mxu0 0
    %2319 = vmatpush1.bf16.msra.mxu0 0
    %2320 = vmatprep.mubr.bf16.mxu0 0
    %2321 = vmatmul.mubr.bf16.gmra.mrb[0].mxu0 %v2286
    %v2322 = vpop.f32.mrb[0].mxu0
    %v2323 = vadd.f32 %v2276, %v2322
    %v2324 = vpop.f32.mrb[0].mxu0
    %v2325 = vpop.f32.mrb[0].mxu0
    %v2326 = vadd.f32 %v2276, %v2325
    %v2327 = vpop.f32.mrb[0].mxu0
    %2328 = vdwg.mxu0
    %v2329 = vmax.f32 %v2323, 0.0
    %v2330 = vmax.f32 %v2326, 0.0
    %v2331 = vpack.c.bf16 %v2330, %v2329
    %v2332 = vld [vmem:[%s4] sm:$0xf]
    %v2333 = vld [vmem:[%s4 + $0x4] sm:$0xf]
    %v2334 = vld [vmem:[%s4 + $0x8] sm:$0xf]
    %v2335 = vld [vmem:[%s4 + $0xc] sm:$0xf]
    %v2336 = vld [vmem:[%s4 + $0x10] sm:$0xf]
    %v2337 = vld [vmem:[%s4 + $0x14] sm:$0xf]
    %v2338 = vld [vmem:[%s4 + $0x18] sm:$0xf]
    %v2339 = vld [vmem:[%s4 + $0x1c] sm:$0xf]
    %v2340 = vlaneseq
    %v2341 = vshrl.u32 %v2340, 7
    %v2342 = vsub.s32 3, %v2341
    %v2343 = vrot.slane %v148, %v2342
    %v2352 = vunpack.c.l.b16 %v2332
    %v2353 = vunpack.c.l.b16 %v2333
    %v2354 = vunpack.c.l.b16 %v2334
    %v2355 = vunpack.c.l.b16 %v2335
    %v2356 = vunpack.c.l.b16 %v2336
    %v2357 = vunpack.c.l.b16 %v2337
    %v2358 = vunpack.c.l.b16 %v2338
    %v2359 = vunpack.c.l.b16 %v2339
    %v2360 = vpack.c.b16 %v2353, %v2352
    %v2361 = vpack.c.b16 %v2355, %v2354
    %v2362 = vpack.c.b16 %v2357, %v2356
    %v2363 = vpack.c.b16 %v2359, %v2358
    %vm2368 = vcmask 523264
    %v2370 = vsel %vm2368, %v2331, 0
    %2372 = vmatprep.subr.bf16.mxu0 0
    %2373 = vmatpush1.bf16.msra.mxu0 %v2360
    %2374 = vmatprep.subr.bf16.mxu0 0
    %2375 = vmatpush1.bf16.msra.mxu0 %v2361
    %2376 = vmatprep.subr.bf16.mxu0 0
    %2377 = vmatpush1.bf16.msra.mxu0 %v2362
    %2378 = vmatprep.subr.bf16.mxu0 0
    %2379 = vmatpush1.bf16.msra.mxu0 %v2363
    %2380 = vmatprep.subr.bf16.mxu0 0
    %2381 = vmatpush1.bf16.msra.mxu0 0
    %2382 = vmatprep.subr.bf16.mxu0 0
    %2383 = vmatpush1.bf16.msra.mxu0 0
    %2384 = vmatprep.subr.bf16.mxu0 0
    %2385 = vmatpush1.bf16.msra.mxu0 0
    %2386 = vmatprep.subr.bf16.mxu0 0
    %2387 = vmatpush1.bf16.msra.mxu0 0
    %2388 = vmatprep.subr.bf16.mxu0 0
    %2389 = vmatpush1.bf16.msra.mxu0 0
    %2390 = vmatprep.subr.bf16.mxu0 0
    %2391 = vmatpush1.bf16.msra.mxu0 0
    %2392 = vmatprep.subr.bf16.mxu0 0
    %2393 = vmatpush1.bf16.msra.mxu0 0
    %2394 = vmatprep.subr.bf16.mxu0 0
    %2395 = vmatpush1.bf16.msra.mxu0 0
    %2396 = vmatprep.subr.bf16.mxu0 0
    %2397 = vmatpush1.bf16.msra.mxu0 0
    %2398 = vmatprep.subr.bf16.mxu0 0
    %2399 = vmatpush1.bf16.msra.mxu0 0
    %2400 = vmatprep.subr.bf16.mxu0 0
    %2401 = vmatpush1.bf16.msra.mxu0 0
    %2402 = vmatprep.subr.bf16.mxu0 0
    %2403 = vmatpush1.bf16.msra.mxu0 0
    %2404 = vmatprep.mubr.bf16.mxu0 0
    %2405 = vmatmul.mubr.bf16.gmra.mrb[0].mxu0 %v2370
    %v2406 = vpop.f32.mrb[0].mxu0
    %v2407 = vadd.f32 %v2343, %v2406
    %v2408 = vpop.f32.mrb[0].mxu0
    %v2409 = vpop.f32.mrb[0].mxu0
    %v2410 = vadd.f32 %v2343, %v2409
    %v2411 = vpop.f32.mrb[0].mxu0
    %2412 = vdwg.mxu0
    %v2413 = vadd.f32 %v2270, %v2407
    %v2414 = vadd.f32 %v2271, %v2410
    %v2415 = vsel %vm174, %v2413, 0.0
    %2416 = vadd.xlane.f32.xlu0 %v2415
    %v2417 = vpop.xlane.xlu0 %2416
    %v2418 = vsel %vm174, %v2414, 0.0
    %2419 = vadd.xlane.f32.xlu0 %v2418
    %v2420 = vpop.xlane.xlu0 %2419
    %v2421 = vmul.f32 %v2417, %v2239
    %v2422 = vmul.f32 %v2420, %v2239
    %v2423 = vsub.f32 %v2413, %v2421
    %v2424 = vsub.f32 %v2414, %v2422
    %v2425 = vmul.f32 %v2423, %v2423
    %v2426 = vmul.f32 %v2424, %v2424
    %v2427 = vsel %vm174, %v2425, 0.0
    %2428 = vadd.xlane.f32.xlu0 %v2427
    %v2429 = vpop.xlane.xlu0 %2428
    %v2430 = vsel %vm174, %v2426, 0.0
    %2431 = vadd.xlane.f32.xlu0 %v2430
    %v2432 = vpop.xlane.xlu0 %2431
    %v2433 = vmul.f32 %v2429, %v2239
    %v2434 = vmul.f32 %v2432, %v2239
    %v2435 = vadd.f32 %v2433, 1e-05
    %v2436 = vadd.f32 %v2434, 1e-05
    %v2437 = vrsqrt.pop %v2435
    %v2438 = vrsqrt.pop %v2436
    %v2439 = vmul.f32 %v2423, %v2437
    %v2440 = vmul.f32 %v2424, %v2438
    %v2441 = vlaneseq
    %v2442 = vshrl.u32 %v2441, 7
    %v2443 = vsub.s32 6, %v2442
    %v2444 = vrot.slane %v148, %v2443
    %v2445 = vmul.f32 %v2439, %v2444
    %v2446 = vmul.f32 %v2440, %v2444
    %v2447 = vlaneseq
    %v2448 = vshrl.u32 %v2447, 7
    %v2449 = vsub.s32 7, %v2448
    %v2450 = vrot.slane %v148, %v2449
    %v2451 = vadd.f32 %v2445, %v2450
    %v2452 = vadd.f32 %v2446, %v2450
    %s2453 = scalar_lea.vmem %s3, 32
    %v2454 = vld [vmem:[%s2453] sm:$0xff]
    %v2455 = vld [vmem:[%s2453 + $0x8] sm:$0xff]
    %v2456 = vld [vmem:[%s2453 + $0x10] sm:$0xff]
    %v2457 = vld [vmem:[%s2453 + $0x18] sm:$0xff]
    %v2458 = vpack.c.bf16 %v2452, %v2451
    %v2459 = vlaneseq
    %v2460 = vshrl.u32 %v2459, 7
    %v2461 = vsub.s32 0, %v2460
    %v2462 = vrot.slane %v149, %v2461
    %v2467 = vunpack.c.l.b16 %v2454
    %v2468 = vunpack.c.l.b16 %v2455
    %v2469 = vunpack.c.l.b16 %v2456
    %v2470 = vunpack.c.l.b16 %v2457
    %v2471 = vpack.c.b16 %v2468, %v2467
    %v2472 = vpack.c.b16 %v2470, %v2469
    %v2476 = vsel %vm174, %v2458, 0
    %2478 = vmatprep.subr.bf16.mxu0 0
    %2479 = vmatpush1.bf16.msra.mxu0 %v2471
    %2480 = vmatprep.subr.bf16.mxu0 0
    %2481 = vmatpush1.bf16.msra.mxu0 %v2472
    %2482 = vmatprep.subr.bf16.mxu0 0
    %2483 = vmatpush1.bf16.msra.mxu0 0
    %2484 = vmatprep.subr.bf16.mxu0 0
    %2485 = vmatpush1.bf16.msra.mxu0 0
    %2486 = vmatprep.subr.bf16.mxu0 0
    %2487 = vmatpush1.bf16.msra.mxu0 0
    %2488 = vmatprep.subr.bf16.mxu0 0
    %2489 = vmatpush1.bf16.msra.mxu0 0
    %2490 = vmatprep.subr.bf16.mxu0 0
    %2491 = vmatpush1.bf16.msra.mxu0 0
    %2492 = vmatprep.subr.bf16.mxu0 0
    %2493 = vmatpush1.bf16.msra.mxu0 0
    %2494 = vmatprep.subr.bf16.mxu0 0
    %2495 = vmatpush1.bf16.msra.mxu0 0
    %2496 = vmatprep.subr.bf16.mxu0 0
    %2497 = vmatpush1.bf16.msra.mxu0 0
    %2498 = vmatprep.subr.bf16.mxu0 0
    %2499 = vmatpush1.bf16.msra.mxu0 0
    %2500 = vmatprep.subr.bf16.mxu0 0
    %2501 = vmatpush1.bf16.msra.mxu0 0
    %2502 = vmatprep.subr.bf16.mxu0 0
    %2503 = vmatpush1.bf16.msra.mxu0 0
    %2504 = vmatprep.subr.bf16.mxu0 0
    %2505 = vmatpush1.bf16.msra.mxu0 0
    %2506 = vmatprep.subr.bf16.mxu0 0
    %2507 = vmatpush1.bf16.msra.mxu0 0
    %2508 = vmatprep.subr.bf16.mxu0 0
    %2509 = vmatpush1.bf16.msra.mxu0 0
    %2510 = vmatprep.mubr.bf16.mxu0 0
    %2511 = vmatmul.mubr.bf16.gmra.mrb[0].mxu0 %v2476
    %v2512 = vpop.f32.mrb[0].mxu0
    %v2513 = vadd.f32 %v2462, %v2512
    %v2514 = vpop.f32.mrb[0].mxu0
    %v2515 = vpop.f32.mrb[0].mxu0
    %v2516 = vadd.f32 %v2462, %v2515
    %v2517 = vpop.f32.mrb[0].mxu0
    %2518 = vdwg.mxu0
    %2521 = vrot.lane.b32.xlu0 %v2513, 120
    %v2522 = vpop.permute.xlu0 %2521
    %2523 = vrot.lane.b32.xlu0 %v2516, 120
    %v2524 = vpop.permute.xlu0 %2523
    %2527 = vrot.lane.b32.xlu0 %v2513, 112
    %v2528 = vpop.permute.xlu0 %2527
    %2529 = vrot.lane.b32.xlu0 %v2516, 112
    %v2530 = vpop.permute.xlu0 %2529
    %2533 = vrot.lane.b32.xlu0 %v2513, 104
    %v2534 = vpop.permute.xlu0 %2533
    %2535 = vrot.lane.b32.xlu0 %v2516, 104
    %v2536 = vpop.permute.xlu0 %2535
    %2539 = vrot.lane.b32.xlu0 %v2513, 96
    %v2540 = vpop.permute.xlu0 %2539
    %2541 = vrot.lane.b32.xlu0 %v2516, 96
    %v2542 = vpop.permute.xlu0 %2541
    %2545 = vrot.lane.b32.xlu0 %v2513, 88
    %v2546 = vpop.permute.xlu0 %2545
    %2547 = vrot.lane.b32.xlu0 %v2516, 88
    %v2548 = vpop.permute.xlu0 %2547
    %2551 = vrot.lane.b32.xlu0 %v2513, 80
    %v2552 = vpop.permute.xlu0 %2551
    %2553 = vrot.lane.b32.xlu0 %v2516, 80
    %v2554 = vpop.permute.xlu0 %2553
    %2557 = vrot.lane.b32.xlu0 %v2513, 72
    %v2558 = vpop.permute.xlu0 %2557
    %2559 = vrot.lane.b32.xlu0 %v2516, 72
    %v2560 = vpop.permute.xlu0 %2559
    %2563 = vrot.lane.b32.xlu0 %v2513, 64
    %v2564 = vpop.permute.xlu0 %2563
    %2565 = vrot.lane.b32.xlu0 %v2516, 64
    %v2566 = vpop.permute.xlu0 %2565
    %2569 = vrot.lane.b32.xlu0 %v2513, 56
    %v2570 = vpop.permute.xlu0 %2569
    %2571 = vrot.lane.b32.xlu0 %v2516, 56
    %v2572 = vpop.permute.xlu0 %2571
    %2575 = vrot.lane.b32.xlu0 %v2513, 48
    %v2576 = vpop.permute.xlu0 %2575
    %2577 = vrot.lane.b32.xlu0 %v2516, 48
    %v2578 = vpop.permute.xlu0 %2577
    %2581 = vrot.lane.b32.xlu0 %v2513, 40
    %v2582 = vpop.permute.xlu0 %2581
    %2583 = vrot.lane.b32.xlu0 %v2516, 40
    %v2584 = vpop.permute.xlu0 %2583
    %v2587 = vcombine.low %v2513, %v2528
    %v2588 = vcombine.high %v2513, %v2528
    %v2590 = vunpack.c.l.s4 1983009808
    %v2591 = vunpack.c.0.s8 %v2590
    %v2592 = vlaneseq
    %v2593 = vshrl.u32 %v2592, 7
    %v2594 = vsub.s32 %v2591, %v2593
    %v2595 = vrot.slane %v2587, %v2594
    %v2597 = vunpack.c.l.s4 1983009808
    %v2598 = vunpack.c.0.s8 %v2597
    %v2599 = vlaneseq
    %v2600 = vshrl.u32 %v2599, 7
    %v2601 = vsub.s32 %v2598, %v2600
    %v2602 = vrot.slane %v2588, %v2601
    %v2603 = vcombine.low %v2522, %v2534
    %v2604 = vcombine.high %v2522, %v2534
    %v2606 = vunpack.c.l.s4 1983009808
    %v2607 = vunpack.c.0.s8 %v2606
    %v2608 = vlaneseq
    %v2609 = vshrl.u32 %v2608, 7
    %v2610 = vsub.s32 %v2607, %v2609
    %v2611 = vrot.slane %v2603, %v2610
    %v2613 = vunpack.c.l.s4 1983009808
    %v2614 = vunpack.c.0.s8 %v2613
    %v2615 = vlaneseq
    %v2616 = vshrl.u32 %v2615, 7
    %v2617 = vsub.s32 %v2614, %v2616
    %v2618 = vrot.slane %v2604, %v2617
    %v2619 = vcombine.low %v2540, %v2552
    %v2620 = vcombine.high %v2540, %v2552
    %v2622 = vunpack.c.l.s4 1983009808
    %v2623 = vunpack.c.0.s8 %v2622
    %v2624 = vlaneseq
    %v2625 = vshrl.u32 %v2624, 7
    %v2626 = vsub.s32 %v2623, %v2625
    %v2627 = vrot.slane %v2619, %v2626
    %v2629 = vunpack.c.l.s4 1983009808
    %v2630 = vunpack.c.0.s8 %v2629
    %v2631 = vlaneseq
    %v2632 = vshrl.u32 %v2631, 7
    %v2633 = vsub.s32 %v2630, %v2632
    %v2634 = vrot.slane %v2620, %v2633
    %v2635 = vcombine.low %v2546, %v2558
    %v2636 = vcombine.high %v2546, %v2558
    %v2638 = vunpack.c.l.s4 1983009808
    %v2639 = vunpack.c.0.s8 %v2638
    %v2640 = vlaneseq
    %v2641 = vshrl.u32 %v2640, 7
    %v2642 = vsub.s32 %v2639, %v2641
    %v2643 = vrot.slane %v2635, %v2642
    %v2645 = vunpack.c.l.s4 1983009808
    %v2646 = vunpack.c.0.s8 %v2645
    %v2647 = vlaneseq
    %v2648 = vshrl.u32 %v2647, 7
    %v2649 = vsub.s32 %v2646, %v2648
    %v2650 = vrot.slane %v2636, %v2649
    %v2651 = vcombine.low %v2595, %v2611
    %v2652 = vcombine.high %v2595, %v2611
    %v2654 = vunpack.c.l.s4 1934713408
    %v2655 = vunpack.c.0.s8 %v2654
    %v2656 = vlaneseq
    %v2657 = vshrl.u32 %v2656, 7
    %v2658 = vsub.s32 %v2655, %v2657
    %v2659 = vrot.slane %v2651, %v2658
    %v2661 = vunpack.c.l.s4 1934713408
    %v2662 = vunpack.c.0.s8 %v2661
    %v2663 = vlaneseq
    %v2664 = vshrl.u32 %v2663, 7
    %v2665 = vsub.s32 %v2662, %v2664
    %v2666 = vrot.slane %v2652, %v2665
    %v2667 = vcombine.low %v2602, %v2618
    %v2668 = vcombine.high %v2602, %v2618
    %v2670 = vunpack.c.l.s4 1934713408
    %v2671 = vunpack.c.0.s8 %v2670
    %v2672 = vlaneseq
    %v2673 = vshrl.u32 %v2672, 7
    %v2674 = vsub.s32 %v2671, %v2673
    %v2675 = vrot.slane %v2667, %v2674
    %v2677 = vunpack.c.l.s4 1934713408
    %v2678 = vunpack.c.0.s8 %v2677
    %v2679 = vlaneseq
    %v2680 = vshrl.u32 %v2679, 7
    %v2681 = vsub.s32 %v2678, %v2680
    %v2682 = vrot.slane %v2668, %v2681
    %v2683 = vcombine.low %v2627, %v2643
    %v2684 = vcombine.high %v2627, %v2643
    %v2686 = vunpack.c.l.s4 1934713408
    %v2687 = vunpack.c.0.s8 %v2686
    %v2688 = vlaneseq
    %v2689 = vshrl.u32 %v2688, 7
    %v2690 = vsub.s32 %v2687, %v2689
    %v2691 = vrot.slane %v2683, %v2690
    %v2693 = vunpack.c.l.s4 1934713408
    %v2694 = vunpack.c.0.s8 %v2693
    %v2695 = vlaneseq
    %v2696 = vshrl.u32 %v2695, 7
    %v2697 = vsub.s32 %v2694, %v2696
    %v2698 = vrot.slane %v2684, %v2697
    %v2699 = vcombine.low %v2634, %v2650
    %v2700 = vcombine.high %v2634, %v2650
    %v2702 = vunpack.c.l.s4 1934713408
    %v2703 = vunpack.c.0.s8 %v2702
    %v2704 = vlaneseq
    %v2705 = vshrl.u32 %v2704, 7
    %v2706 = vsub.s32 %v2703, %v2705
    %v2707 = vrot.slane %v2699, %v2706
    %v2709 = vunpack.c.l.s4 1934713408
    %v2710 = vunpack.c.0.s8 %v2709
    %v2711 = vlaneseq
    %v2712 = vshrl.u32 %v2711, 7
    %v2713 = vsub.s32 %v2710, %v2712
    %v2714 = vrot.slane %v2700, %v2713
    %v2715 = vcombine.low %v2659, %v2691
    %v2716 = vcombine.high %v2659, %v2691
    %v2717 = vcombine.low %v2666, %v2698
    %v2718 = vcombine.high %v2666, %v2698
    %v2719 = vcombine.low %v2675, %v2707
    %v2720 = vcombine.high %v2675, %v2707
    %v2721 = vcombine.low %v2682, %v2714
    %v2722 = vcombine.high %v2682, %v2714
    %v2723 = vcombine.low %v2564, %v2576
    %v2724 = vcombine.high %v2564, %v2576
    %v2726 = vunpack.c.l.s4 1983009808
    %v2727 = vunpack.c.0.s8 %v2726
    %v2728 = vlaneseq
    %v2729 = vshrl.u32 %v2728, 7
    %v2730 = vsub.s32 %v2727, %v2729
    %v2731 = vrot.slane %v2723, %v2730
    %v2733 = vunpack.c.l.s4 1983009808
    %v2734 = vunpack.c.0.s8 %v2733
    %v2735 = vlaneseq
    %v2736 = vshrl.u32 %v2735, 7
    %v2737 = vsub.s32 %v2734, %v2736
    %v2738 = vrot.slane %v2724, %v2737
    %v2739 = vcombine.low %v2570, %v2582
    %v2740 = vcombine.high %v2570, %v2582
    %v2742 = vunpack.c.l.s4 1983009808
    %v2743 = vunpack.c.0.s8 %v2742
    %v2744 = vlaneseq
    %v2745 = vshrl.u32 %v2744, 7
    %v2746 = vsub.s32 %v2743, %v2745
    %v2747 = vrot.slane %v2739, %v2746
    %v2749 = vunpack.c.l.s4 1983009808
    %v2750 = vunpack.c.0.s8 %v2749
    %v2751 = vlaneseq
    %v2752 = vshrl.u32 %v2751, 7
    %v2753 = vsub.s32 %v2750, %v2752
    %v2754 = vrot.slane %v2740, %v2753
    %v2755 = vcombine.low %v2731, %v2747
    %v2756 = vcombine.high %v2731, %v2747
    %v2758 = vunpack.c.l.s4 1934713408
    %v2759 = vunpack.c.0.s8 %v2758
    %v2760 = vlaneseq
    %v2761 = vshrl.u32 %v2760, 7
    %v2762 = vsub.s32 %v2759, %v2761
    %v2763 = vrot.slane %v2755, %v2762
    %v2765 = vunpack.c.l.s4 1934713408
    %v2766 = vunpack.c.0.s8 %v2765
    %v2767 = vlaneseq
    %v2768 = vshrl.u32 %v2767, 7
    %v2769 = vsub.s32 %v2766, %v2768
    %v2770 = vrot.slane %v2756, %v2769
    %v2771 = vcombine.low %v2738, %v2754
    %v2772 = vcombine.high %v2738, %v2754
    %v2774 = vunpack.c.l.s4 1934713408
    %v2775 = vunpack.c.0.s8 %v2774
    %v2776 = vlaneseq
    %v2777 = vshrl.u32 %v2776, 7
    %v2778 = vsub.s32 %v2775, %v2777
    %v2779 = vrot.slane %v2771, %v2778
    %v2781 = vunpack.c.l.s4 1934713408
    %v2782 = vunpack.c.0.s8 %v2781
    %v2783 = vlaneseq
    %v2784 = vshrl.u32 %v2783, 7
    %v2785 = vsub.s32 %v2782, %v2784
    %v2786 = vrot.slane %v2772, %v2785
    %v2787 = vcombine.high %v2763, 0.0
    %v2788 = vcombine.high %v2770, 0.0
    %v2789 = vcombine.high %v2779, 0.0
    %v2790 = vcombine.high %v2786, 0.0
    %v2791 = vcombine.low %v2516, %v2530
    %v2792 = vcombine.high %v2516, %v2530
    %v2794 = vunpack.c.l.s4 1983009808
    %v2795 = vunpack.c.0.s8 %v2794
    %v2796 = vlaneseq
    %v2797 = vshrl.u32 %v2796, 7
    %v2798 = vsub.s32 %v2795, %v2797
    %v2799 = vrot.slane %v2791, %v2798
    %v2801 = vunpack.c.l.s4 1983009808
    %v2802 = vunpack.c.0.s8 %v2801
    %v2803 = vlaneseq
    %v2804 = vshrl.u32 %v2803, 7
    %v2805 = vsub.s32 %v2802, %v2804
    %v2806 = vrot.slane %v2792, %v2805
    %v2807 = vcombine.low %v2524, %v2536
    %v2808 = vcombine.high %v2524, %v2536
    %v2810 = vunpack.c.l.s4 1983009808
    %v2811 = vunpack.c.0.s8 %v2810
    %v2812 = vlaneseq
    %v2813 = vshrl.u32 %v2812, 7
    %v2814 = vsub.s32 %v2811, %v2813
    %v2815 = vrot.slane %v2807, %v2814
    %v2817 = vunpack.c.l.s4 1983009808
    %v2818 = vunpack.c.0.s8 %v2817
    %v2819 = vlaneseq
    %v2820 = vshrl.u32 %v2819, 7
    %v2821 = vsub.s32 %v2818, %v2820
    %v2822 = vrot.slane %v2808, %v2821
    %v2823 = vcombine.low %v2542, %v2554
    %v2824 = vcombine.high %v2542, %v2554
    %v2826 = vunpack.c.l.s4 1983009808
    %v2827 = vunpack.c.0.s8 %v2826
    %v2828 = vlaneseq
    %v2829 = vshrl.u32 %v2828, 7
    %v2830 = vsub.s32 %v2827, %v2829
    %v2831 = vrot.slane %v2823, %v2830
    %v2833 = vunpack.c.l.s4 1983009808
    %v2834 = vunpack.c.0.s8 %v2833
    %v2835 = vlaneseq
    %v2836 = vshrl.u32 %v2835, 7
    %v2837 = vsub.s32 %v2834, %v2836
    %v2838 = vrot.slane %v2824, %v2837
    %v2839 = vcombine.low %v2548, %v2560
    %v2840 = vcombine.high %v2548, %v2560
    %v2842 = vunpack.c.l.s4 1983009808
    %v2843 = vunpack.c.0.s8 %v2842
    %v2844 = vlaneseq
    %v2845 = vshrl.u32 %v2844, 7
    %v2846 = vsub.s32 %v2843, %v2845
    %v2847 = vrot.slane %v2839, %v2846
    %v2849 = vunpack.c.l.s4 1983009808
    %v2850 = vunpack.c.0.s8 %v2849
    %v2851 = vlaneseq
    %v2852 = vshrl.u32 %v2851, 7
    %v2853 = vsub.s32 %v2850, %v2852
    %v2854 = vrot.slane %v2840, %v2853
    %v2855 = vcombine.low %v2799, %v2815
    %v2856 = vcombine.high %v2799, %v2815
    %v2858 = vunpack.c.l.s4 1934713408
    %v2859 = vunpack.c.0.s8 %v2858
    %v2860 = vlaneseq
    %v2861 = vshrl.u32 %v2860, 7
    %v2862 = vsub.s32 %v2859, %v2861
    %v2863 = vrot.slane %v2855, %v2862
    %v2865 = vunpack.c.l.s4 1934713408
    %v2866 = vunpack.c.0.s8 %v2865
    %v2867 = vlaneseq
    %v2868 = vshrl.u32 %v2867, 7
    %v2869 = vsub.s32 %v2866, %v2868
    %v2870 = vrot.slane %v2856, %v2869
    %v2871 = vcombine.low %v2806, %v2822
    %v2872 = vcombine.high %v2806, %v2822
    %v2874 = vunpack.c.l.s4 1934713408
    %v2875 = vunpack.c.0.s8 %v2874
    %v2876 = vlaneseq
    %v2877 = vshrl.u32 %v2876, 7
    %v2878 = vsub.s32 %v2875, %v2877
    %v2879 = vrot.slane %v2871, %v2878
    %v2881 = vunpack.c.l.s4 1934713408
    %v2882 = vunpack.c.0.s8 %v2881
    %v2883 = vlaneseq
    %v2884 = vshrl.u32 %v2883, 7
    %v2885 = vsub.s32 %v2882, %v2884
    %v2886 = vrot.slane %v2872, %v2885
    %v2887 = vcombine.low %v2831, %v2847
    %v2888 = vcombine.high %v2831, %v2847
    %v2890 = vunpack.c.l.s4 1934713408
    %v2891 = vunpack.c.0.s8 %v2890
    %v2892 = vlaneseq
    %v2893 = vshrl.u32 %v2892, 7
    %v2894 = vsub.s32 %v2891, %v2893
    %v2895 = vrot.slane %v2887, %v2894
    %v2897 = vunpack.c.l.s4 1934713408
    %v2898 = vunpack.c.0.s8 %v2897
    %v2899 = vlaneseq
    %v2900 = vshrl.u32 %v2899, 7
    %v2901 = vsub.s32 %v2898, %v2900
    %v2902 = vrot.slane %v2888, %v2901
    %v2903 = vcombine.low %v2838, %v2854
    %v2904 = vcombine.high %v2838, %v2854
    %v2906 = vunpack.c.l.s4 1934713408
    %v2907 = vunpack.c.0.s8 %v2906
    %v2908 = vlaneseq
    %v2909 = vshrl.u32 %v2908, 7
    %v2910 = vsub.s32 %v2907, %v2909
    %v2911 = vrot.slane %v2903, %v2910
    %v2913 = vunpack.c.l.s4 1934713408
    %v2914 = vunpack.c.0.s8 %v2913
    %v2915 = vlaneseq
    %v2916 = vshrl.u32 %v2915, 7
    %v2917 = vsub.s32 %v2914, %v2916
    %v2918 = vrot.slane %v2904, %v2917
    %v2919 = vcombine.low %v2863, %v2895
    %v2920 = vcombine.high %v2863, %v2895
    %v2921 = vcombine.low %v2870, %v2902
    %v2922 = vcombine.high %v2870, %v2902
    %v2923 = vcombine.low %v2879, %v2911
    %v2924 = vcombine.high %v2879, %v2911
    %v2925 = vcombine.low %v2886, %v2918
    %v2926 = vcombine.high %v2886, %v2918
    %v2927 = vcombine.low %v2566, %v2578
    %v2928 = vcombine.high %v2566, %v2578
    %v2930 = vunpack.c.l.s4 1983009808
    %v2931 = vunpack.c.0.s8 %v2930
    %v2932 = vlaneseq
    %v2933 = vshrl.u32 %v2932, 7
    %v2934 = vsub.s32 %v2931, %v2933
    %v2935 = vrot.slane %v2927, %v2934
    %v2937 = vunpack.c.l.s4 1983009808
    %v2938 = vunpack.c.0.s8 %v2937
    %v2939 = vlaneseq
    %v2940 = vshrl.u32 %v2939, 7
    %v2941 = vsub.s32 %v2938, %v2940
    %v2942 = vrot.slane %v2928, %v2941
    %v2943 = vcombine.low %v2572, %v2584
    %v2944 = vcombine.high %v2572, %v2584
    %v2946 = vunpack.c.l.s4 1983009808
    %v2947 = vunpack.c.0.s8 %v2946
    %v2948 = vlaneseq
    %v2949 = vshrl.u32 %v2948, 7
    %v2950 = vsub.s32 %v2947, %v2949
    %v2951 = vrot.slane %v2943, %v2950
    %v2953 = vunpack.c.l.s4 1983009808
    %v2954 = vunpack.c.0.s8 %v2953
    %v2955 = vlaneseq
    %v2956 = vshrl.u32 %v2955, 7
    %v2957 = vsub.s32 %v2954, %v2956
    %v2958 = vrot.slane %v2944, %v2957
    %v2959 = vcombine.low %v2935, %v2951
    %v2960 = vcombine.high %v2935, %v2951
    %v2962 = vunpack.c.l.s4 1934713408
    %v2963 = vunpack.c.0.s8 %v2962
    %v2964 = vlaneseq
    %v2965 = vshrl.u32 %v2964, 7
    %v2966 = vsub.s32 %v2963, %v2965
    %v2967 = vrot.slane %v2959, %v2966
    %v2969 = vunpack.c.l.s4 1934713408
    %v2970 = vunpack.c.0.s8 %v2969
    %v2971 = vlaneseq
    %v2972 = vshrl.u32 %v2971, 7
    %v2973 = vsub.s32 %v2970, %v2972
    %v2974 = vrot.slane %v2960, %v2973
    %v2975 = vcombine.low %v2942, %v2958
    %v2976 = vcombine.high %v2942, %v2958
    %v2978 = vunpack.c.l.s4 1934713408
    %v2979 = vunpack.c.0.s8 %v2978
    %v2980 = vlaneseq
    %v2981 = vshrl.u32 %v2980, 7
    %v2982 = vsub.s32 %v2979, %v2981
    %v2983 = vrot.slane %v2975, %v2982
    %v2985 = vunpack.c.l.s4 1934713408
    %v2986 = vunpack.c.0.s8 %v2985
    %v2987 = vlaneseq
    %v2988 = vshrl.u32 %v2987, 7
    %v2989 = vsub.s32 %v2986, %v2988
    %v2990 = vrot.slane %v2976, %v2989
    %v2991 = vcombine.high %v2967, 0.0
    %v2992 = vcombine.high %v2974, 0.0
    %v2993 = vcombine.high %v2983, 0.0
    %v2994 = vcombine.high %v2990, 0.0
    %v2995 = vcombine.low %v2715, %v2717
    %v2996 = vcombine.high %v2715, %v2717
    %v2998 = vunpack.c.l.s4 1983009808
    %v2999 = vunpack.c.0.s8 %v2998
    %v3000 = vlaneseq
    %v3001 = vshrl.u32 %v3000, 7
    %v3002 = vsub.s32 %v2999, %v3001
    %v3003 = vrot.slane %v2995, %v3002
    %v3005 = vunpack.c.l.s4 1983009808
    %v3006 = vunpack.c.0.s8 %v3005
    %v3007 = vlaneseq
    %v3008 = vshrl.u32 %v3007, 7
    %v3009 = vsub.s32 %v3006, %v3008
    %v3010 = vrot.slane %v2996, %v3009
    %v3011 = vcombine.low %v2716, %v2718
    %v3012 = vcombine.high %v2716, %v2718
    %v3014 = vunpack.c.l.s4 1983009808
    %v3015 = vunpack.c.0.s8 %v3014
    %v3016 = vlaneseq
    %v3017 = vshrl.u32 %v3016, 7
    %v3018 = vsub.s32 %v3015, %v3017
    %v3019 = vrot.slane %v3011, %v3018
    %v3021 = vunpack.c.l.s4 1983009808
    %v3022 = vunpack.c.0.s8 %v3021
    %v3023 = vlaneseq
    %v3024 = vshrl.u32 %v3023, 7
    %v3025 = vsub.s32 %v3022, %v3024
    %v3026 = vrot.slane %v3012, %v3025
    %v3027 = vcombine.low %v2719, %v2721
    %v3028 = vcombine.high %v2719, %v2721
    %v3030 = vunpack.c.l.s4 1983009808
    %v3031 = vunpack.c.0.s8 %v3030
    %v3032 = vlaneseq
    %v3033 = vshrl.u32 %v3032, 7
    %v3034 = vsub.s32 %v3031, %v3033
    %v3035 = vrot.slane %v3027, %v3034
    %v3037 = vunpack.c.l.s4 1983009808
    %v3038 = vunpack.c.0.s8 %v3037
    %v3039 = vlaneseq
    %v3040 = vshrl.u32 %v3039, 7
    %v3041 = vsub.s32 %v3038, %v3040
    %v3042 = vrot.slane %v3028, %v3041
    %v3043 = vcombine.low %v2720, %v2722
    %v3044 = vcombine.high %v2720, %v2722
    %v3046 = vunpack.c.l.s4 1983009808
    %v3047 = vunpack.c.0.s8 %v3046
    %v3048 = vlaneseq
    %v3049 = vshrl.u32 %v3048, 7
    %v3050 = vsub.s32 %v3047, %v3049
    %v3051 = vrot.slane %v3043, %v3050
    %v3053 = vunpack.c.l.s4 1983009808
    %v3054 = vunpack.c.0.s8 %v3053
    %v3055 = vlaneseq
    %v3056 = vshrl.u32 %v3055, 7
    %v3057 = vsub.s32 %v3054, %v3056
    %v3058 = vrot.slane %v3044, %v3057
    %v3059 = vcombine.low %v3003, %v3019
    %v3060 = vcombine.high %v3003, %v3019
    %v3062 = vunpack.c.l.s4 1934713408
    %v3063 = vunpack.c.0.s8 %v3062
    %v3064 = vlaneseq
    %v3065 = vshrl.u32 %v3064, 7
    %v3066 = vsub.s32 %v3063, %v3065
    %v3067 = vrot.slane %v3059, %v3066
    %v3069 = vunpack.c.l.s4 1934713408
    %v3070 = vunpack.c.0.s8 %v3069
    %v3071 = vlaneseq
    %v3072 = vshrl.u32 %v3071, 7
    %v3073 = vsub.s32 %v3070, %v3072
    %v3074 = vrot.slane %v3060, %v3073
    %v3075 = vcombine.low %v3010, %v3026
    %v3076 = vcombine.high %v3010, %v3026
    %v3078 = vunpack.c.l.s4 1934713408
    %v3079 = vunpack.c.0.s8 %v3078
    %v3080 = vlaneseq
    %v3081 = vshrl.u32 %v3080, 7
    %v3082 = vsub.s32 %v3079, %v3081
    %v3083 = vrot.slane %v3075, %v3082
    %v3085 = vunpack.c.l.s4 1934713408
    %v3086 = vunpack.c.0.s8 %v3085
    %v3087 = vlaneseq
    %v3088 = vshrl.u32 %v3087, 7
    %v3089 = vsub.s32 %v3086, %v3088
    %v3090 = vrot.slane %v3076, %v3089
    %v3091 = vcombine.low %v3035, %v3051
    %v3092 = vcombine.high %v3035, %v3051
    %v3094 = vunpack.c.l.s4 1934713408
    %v3095 = vunpack.c.0.s8 %v3094
    %v3096 = vlaneseq
    %v3097 = vshrl.u32 %v3096, 7
    %v3098 = vsub.s32 %v3095, %v3097
    %v3099 = vrot.slane %v3091, %v3098
    %v3101 = vunpack.c.l.s4 1934713408
    %v3102 = vunpack.c.0.s8 %v3101
    %v3103 = vlaneseq
    %v3104 = vshrl.u32 %v3103, 7
    %v3105 = vsub.s32 %v3102, %v3104
    %v3106 = vrot.slane %v3092, %v3105
    %v3107 = vcombine.low %v3042, %v3058
    %v3108 = vcombine.high %v3042, %v3058
    %v3110 = vunpack.c.l.s4 1934713408
    %v3111 = vunpack.c.0.s8 %v3110
    %v3112 = vlaneseq
    %v3113 = vshrl.u32 %v3112, 7
    %v3114 = vsub.s32 %v3111, %v3113
    %v3115 = vrot.slane %v3107, %v3114
    %v3117 = vunpack.c.l.s4 1934713408
    %v3118 = vunpack.c.0.s8 %v3117
    %v3119 = vlaneseq
    %v3120 = vshrl.u32 %v3119, 7
    %v3121 = vsub.s32 %v3118, %v3120
    %v3122 = vrot.slane %v3108, %v3121
    %v3123 = vcombine.low %v3067, %v3099
    %v3124 = vcombine.high %v3067, %v3099
    %v3125 = vcombine.low %v3074, %v3106
    %v3126 = vcombine.high %v3074, %v3106
    %v3127 = vcombine.low %v3083, %v3115
    %v3128 = vcombine.high %v3083, %v3115
    %v3129 = vcombine.low %v3090, %v3122
    %v3130 = vcombine.high %v3090, %v3122
    %v3131 = vcombine.low %v2919, %v2921
    %v3132 = vcombine.high %v2919, %v2921
    %v3134 = vunpack.c.l.s4 1983009808
    %v3135 = vunpack.c.0.s8 %v3134
    %v3136 = vlaneseq
    %v3137 = vshrl.u32 %v3136, 7
    %v3138 = vsub.s32 %v3135, %v3137
    %v3139 = vrot.slane %v3131, %v3138
    %v3141 = vunpack.c.l.s4 1983009808
    %v3142 = vunpack.c.0.s8 %v3141
    %v3143 = vlaneseq
    %v3144 = vshrl.u32 %v3143, 7
    %v3145 = vsub.s32 %v3142, %v3144
    %v3146 = vrot.slane %v3132, %v3145
    %v3147 = vcombine.low %v2920, %v2922
    %v3148 = vcombine.high %v2920, %v2922
    %v3150 = vunpack.c.l.s4 1983009808
    %v3151 = vunpack.c.0.s8 %v3150
    %v3152 = vlaneseq
    %v3153 = vshrl.u32 %v3152, 7
    %v3154 = vsub.s32 %v3151, %v3153
    %v3155 = vrot.slane %v3147, %v3154
    %v3157 = vunpack.c.l.s4 1983009808
    %v3158 = vunpack.c.0.s8 %v3157
    %v3159 = vlaneseq
    %v3160 = vshrl.u32 %v3159, 7
    %v3161 = vsub.s32 %v3158, %v3160
    %v3162 = vrot.slane %v3148, %v3161
    %v3163 = vcombine.low %v2923, %v2925
    %v3164 = vcombine.high %v2923, %v2925
    %v3166 = vunpack.c.l.s4 1983009808
    %v3167 = vunpack.c.0.s8 %v3166
    %v3168 = vlaneseq
    %v3169 = vshrl.u32 %v3168, 7
    %v3170 = vsub.s32 %v3167, %v3169
    %v3171 = vrot.slane %v3163, %v3170
    %v3173 = vunpack.c.l.s4 1983009808
    %v3174 = vunpack.c.0.s8 %v3173
    %v3175 = vlaneseq
    %v3176 = vshrl.u32 %v3175, 7
    %v3177 = vsub.s32 %v3174, %v3176
    %v3178 = vrot.slane %v3164, %v3177
    %v3179 = vcombine.low %v2924, %v2926
    %v3180 = vcombine.high %v2924, %v2926
    %v3182 = vunpack.c.l.s4 1983009808
    %v3183 = vunpack.c.0.s8 %v3182
    %v3184 = vlaneseq
    %v3185 = vshrl.u32 %v3184, 7
    %v3186 = vsub.s32 %v3183, %v3185
    %v3187 = vrot.slane %v3179, %v3186
    %v3189 = vunpack.c.l.s4 1983009808
    %v3190 = vunpack.c.0.s8 %v3189
    %v3191 = vlaneseq
    %v3192 = vshrl.u32 %v3191, 7
    %v3193 = vsub.s32 %v3190, %v3192
    %v3194 = vrot.slane %v3180, %v3193
    %v3195 = vcombine.low %v3139, %v3155
    %v3196 = vcombine.high %v3139, %v3155
    %v3198 = vunpack.c.l.s4 1934713408
    %v3199 = vunpack.c.0.s8 %v3198
    %v3200 = vlaneseq
    %v3201 = vshrl.u32 %v3200, 7
    %v3202 = vsub.s32 %v3199, %v3201
    %v3203 = vrot.slane %v3195, %v3202
    %v3205 = vunpack.c.l.s4 1934713408
    %v3206 = vunpack.c.0.s8 %v3205
    %v3207 = vlaneseq
    %v3208 = vshrl.u32 %v3207, 7
    %v3209 = vsub.s32 %v3206, %v3208
    %v3210 = vrot.slane %v3196, %v3209
    %v3211 = vcombine.low %v3146, %v3162
    %v3212 = vcombine.high %v3146, %v3162
    %v3214 = vunpack.c.l.s4 1934713408
    %v3215 = vunpack.c.0.s8 %v3214
    %v3216 = vlaneseq
    %v3217 = vshrl.u32 %v3216, 7
    %v3218 = vsub.s32 %v3215, %v3217
    %v3219 = vrot.slane %v3211, %v3218
    %v3221 = vunpack.c.l.s4 1934713408
    %v3222 = vunpack.c.0.s8 %v3221
    %v3223 = vlaneseq
    %v3224 = vshrl.u32 %v3223, 7
    %v3225 = vsub.s32 %v3222, %v3224
    %v3226 = vrot.slane %v3212, %v3225
    %v3227 = vcombine.low %v3171, %v3187
    %v3228 = vcombine.high %v3171, %v3187
    %v3230 = vunpack.c.l.s4 1934713408
    %v3231 = vunpack.c.0.s8 %v3230
    %v3232 = vlaneseq
    %v3233 = vshrl.u32 %v3232, 7
    %v3234 = vsub.s32 %v3231, %v3233
    %v3235 = vrot.slane %v3227, %v3234
    %v3237 = vunpack.c.l.s4 1934713408
    %v3238 = vunpack.c.0.s8 %v3237
    %v3239 = vlaneseq
    %v3240 = vshrl.u32 %v3239, 7
    %v3241 = vsub.s32 %v3238, %v3240
    %v3242 = vrot.slane %v3228, %v3241
    %v3243 = vcombine.low %v3178, %v3194
    %v3244 = vcombine.high %v3178, %v3194
    %v3246 = vunpack.c.l.s4 1934713408
    %v3247 = vunpack.c.0.s8 %v3246
    %v3248 = vlaneseq
    %v3249 = vshrl.u32 %v3248, 7
    %v3250 = vsub.s32 %v3247, %v3249
    %v3251 = vrot.slane %v3243, %v3250
    %v3253 = vunpack.c.l.s4 1934713408
    %v3254 = vunpack.c.0.s8 %v3253
    %v3255 = vlaneseq
    %v3256 = vshrl.u32 %v3255, 7
    %v3257 = vsub.s32 %v3254, %v3256
    %v3258 = vrot.slane %v3244, %v3257
    %v3259 = vcombine.low %v3203, %v3235
    %v3260 = vcombine.high %v3203, %v3235
    %v3261 = vcombine.low %v3210, %v3242
    %v3262 = vcombine.high %v3210, %v3242
    %v3263 = vcombine.low %v3219, %v3251
    %v3264 = vcombine.high %v3219, %v3251
    %v3265 = vcombine.low %v3226, %v3258
    %v3266 = vcombine.high %v3226, %v3258
    %v3267 = vcombine.low %v2763, %v2770
    %v3269 = vunpack.c.l.s4 1983009808
    %v3270 = vunpack.c.0.s8 %v3269
    %v3271 = vlaneseq
    %v3272 = vshrl.u32 %v3271, 7
    %v3273 = vsub.s32 %v3270, %v3272
    %v3274 = vrot.slane %v3267, %v3273
    %v3275 = vcombine.low %v2787, %v2788
    %v3277 = vunpack.c.l.s4 1983009808
    %v3278 = vunpack.c.0.s8 %v3277
    %v3279 = vlaneseq
    %v3280 = vshrl.u32 %v3279, 7
    %v3281 = vsub.s32 %v3278, %v3280
    %v3282 = vrot.slane %v3275, %v3281
    %v3283 = vcombine.low %v2779, %v2786
    %v3285 = vunpack.c.l.s4 1983009808
    %v3286 = vunpack.c.0.s8 %v3285
    %v3287 = vlaneseq
    %v3288 = vshrl.u32 %v3287, 7
    %v3289 = vsub.s32 %v3286, %v3288
    %v3290 = vrot.slane %v3283, %v3289
    %v3291 = vcombine.low %v2789, %v2790
    %v3293 = vunpack.c.l.s4 1983009808
    %v3294 = vunpack.c.0.s8 %v3293
    %v3295 = vlaneseq
    %v3296 = vshrl.u32 %v3295, 7
    %v3297 = vsub.s32 %v3294, %v3296
    %v3298 = vrot.slane %v3291, %v3297
    %v3299 = vcombine.low %v3274, %v3282
    %v3300 = vcombine.high %v3274, %v3282
    %v3302 = vunpack.c.l.s4 1934713408
    %v3303 = vunpack.c.0.s8 %v3302
    %v3304 = vlaneseq
    %v3305 = vshrl.u32 %v3304, 7
    %v3306 = vsub.s32 %v3303, %v3305
    %v3307 = vrot.slane %v3299, %v3306
    %v3309 = vunpack.c.l.s4 1934713408
    %v3310 = vunpack.c.0.s8 %v3309
    %v3311 = vlaneseq
    %v3312 = vshrl.u32 %v3311, 7
    %v3313 = vsub.s32 %v3310, %v3312
    %v3314 = vrot.slane %v3300, %v3313
    %v3315 = vcombine.low %v3290, %v3298
    %v3316 = vcombine.high %v3290, %v3298
    %v3318 = vunpack.c.l.s4 1934713408
    %v3319 = vunpack.c.0.s8 %v3318
    %v3320 = vlaneseq
    %v3321 = vshrl.u32 %v3320, 7
    %v3322 = vsub.s32 %v3319, %v3321
    %v3323 = vrot.slane %v3315, %v3322
    %v3325 = vunpack.c.l.s4 1934713408
    %v3326 = vunpack.c.0.s8 %v3325
    %v3327 = vlaneseq
    %v3328 = vshrl.u32 %v3327, 7
    %v3329 = vsub.s32 %v3326, %v3328
    %v3330 = vrot.slane %v3316, %v3329
    %v3331 = vcombine.low %v3307, %v3323
    %v3332 = vcombine.high %v3307, %v3323
    %v3333 = vcombine.low %v3314, %v3330
    %v3334 = vcombine.high %v3314, %v3330
    %v3335 = vcombine.low %v2967, %v2974
    %v3337 = vunpack.c.l.s4 1983009808
    %v3338 = vunpack.c.0.s8 %v3337
    %v3339 = vlaneseq
    %v3340 = vshrl.u32 %v3339, 7
    %v3341 = vsub.s32 %v3338, %v3340
    %v3342 = vrot.slane %v3335, %v3341
    %v3343 = vcombine.low %v2991, %v2992
    %v3345 = vunpack.c.l.s4 1983009808
    %v3346 = vunpack.c.0.s8 %v3345
    %v3347 = vlaneseq
    %v3348 = vshrl.u32 %v3347, 7
    %v3349 = vsub.s32 %v3346, %v3348
    %v3350 = vrot.slane %v3343, %v3349
    %v3351 = vcombine.low %v2983, %v2990
    %v3353 = vunpack.c.l.s4 1983009808
    %v3354 = vunpack.c.0.s8 %v3353
    %v3355 = vlaneseq
    %v3356 = vshrl.u32 %v3355, 7
    %v3357 = vsub.s32 %v3354, %v3356
    %v3358 = vrot.slane %v3351, %v3357
    %v3359 = vcombine.low %v2993, %v2994
    %v3361 = vunpack.c.l.s4 1983009808
    %v3362 = vunpack.c.0.s8 %v3361
    %v3363 = vlaneseq
    %v3364 = vshrl.u32 %v3363, 7
    %v3365 = vsub.s32 %v3362, %v3364
    %v3366 = vrot.slane %v3359, %v3365
    %v3367 = vcombine.low %v3342, %v3350
    %v3368 = vcombine.high %v3342, %v3350
    %v3370 = vunpack.c.l.s4 1934713408
    %v3371 = vunpack.c.0.s8 %v3370
    %v3372 = vlaneseq
    %v3373 = vshrl.u32 %v3372, 7
    %v3374 = vsub.s32 %v3371, %v3373
    %v3375 = vrot.slane %v3367, %v3374
    %v3377 = vunpack.c.l.s4 1934713408
    %v3378 = vunpack.c.0.s8 %v3377
    %v3379 = vlaneseq
    %v3380 = vshrl.u32 %v3379, 7
    %v3381 = vsub.s32 %v3378, %v3380
    %v3382 = vrot.slane %v3368, %v3381
    %v3383 = vcombine.low %v3358, %v3366
    %v3384 = vcombine.high %v3358, %v3366
    %v3386 = vunpack.c.l.s4 1934713408
    %v3387 = vunpack.c.0.s8 %v3386
    %v3388 = vlaneseq
    %v3389 = vshrl.u32 %v3388, 7
    %v3390 = vsub.s32 %v3387, %v3389
    %v3391 = vrot.slane %v3383, %v3390
    %v3393 = vunpack.c.l.s4 1934713408
    %v3394 = vunpack.c.0.s8 %v3393
    %v3395 = vlaneseq
    %v3396 = vshrl.u32 %v3395, 7
    %v3397 = vsub.s32 %v3394, %v3396
    %v3398 = vrot.slane %v3384, %v3397
    %v3399 = vcombine.low %v3375, %v3391
    %v3400 = vcombine.high %v3375, %v3391
    %v3401 = vcombine.low %v3382, %v3398
    %v3402 = vcombine.high %v3382, %v3398
    %v3403 = vmul.f32 %v3123, 0.35355338
    %v3404 = vmul.f32 %v3259, 0.35355338
    %v3405 = vmul.f32 %v3124, 0.35355338
    %v3406 = vmul.f32 %v3260, 0.35355338
    %v3407 = vmul.f32 %v3125, 0.35355338
    %v3408 = vmul.f32 %v3261, 0.35355338
    %v3409 = vmul.f32 %v3126, 0.35355338
    %v3410 = vmul.f32 %v3262, 0.35355338
    %v3412 = vsel %vm1111, %v3403, 0
    %v3415 = vsel %vm1111, %v3404, 0
    %v3418 = vsel %vm1111, %v3127, 0
    %v3421 = vsel %vm1111, %v3263, 0
    %3423 = vmatprep.subr.mxu0 0.0
    %3424 = vmatpush1.xpose.msra.mxu0 %v3418
    %3425 = vmatprep.subr.mxu0 0.0
    %3426 = vmatpush1.xpose.msra.mxu0 %v3421
    %3427 = vmatprep.subr.mxu0 0.0
    %3428 = vmatpush1.xpose.msra.mxu0 0.0
    %3429 = vmatprep.subr.mxu0 0.0
    %3430 = vmatpush1.xpose.msra.mxu0 0.0
    %3431 = vmatprep.subr.mxu0 0.0
    %3432 = vmatpush1.xpose.msra.mxu0 0.0
    %3433 = vmatprep.subr.mxu0 0.0
    %3434 = vmatpush1.xpose.msra.mxu0 0.0
    %3435 = vmatprep.subr.mxu0 0.0
    %3436 = vmatpush1.xpose.msra.mxu0 0.0
    %3437 = vmatprep.subr.mxu0 0.0
    %3438 = vmatpush1.xpose.msra.mxu0 0.0
    %3439 = vmatprep.subr.mxu0 0.0
    %3440 = vmatpush1.xpose.msra.mxu0 0.0
    %3441 = vmatprep.subr.mxu0 0.0
    %3442 = vmatpush1.xpose.msra.mxu0 0.0
    %3443 = vmatprep.subr.mxu0 0.0
    %3444 = vmatpush1.xpose.msra.mxu0 0.0
    %3445 = vmatprep.subr.mxu0 0.0
    %3446 = vmatpush1.xpose.msra.mxu0 0.0
    %3447 = vmatprep.subr.mxu0 0.0
    %3448 = vmatpush1.xpose.msra.mxu0 0.0
    %3449 = vmatprep.subr.mxu0 0.0
    %3450 = vmatpush1.xpose.msra.mxu0 0.0
    %3451 = vmatprep.subr.mxu0 0.0
    %3452 = vmatpush1.xpose.msra.mxu0 0.0
    %3453 = vmatprep.subr.mxu0 0.0
    %3454 = vmatpush1.xpose.msra.mxu0 0.0
    %3455 = vmatprep.subr.mxu0 0.0
    %3456 = vmatpush1.xpose.msra.mxu0 0.0
    %3457 = vmatprep.subr.mxu0 0.0
    %3458 = vmatpush1.xpose.msra.mxu0 0.0
    %3459 = vmatprep.subr.mxu0 0.0
    %3460 = vmatpush1.xpose.msra.mxu0 0.0
    %3461 = vmatprep.subr.mxu0 0.0
    %3462 = vmatpush1.xpose.msra.mxu0 0.0
    %3463 = vmatprep.subr.mxu0 0.0
    %3464 = vmatpush1.xpose.msra.mxu0 0.0
    %3465 = vmatprep.subr.mxu0 0.0
    %3466 = vmatpush1.xpose.msra.mxu0 0.0
    %3467 = vmatprep.subr.mxu0 0.0
    %3468 = vmatpush1.xpose.msra.mxu0 0.0
    %3469 = vmatprep.subr.mxu0 0.0
    %3470 = vmatpush1.xpose.msra.mxu0 0.0
    %3471 = vmatprep.subr.mxu0 0.0
    %3472 = vmatpush1.xpose.msra.mxu0 0.0
    %3473 = vmatprep.subr.mxu0 0.0
    %3474 = vmatpush1.xpose.msra.mxu0 0.0
    %3475 = vmatprep.subr.mxu0 0.0
    %3476 = vmatpush1.xpose.msra.mxu0 0.0
    %3477 = vmatprep.subr.mxu0 0.0
    %3478 = vmatpush1.xpose.msra.mxu0 0.0
    %3479 = vmatprep.subr.mxu0 0.0
    %3480 = vmatpush1.xpose.msra.mxu0 0.0
    %3481 = vmatprep.subr.mxu0 0.0
    %3482 = vmatpush1.xpose.msra.mxu0 0.0
    %3483 = vmatprep.subr.mxu0 0.0
    %3484 = vmatpush1.xpose.msra.mxu0 0.0
    %3485 = vmatprep.subr.mxu0 0.0
    %3486 = vmatpush1.xpose.msra.mxu0 0.0
    %3487 = vmatprep.mubr.f32.mxu0 0.0
    %3488 = vmatmul.mubr.f32.gmra.mrb[0].mxu0 %v3412
    %v3489 = vpop.f32.mrb[0].mxu0
    %v3490 = vadd.f32 %v151, %v3489
    %v3491 = vpop.f32.mrb[0].mxu0
    %3492 = vmatprep.mubr.f32.mxu0 0.0
    %3493 = vmatmul.mubr.f32.gmra.mrb[0].mxu0 %v3415
    %v3494 = vpop.f32.mrb[0].mxu0
    %v3495 = vadd.f32 %v152, %v3494
    %v3496 = vpop.f32.mrb[0].mxu0
    %3497 = vdwg.mxu0
    %v3499 = vsel %vm1111, %v3405, 0
    %v3502 = vsel %vm1111, %v3406, 0
    %v3505 = vsel %vm1111, %v3128, 0
    %v3508 = vsel %vm1111, %v3264, 0
    %3510 = vmatprep.subr.mxu0 0.0
    %3511 = vmatpush1.xpose.msra.mxu0 %v3505
    %3512 = vmatprep.subr.mxu0 0.0
    %3513 = vmatpush1.xpose.msra.mxu0 %v3508
    %3514 = vmatprep.subr.mxu0 0.0
    %3515 = vmatpush1.xpose.msra.mxu0 0.0
    %3516 = vmatprep.subr.mxu0 0.0
    %3517 = vmatpush1.xpose.msra.mxu0 0.0
    %3518 = vmatprep.subr.mxu0 0.0
    %3519 = vmatpush1.xpose.msra.mxu0 0.0
    %3520 = vmatprep.subr.mxu0 0.0
    %3521 = vmatpush1.xpose.msra.mxu0 0.0
    %3522 = vmatprep.subr.mxu0 0.0
    %3523 = vmatpush1.xpose.msra.mxu0 0.0
    %3524 = vmatprep.subr.mxu0 0.0
    %3525 = vmatpush1.xpose.msra.mxu0 0.0
    %3526 = vmatprep.subr.mxu0 0.0
    %3527 = vmatpush1.xpose.msra.mxu0 0.0
    %3528 = vmatprep.subr.mxu0 0.0
    %3529 = vmatpush1.xpose.msra.mxu0 0.0
    %3530 = vmatprep.subr.mxu0 0.0
    %3531 = vmatpush1.xpose.msra.mxu0 0.0
    %3532 = vmatprep.subr.mxu0 0.0
    %3533 = vmatpush1.xpose.msra.mxu0 0.0
    %3534 = vmatprep.subr.mxu0 0.0
    %3535 = vmatpush1.xpose.msra.mxu0 0.0
    %3536 = vmatprep.subr.mxu0 0.0
    %3537 = vmatpush1.xpose.msra.mxu0 0.0
    %3538 = vmatprep.subr.mxu0 0.0
    %3539 = vmatpush1.xpose.msra.mxu0 0.0
    %3540 = vmatprep.subr.mxu0 0.0
    %3541 = vmatpush1.xpose.msra.mxu0 0.0
    %3542 = vmatprep.subr.mxu0 0.0
    %3543 = vmatpush1.xpose.msra.mxu0 0.0
    %3544 = vmatprep.subr.mxu0 0.0
    %3545 = vmatpush1.xpose.msra.mxu0 0.0
    %3546 = vmatprep.subr.mxu0 0.0
    %3547 = vmatpush1.xpose.msra.mxu0 0.0
    %3548 = vmatprep.subr.mxu0 0.0
    %3549 = vmatpush1.xpose.msra.mxu0 0.0
    %3550 = vmatprep.subr.mxu0 0.0
    %3551 = vmatpush1.xpose.msra.mxu0 0.0
    %3552 = vmatprep.subr.mxu0 0.0
    %3553 = vmatpush1.xpose.msra.mxu0 0.0
    %3554 = vmatprep.subr.mxu0 0.0
    %3555 = vmatpush1.xpose.msra.mxu0 0.0
    %3556 = vmatprep.subr.mxu0 0.0
    %3557 = vmatpush1.xpose.msra.mxu0 0.0
    %3558 = vmatprep.subr.mxu0 0.0
    %3559 = vmatpush1.xpose.msra.mxu0 0.0
    %3560 = vmatprep.subr.mxu0 0.0
    %3561 = vmatpush1.xpose.msra.mxu0 0.0
    %3562 = vmatprep.subr.mxu0 0.0
    %3563 = vmatpush1.xpose.msra.mxu0 0.0
    %3564 = vmatprep.subr.mxu0 0.0
    %3565 = vmatpush1.xpose.msra.mxu0 0.0
    %3566 = vmatprep.subr.mxu0 0.0
    %3567 = vmatpush1.xpose.msra.mxu0 0.0
    %3568 = vmatprep.subr.mxu0 0.0
    %3569 = vmatpush1.xpose.msra.mxu0 0.0
    %3570 = vmatprep.subr.mxu0 0.0
    %3571 = vmatpush1.xpose.msra.mxu0 0.0
    %3572 = vmatprep.subr.mxu0 0.0
    %3573 = vmatpush1.xpose.msra.mxu0 0.0
    %3574 = vmatprep.mubr.f32.mxu0 0.0
    %3575 = vmatmul.mubr.f32.gmra.mrb[0].mxu0 %v3499
    %v3576 = vpop.f32.mrb[0].mxu0
    %v3577 = vadd.f32 %v151, %v3576
    %v3578 = vpop.f32.mrb[0].mxu0
    %3579 = vmatprep.mubr.f32.mxu0 0.0
    %3580 = vmatmul.mubr.f32.gmra.mrb[0].mxu0 %v3502
    %v3581 = vpop.f32.mrb[0].mxu0
    %v3582 = vadd.f32 %v152, %v3581
    %v3583 = vpop.f32.mrb[0].mxu0
    %3584 = vdwg.mxu0
    %v3586 = vsel %vm1111, %v3407, 0
    %v3589 = vsel %vm1111, %v3408, 0
    %v3592 = vsel %vm1111, %v3129, 0
    %v3595 = vsel %vm1111, %v3265, 0
    %3597 = vmatprep.subr.mxu0 0.0
    %3598 = vmatpush1.xpose.msra.mxu0 %v3592
    %3599 = vmatprep.subr.mxu0 0.0
    %3600 = vmatpush1.xpose.msra.mxu0 %v3595
    %3601 = vmatprep.subr.mxu0 0.0
    %3602 = vmatpush1.xpose.msra.mxu0 0.0
    %3603 = vmatprep.subr.mxu0 0.0
    %3604 = vmatpush1.xpose.msra.mxu0 0.0
    %3605 = vmatprep.subr.mxu0 0.0
    %3606 = vmatpush1.xpose.msra.mxu0 0.0
    %3607 = vmatprep.subr.mxu0 0.0
    %3608 = vmatpush1.xpose.msra.mxu0 0.0
    %3609 = vmatprep.subr.mxu0 0.0
    %3610 = vmatpush1.xpose.msra.mxu0 0.0
    %3611 = vmatprep.subr.mxu0 0.0
    %3612 = vmatpush1.xpose.msra.mxu0 0.0
    %3613 = vmatprep.subr.mxu0 0.0
    %3614 = vmatpush1.xpose.msra.mxu0 0.0
    %3615 = vmatprep.subr.mxu0 0.0
    %3616 = vmatpush1.xpose.msra.mxu0 0.0
    %3617 = vmatprep.subr.mxu0 0.0
    %3618 = vmatpush1.xpose.msra.mxu0 0.0
    %3619 = vmatprep.subr.mxu0 0.0
    %3620 = vmatpush1.xpose.msra.mxu0 0.0
    %3621 = vmatprep.subr.mxu0 0.0
    %3622 = vmatpush1.xpose.msra.mxu0 0.0
    %3623 = vmatprep.subr.mxu0 0.0
    %3624 = vmatpush1.xpose.msra.mxu0 0.0
    %3625 = vmatprep.subr.mxu0 0.0
    %3626 = vmatpush1.xpose.msra.mxu0 0.0
    %3627 = vmatprep.subr.mxu0 0.0
    %3628 = vmatpush1.xpose.msra.mxu0 0.0
    %3629 = vmatprep.subr.mxu0 0.0
    %3630 = vmatpush1.xpose.msra.mxu0 0.0
    %3631 = vmatprep.subr.mxu0 0.0
    %3632 = vmatpush1.xpose.msra.mxu0 0.0
    %3633 = vmatprep.subr.mxu0 0.0
    %3634 = vmatpush1.xpose.msra.mxu0 0.0
    %3635 = vmatprep.subr.mxu0 0.0
    %3636 = vmatpush1.xpose.msra.mxu0 0.0
    %3637 = vmatprep.subr.mxu0 0.0
    %3638 = vmatpush1.xpose.msra.mxu0 0.0
    %3639 = vmatprep.subr.mxu0 0.0
    %3640 = vmatpush1.xpose.msra.mxu0 0.0
    %3641 = vmatprep.subr.mxu0 0.0
    %3642 = vmatpush1.xpose.msra.mxu0 0.0
    %3643 = vmatprep.subr.mxu0 0.0
    %3644 = vmatpush1.xpose.msra.mxu0 0.0
    %3645 = vmatprep.subr.mxu0 0.0
    %3646 = vmatpush1.xpose.msra.mxu0 0.0
    %3647 = vmatprep.subr.mxu0 0.0
    %3648 = vmatpush1.xpose.msra.mxu0 0.0
    %3649 = vmatprep.subr.mxu0 0.0
    %3650 = vmatpush1.xpose.msra.mxu0 0.0
    %3651 = vmatprep.subr.mxu0 0.0
    %3652 = vmatpush1.xpose.msra.mxu0 0.0
    %3653 = vmatprep.subr.mxu0 0.0
    %3654 = vmatpush1.xpose.msra.mxu0 0.0
    %3655 = vmatprep.subr.mxu0 0.0
    %3656 = vmatpush1.xpose.msra.mxu0 0.0
    %3657 = vmatprep.subr.mxu0 0.0
    %3658 = vmatpush1.xpose.msra.mxu0 0.0
    %3659 = vmatprep.subr.mxu0 0.0
    %3660 = vmatpush1.xpose.msra.mxu0 0.0
    %3661 = vmatprep.mubr.f32.mxu0 0.0
    %3662 = vmatmul.mubr.f32.gmra.mrb[0].mxu0 %v3586
    %v3663 = vpop.f32.mrb[0].mxu0
    %v3664 = vadd.f32 %v151, %v3663
    %v3665 = vpop.f32.mrb[0].mxu0
    %3666 = vmatprep.mubr.f32.mxu0 0.0
    %3667 = vmatmul.mubr.f32.gmra.mrb[0].mxu0 %v3589
    %v3668 = vpop.f32.mrb[0].mxu0
    %v3669 = vadd.f32 %v152, %v3668
    %v3670 = vpop.f32.mrb[0].mxu0
    %3671 = vdwg.mxu0
    %v3673 = vsel %vm1111, %v3409, 0
    %v3676 = vsel %vm1111, %v3410, 0
    %v3679 = vsel %vm1111, %v3130, 0
    %v3682 = vsel %vm1111, %v3266, 0
    %3684 = vmatprep.subr.mxu0 0.0
    %3685 = vmatpush1.xpose.msra.mxu0 %v3679
    %3686 = vmatprep.subr.mxu0 0.0
    %3687 = vmatpush1.xpose.msra.mxu0 %v3682
    %3688 = vmatprep.subr.mxu0 0.0
    %3689 = vmatpush1.xpose.msra.mxu0 0.0
    %3690 = vmatprep.subr.mxu0 0.0
    %3691 = vmatpush1.xpose.msra.mxu0 0.0
    %3692 = vmatprep.subr.mxu0 0.0
    %3693 = vmatpush1.xpose.msra.mxu0 0.0
    %3694 = vmatprep.subr.mxu0 0.0
    %3695 = vmatpush1.xpose.msra.mxu0 0.0
    %3696 = vmatprep.subr.mxu0 0.0
    %3697 = vmatpush1.xpose.msra.mxu0 0.0
    %3698 = vmatprep.subr.mxu0 0.0
    %3699 = vmatpush1.xpose.msra.mxu0 0.0
    %3700 = vmatprep.subr.mxu0 0.0
    %3701 = vmatpush1.xpose.msra.mxu0 0.0
    %3702 = vmatprep.subr.mxu0 0.0
    %3703 = vmatpush1.xpose.msra.mxu0 0.0
    %3704 = vmatprep.subr.mxu0 0.0
    %3705 = vmatpush1.xpose.msra.mxu0 0.0
    %3706 = vmatprep.subr.mxu0 0.0
    %3707 = vmatpush1.xpose.msra.mxu0 0.0
    %3708 = vmatprep.subr.mxu0 0.0
    %3709 = vmatpush1.xpose.msra.mxu0 0.0
    %3710 = vmatprep.subr.mxu0 0.0
    %3711 = vmatpush1.xpose.msra.mxu0 0.0
    %3712 = vmatprep.subr.mxu0 0.0
    %3713 = vmatpush1.xpose.msra.mxu0 0.0
    %3714 = vmatprep.subr.mxu0 0.0
    %3715 = vmatpush1.xpose.msra.mxu0 0.0
    %3716 = vmatprep.subr.mxu0 0.0
    %3717 = vmatpush1.xpose.msra.mxu0 0.0
    %3718 = vmatprep.subr.mxu0 0.0
    %3719 = vmatpush1.xpose.msra.mxu0 0.0
    %3720 = vmatprep.subr.mxu0 0.0
    %3721 = vmatpush1.xpose.msra.mxu0 0.0
    %3722 = vmatprep.subr.mxu0 0.0
    %3723 = vmatpush1.xpose.msra.mxu0 0.0
    %3724 = vmatprep.subr.mxu0 0.0
    %3725 = vmatpush1.xpose.msra.mxu0 0.0
    %3726 = vmatprep.subr.mxu0 0.0
    %3727 = vmatpush1.xpose.msra.mxu0 0.0
    %3728 = vmatprep.subr.mxu0 0.0
    %3729 = vmatpush1.xpose.msra.mxu0 0.0
    %3730 = vmatprep.subr.mxu0 0.0
    %3731 = vmatpush1.xpose.msra.mxu0 0.0
    %3732 = vmatprep.subr.mxu0 0.0
    %3733 = vmatpush1.xpose.msra.mxu0 0.0
    %3734 = vmatprep.subr.mxu0 0.0
    %3735 = vmatpush1.xpose.msra.mxu0 0.0
    %3736 = vmatprep.subr.mxu0 0.0
    %3737 = vmatpush1.xpose.msra.mxu0 0.0
    %3738 = vmatprep.subr.mxu0 0.0
    %3739 = vmatpush1.xpose.msra.mxu0 0.0
    %3740 = vmatprep.subr.mxu0 0.0
    %3741 = vmatpush1.xpose.msra.mxu0 0.0
    %3742 = vmatprep.subr.mxu0 0.0
    %3743 = vmatpush1.xpose.msra.mxu0 0.0
    %3744 = vmatprep.subr.mxu0 0.0
    %3745 = vmatpush1.xpose.msra.mxu0 0.0
    %3746 = vmatprep.subr.mxu0 0.0
    %3747 = vmatpush1.xpose.msra.mxu0 0.0
    %3748 = vmatprep.mubr.f32.mxu0 0.0
    %3749 = vmatmul.mubr.f32.gmra.mrb[0].mxu0 %v3673
    %v3750 = vpop.f32.mrb[0].mxu0
    %v3751 = vadd.f32 %v151, %v3750
    %v3752 = vpop.f32.mrb[0].mxu0
    %3753 = vmatprep.mubr.f32.mxu0 0.0
    %3754 = vmatmul.mubr.f32.gmra.mrb[0].mxu0 %v3676
    %v3755 = vpop.f32.mrb[0].mxu0
    %v3756 = vadd.f32 %v152, %v3755
    %v3757 = vpop.f32.mrb[0].mxu0
    %3758 = vdwg.mxu0
    %v3759 = vsel %vm1460, %v3490, -inf
    %3760 = vmax.xlane.f32.xlu0 %v3759
    %v3761 = vpop.xlane.xlu0 %3760
    %v3762 = vsel %vm1460, %v3495, -inf
    %3763 = vmax.xlane.f32.xlu0 %v3762
    %v3764 = vpop.xlane.xlu0 %3763
    %v3765 = vsel %vm1460, %v3577, -inf
    %3766 = vmax.xlane.f32.xlu0 %v3765
    %v3767 = vpop.xlane.xlu0 %3766
    %v3768 = vsel %vm1460, %v3582, -inf
    %3769 = vmax.xlane.f32.xlu0 %v3768
    %v3770 = vpop.xlane.xlu0 %3769
    %v3771 = vsel %vm1460, %v3664, -inf
    %3772 = vmax.xlane.f32.xlu0 %v3771
    %v3773 = vpop.xlane.xlu0 %3772
    %v3774 = vsel %vm1460, %v3669, -inf
    %3775 = vmax.xlane.f32.xlu0 %v3774
    %v3776 = vpop.xlane.xlu0 %3775
    %v3777 = vsel %vm1460, %v3751, -inf
    %3778 = vmax.xlane.f32.xlu0 %v3777
    %v3779 = vpop.xlane.xlu0 %3778
    %v3780 = vsel %vm1460, %v3756, -inf
    %3781 = vmax.xlane.f32.xlu0 %v3780
    %v3782 = vpop.xlane.xlu0 %3781
    %v3783 = vsub.f32 %v3490, %v3761
    %v3784 = vsub.f32 %v3495, %v3764
    %v3785 = vsub.f32 %v3577, %v3767
    %v3786 = vsub.f32 %v3582, %v3770
    %v3787 = vsub.f32 %v3664, %v3773
    %v3788 = vsub.f32 %v3669, %v3776
    %v3789 = vsub.f32 %v3751, %v3779
    %v3790 = vsub.f32 %v3756, %v3782
    %v3791 = vmul.f32 %v3783, 1.442695
    %v3792 = vpow.pop %v3791
    %v3793 = vmul.f32 %v3784, 1.442695
    %v3794 = vpow.pop %v3793
    %v3795 = vmul.f32 %v3785, 1.442695
    %v3796 = vpow.pop %v3795
    %v3797 = vmul.f32 %v3786, 1.442695
    %v3798 = vpow.pop %v3797
    %v3799 = vmul.f32 %v3787, 1.442695
    %v3800 = vpow.pop %v3799
    %v3801 = vmul.f32 %v3788, 1.442695
    %v3802 = vpow.pop %v3801
    %v3803 = vmul.f32 %v3789, 1.442695
    %v3804 = vpow.pop %v3803
    %v3805 = vmul.f32 %v3790, 1.442695
    %v3806 = vpow.pop %v3805
    %v3807 = vsel %vm1460, %v3792, 0.0
    %3808 = vadd.xlane.f32.xlu0 %v3807
    %v3809 = vpop.xlane.xlu0 %3808
    %v3810 = vsel %vm1460, %v3794, 0.0
    %3811 = vadd.xlane.f32.xlu0 %v3810
    %v3812 = vpop.xlane.xlu0 %3811
    %v3813 = vsel %vm1460, %v3796, 0.0
    %3814 = vadd.xlane.f32.xlu0 %v3813
    %v3815 = vpop.xlane.xlu0 %3814
    %v3816 = vsel %vm1460, %v3798, 0.0
    %3817 = vadd.xlane.f32.xlu0 %v3816
    %v3818 = vpop.xlane.xlu0 %3817
    %v3819 = vsel %vm1460, %v3800, 0.0
    %3820 = vadd.xlane.f32.xlu0 %v3819
    %v3821 = vpop.xlane.xlu0 %3820
    %v3822 = vsel %vm1460, %v3802, 0.0
    %3823 = vadd.xlane.f32.xlu0 %v3822
    %v3824 = vpop.xlane.xlu0 %3823
    %v3825 = vsel %vm1460, %v3804, 0.0
    %3826 = vadd.xlane.f32.xlu0 %v3825
    %v3827 = vpop.xlane.xlu0 %3826
    %v3828 = vsel %vm1460, %v3806, 0.0
    %3829 = vadd.xlane.f32.xlu0 %v3828
    %v3830 = vpop.xlane.xlu0 %3829
    %v3831 = vrcp.pop %v3809
    %v3832 = vrcp.pop %v3812
    %v3833 = vrcp.pop %v3815
    %v3834 = vrcp.pop %v3818
    %v3835 = vrcp.pop %v3821
    %v3836 = vrcp.pop %v3824
    %v3837 = vrcp.pop %v3827
    %v3838 = vrcp.pop %v3830
    %v3839 = vmul.f32 %v3792, %v3831
    %v3840 = vmul.f32 %v3794, %v3832
    %v3841 = vmul.f32 %v3796, %v3833
    %v3842 = vmul.f32 %v3798, %v3834
    %v3843 = vmul.f32 %v3800, %v3835
    %v3844 = vmul.f32 %v3802, %v3836
    %v3845 = vmul.f32 %v3804, %v3837
    %v3846 = vmul.f32 %v3806, %v3838
    %v3848 = vsel %vm1460, %v3839, 0
    %v3851 = vsel %vm1460, %v3840, 0
    %3853 = vmatprep.subr.mxu0 0.0
    %3854 = vmatpush1.msra.mxu0 %v3331
    %3855 = vmatprep.subr.mxu0 0.0
    %3856 = vmatpush1.msra.mxu0 %v3399
    %3857 = vmatprep.subr.mxu0 0.0
    %3858 = vmatpush1.msra.mxu0 0.0
    %3859 = vmatprep.subr.mxu0 0.0
    %3860 = vmatpush1.msra.mxu0 0.0
    %3861 = vmatprep.subr.mxu0 0.0
    %3862 = vmatpush1.msra.mxu0 0.0
    %3863 = vmatprep.subr.mxu0 0.0
    %3864 = vmatpush1.msra.mxu0 0.0
    %3865 = vmatprep.subr.mxu0 0.0
    %3866 = vmatpush1.msra.mxu0 0.0
    %3867 = vmatprep.subr.mxu0 0.0
    %3868 = vmatpush1.msra.mxu0 0.0
    %3869 = vmatprep.subr.mxu0 0.0
    %3870 = vmatpush1.msra.mxu0 0.0
    %3871 = vmatprep.subr.mxu0 0.0
    %3872 = vmatpush1.msra.mxu0 0.0
    %3873 = vmatprep.subr.mxu0 0.0
    %3874 = vmatpush1.msra.mxu0 0.0
    %3875 = vmatprep.subr.mxu0 0.0
    %3876 = vmatpush1.msra.mxu0 0.0
    %3877 = vmatprep.subr.mxu0 0.0
    %3878 = vmatpush1.msra.mxu0 0.0
    %3879 = vmatprep.subr.mxu0 0.0
    %3880 = vmatpush1.msra.mxu0 0.0
    %3881 = vmatprep.subr.mxu0 0.0
    %3882 = vmatpush1.msra.mxu0 0.0
    %3883 = vmatprep.subr.mxu0 0.0
    %3884 = vmatpush1.msra.mxu0 0.0
    %3885 = vmatprep.subr.mxu0 0.0
    %3886 = vmatpush1.msra.mxu0 0.0
    %3887 = vmatprep.subr.mxu0 0.0
    %3888 = vmatpush1.msra.mxu0 0.0
    %3889 = vmatprep.subr.mxu0 0.0
    %3890 = vmatpush1.msra.mxu0 0.0
    %3891 = vmatprep.subr.mxu0 0.0
    %3892 = vmatpush1.msra.mxu0 0.0
    %3893 = vmatprep.subr.mxu0 0.0
    %3894 = vmatpush1.msra.mxu0 0.0
    %3895 = vmatprep.subr.mxu0 0.0
    %3896 = vmatpush1.msra.mxu0 0.0
    %3897 = vmatprep.subr.mxu0 0.0
    %3898 = vmatpush1.msra.mxu0 0.0
    %3899 = vmatprep.subr.mxu0 0.0
    %3900 = vmatpush1.msra.mxu0 0.0
    %3901 = vmatprep.subr.mxu0 0.0
    %3902 = vmatpush1.msra.mxu0 0.0
    %3903 = vmatprep.subr.mxu0 0.0
    %3904 = vmatpush1.msra.mxu0 0.0
    %3905 = vmatprep.subr.mxu0 0.0
    %3906 = vmatpush1.msra.mxu0 0.0
    %3907 = vmatprep.subr.mxu0 0.0
    %3908 = vmatpush1.msra.mxu0 0.0
    %3909 = vmatprep.subr.mxu0 0.0
    %3910 = vmatpush1.msra.mxu0 0.0
    %3911 = vmatprep.subr.mxu0 0.0
    %3912 = vmatpush1.msra.mxu0 0.0
    %3913 = vmatprep.subr.mxu0 0.0
    %3914 = vmatpush1.msra.mxu0 0.0
    %3915 = vmatprep.subr.mxu0 0.0
    %3916 = vmatpush1.msra.mxu0 0.0
    %3917 = vmatprep.mubr.f32.mxu0 0.0
    %3918 = vmatmul.mubr.f32.gmra.mrb[0].mxu0 %v3848
    %v3919 = vpop.f32.mrb[0].mxu0
    %v3920 = vadd.f32 0.0, %v3919
    %v3921 = vpop.f32.mrb[0].mxu0
    %3922 = vmatprep.mubr.f32.mxu0 0.0
    %3923 = vmatmul.mubr.f32.gmra.mrb[0].mxu0 %v3851
    %v3924 = vpop.f32.mrb[0].mxu0
    %v3925 = vadd.f32 0.0, %v3924
    %v3926 = vpop.f32.mrb[0].mxu0
    %3927 = vdwg.mxu0
    %v3929 = vsel %vm1460, %v3841, 0
    %v3932 = vsel %vm1460, %v3842, 0
    %3934 = vmatprep.subr.mxu0 0.0
    %3935 = vmatpush1.msra.mxu0 %v3332
    %3936 = vmatprep.subr.mxu0 0.0
    %3937 = vmatpush1.msra.mxu0 %v3400
    %3938 = vmatprep.subr.mxu0 0.0
    %3939 = vmatpush1.msra.mxu0 0.0
    %3940 = vmatprep.subr.mxu0 0.0
    %3941 = vmatpush1.msra.mxu0 0.0
    %3942 = vmatprep.subr.mxu0 0.0
    %3943 = vmatpush1.msra.mxu0 0.0
    %3944 = vmatprep.subr.mxu0 0.0
    %3945 = vmatpush1.msra.mxu0 0.0
    %3946 = vmatprep.subr.mxu0 0.0
    %3947 = vmatpush1.msra.mxu0 0.0
    %3948 = vmatprep.subr.mxu0 0.0
    %3949 = vmatpush1.msra.mxu0 0.0
    %3950 = vmatprep.subr.mxu0 0.0
    %3951 = vmatpush1.msra.mxu0 0.0
    %3952 = vmatprep.subr.mxu0 0.0
    %3953 = vmatpush1.msra.mxu0 0.0
    %3954 = vmatprep.subr.mxu0 0.0
    %3955 = vmatpush1.msra.mxu0 0.0
    %3956 = vmatprep.subr.mxu0 0.0
    %3957 = vmatpush1.msra.mxu0 0.0
    %3958 = vmatprep.subr.mxu0 0.0
    %3959 = vmatpush1.msra.mxu0 0.0
    %3960 = vmatprep.subr.mxu0 0.0
    %3961 = vmatpush1.msra.mxu0 0.0
    %3962 = vmatprep.subr.mxu0 0.0
    %3963 = vmatpush1.msra.mxu0 0.0
    %3964 = vmatprep.subr.mxu0 0.0
    %3965 = vmatpush1.msra.mxu0 0.0
    %3966 = vmatprep.subr.mxu0 0.0
    %3967 = vmatpush1.msra.mxu0 0.0
    %3968 = vmatprep.subr.mxu0 0.0
    %3969 = vmatpush1.msra.mxu0 0.0
    %3970 = vmatprep.subr.mxu0 0.0
    %3971 = vmatpush1.msra.mxu0 0.0
    %3972 = vmatprep.subr.mxu0 0.0
    %3973 = vmatpush1.msra.mxu0 0.0
    %3974 = vmatprep.subr.mxu0 0.0
    %3975 = vmatpush1.msra.mxu0 0.0
    %3976 = vmatprep.subr.mxu0 0.0
    %3977 = vmatpush1.msra.mxu0 0.0
    %3978 = vmatprep.subr.mxu0 0.0
    %3979 = vmatpush1.msra.mxu0 0.0
    %3980 = vmatprep.subr.mxu0 0.0
    %3981 = vmatpush1.msra.mxu0 0.0
    %3982 = vmatprep.subr.mxu0 0.0
    %3983 = vmatpush1.msra.mxu0 0.0
    %3984 = vmatprep.subr.mxu0 0.0
    %3985 = vmatpush1.msra.mxu0 0.0
    %3986 = vmatprep.subr.mxu0 0.0
    %3987 = vmatpush1.msra.mxu0 0.0
    %3988 = vmatprep.subr.mxu0 0.0
    %3989 = vmatpush1.msra.mxu0 0.0
    %3990 = vmatprep.subr.mxu0 0.0
    %3991 = vmatpush1.msra.mxu0 0.0
    %3992 = vmatprep.subr.mxu0 0.0
    %3993 = vmatpush1.msra.mxu0 0.0
    %3994 = vmatprep.subr.mxu0 0.0
    %3995 = vmatpush1.msra.mxu0 0.0
    %3996 = vmatprep.subr.mxu0 0.0
    %3997 = vmatpush1.msra.mxu0 0.0
    %3998 = vmatprep.mubr.f32.mxu0 0.0
    %3999 = vmatmul.mubr.f32.gmra.mrb[0].mxu0 %v3929
    %v4000 = vpop.f32.mrb[0].mxu0
    %v4001 = vadd.f32 0.0, %v4000
    %v4002 = vpop.f32.mrb[0].mxu0
    %4003 = vmatprep.mubr.f32.mxu0 0.0
    %4004 = vmatmul.mubr.f32.gmra.mrb[0].mxu0 %v3932
    %v4005 = vpop.f32.mrb[0].mxu0
    %v4006 = vadd.f32 0.0, %v4005
    %v4007 = vpop.f32.mrb[0].mxu0
    %4008 = vdwg.mxu0
    %v4010 = vsel %vm1460, %v3843, 0
    %v4013 = vsel %vm1460, %v3844, 0
    %4015 = vmatprep.subr.mxu0 0.0
    %4016 = vmatpush1.msra.mxu0 %v3333
    %4017 = vmatprep.subr.mxu0 0.0
    %4018 = vmatpush1.msra.mxu0 %v3401
    %4019 = vmatprep.subr.mxu0 0.0
    %4020 = vmatpush1.msra.mxu0 0.0
    %4021 = vmatprep.subr.mxu0 0.0
    %4022 = vmatpush1.msra.mxu0 0.0
    %4023 = vmatprep.subr.mxu0 0.0
    %4024 = vmatpush1.msra.mxu0 0.0
    %4025 = vmatprep.subr.mxu0 0.0
    %4026 = vmatpush1.msra.mxu0 0.0
    %4027 = vmatprep.subr.mxu0 0.0
    %4028 = vmatpush1.msra.mxu0 0.0
    %4029 = vmatprep.subr.mxu0 0.0
    %4030 = vmatpush1.msra.mxu0 0.0
    %4031 = vmatprep.subr.mxu0 0.0
    %4032 = vmatpush1.msra.mxu0 0.0
    %4033 = vmatprep.subr.mxu0 0.0
    %4034 = vmatpush1.msra.mxu0 0.0
    %4035 = vmatprep.subr.mxu0 0.0
    %4036 = vmatpush1.msra.mxu0 0.0
    %4037 = vmatprep.subr.mxu0 0.0
    %4038 = vmatpush1.msra.mxu0 0.0
    %4039 = vmatprep.subr.mxu0 0.0
    %4040 = vmatpush1.msra.mxu0 0.0
    %4041 = vmatprep.subr.mxu0 0.0
    %4042 = vmatpush1.msra.mxu0 0.0
    %4043 = vmatprep.subr.mxu0 0.0
    %4044 = vmatpush1.msra.mxu0 0.0
    %4045 = vmatprep.subr.mxu0 0.0
    %4046 = vmatpush1.msra.mxu0 0.0
    %4047 = vmatprep.subr.mxu0 0.0
    %4048 = vmatpush1.msra.mxu0 0.0
    %4049 = vmatprep.subr.mxu0 0.0
    %4050 = vmatpush1.msra.mxu0 0.0
    %4051 = vmatprep.subr.mxu0 0.0
    %4052 = vmatpush1.msra.mxu0 0.0
    %4053 = vmatprep.subr.mxu0 0.0
    %4054 = vmatpush1.msra.mxu0 0.0
    %4055 = vmatprep.subr.mxu0 0.0
    %4056 = vmatpush1.msra.mxu0 0.0
    %4057 = vmatprep.subr.mxu0 0.0
    %4058 = vmatpush1.msra.mxu0 0.0
    %4059 = vmatprep.subr.mxu0 0.0
    %4060 = vmatpush1.msra.mxu0 0.0
    %4061 = vmatprep.subr.mxu0 0.0
    %4062 = vmatpush1.msra.mxu0 0.0
    %4063 = vmatprep.subr.mxu0 0.0
    %4064 = vmatpush1.msra.mxu0 0.0
    %4065 = vmatprep.subr.mxu0 0.0
    %4066 = vmatpush1.msra.mxu0 0.0
    %4067 = vmatprep.subr.mxu0 0.0
    %4068 = vmatpush1.msra.mxu0 0.0
    %4069 = vmatprep.subr.mxu0 0.0
    %4070 = vmatpush1.msra.mxu0 0.0
    %4071 = vmatprep.subr.mxu0 0.0
    %4072 = vmatpush1.msra.mxu0 0.0
    %4073 = vmatprep.subr.mxu0 0.0
    %4074 = vmatpush1.msra.mxu0 0.0
    %4075 = vmatprep.subr.mxu0 0.0
    %4076 = vmatpush1.msra.mxu0 0.0
    %4077 = vmatprep.subr.mxu0 0.0
    %4078 = vmatpush1.msra.mxu0 0.0
    %4079 = vmatprep.mubr.f32.mxu0 0.0
    %4080 = vmatmul.mubr.f32.gmra.mrb[0].mxu0 %v4010
    %v4081 = vpop.f32.mrb[0].mxu0
    %v4082 = vadd.f32 0.0, %v4081
    %v4083 = vpop.f32.mrb[0].mxu0
    %4084 = vmatprep.mubr.f32.mxu0 0.0
    %4085 = vmatmul.mubr.f32.gmra.mrb[0].mxu0 %v4013
    %v4086 = vpop.f32.mrb[0].mxu0
    %v4087 = vadd.f32 0.0, %v4086
    %v4088 = vpop.f32.mrb[0].mxu0
    %4089 = vdwg.mxu0
    %v4091 = vsel %vm1460, %v3845, 0
    %v4094 = vsel %vm1460, %v3846, 0
    %4096 = vmatprep.subr.mxu0 0.0
    %4097 = vmatpush1.msra.mxu0 %v3334
    %4098 = vmatprep.subr.mxu0 0.0
    %4099 = vmatpush1.msra.mxu0 %v3402
    %4100 = vmatprep.subr.mxu0 0.0
    %4101 = vmatpush1.msra.mxu0 0.0
    %4102 = vmatprep.subr.mxu0 0.0
    %4103 = vmatpush1.msra.mxu0 0.0
    %4104 = vmatprep.subr.mxu0 0.0
    %4105 = vmatpush1.msra.mxu0 0.0
    %4106 = vmatprep.subr.mxu0 0.0
    %4107 = vmatpush1.msra.mxu0 0.0
    %4108 = vmatprep.subr.mxu0 0.0
    %4109 = vmatpush1.msra.mxu0 0.0
    %4110 = vmatprep.subr.mxu0 0.0
    %4111 = vmatpush1.msra.mxu0 0.0
    %4112 = vmatprep.subr.mxu0 0.0
    %4113 = vmatpush1.msra.mxu0 0.0
    %4114 = vmatprep.subr.mxu0 0.0
    %4115 = vmatpush1.msra.mxu0 0.0
    %4116 = vmatprep.subr.mxu0 0.0
    %4117 = vmatpush1.msra.mxu0 0.0
    %4118 = vmatprep.subr.mxu0 0.0
    %4119 = vmatpush1.msra.mxu0 0.0
    %4120 = vmatprep.subr.mxu0 0.0
    %4121 = vmatpush1.msra.mxu0 0.0
    %4122 = vmatprep.subr.mxu0 0.0
    %4123 = vmatpush1.msra.mxu0 0.0
    %4124 = vmatprep.subr.mxu0 0.0
    %4125 = vmatpush1.msra.mxu0 0.0
    %4126 = vmatprep.subr.mxu0 0.0
    %4127 = vmatpush1.msra.mxu0 0.0
    %4128 = vmatprep.subr.mxu0 0.0
    %4129 = vmatpush1.msra.mxu0 0.0
    %4130 = vmatprep.subr.mxu0 0.0
    %4131 = vmatpush1.msra.mxu0 0.0
    %4132 = vmatprep.subr.mxu0 0.0
    %4133 = vmatpush1.msra.mxu0 0.0
    %4134 = vmatprep.subr.mxu0 0.0
    %4135 = vmatpush1.msra.mxu0 0.0
    %4136 = vmatprep.subr.mxu0 0.0
    %4137 = vmatpush1.msra.mxu0 0.0
    %4138 = vmatprep.subr.mxu0 0.0
    %4139 = vmatpush1.msra.mxu0 0.0
    %4140 = vmatprep.subr.mxu0 0.0
    %4141 = vmatpush1.msra.mxu0 0.0
    %4142 = vmatprep.subr.mxu0 0.0
    %4143 = vmatpush1.msra.mxu0 0.0
    %4144 = vmatprep.subr.mxu0 0.0
    %4145 = vmatpush1.msra.mxu0 0.0
    %4146 = vmatprep.subr.mxu0 0.0
    %4147 = vmatpush1.msra.mxu0 0.0
    %4148 = vmatprep.subr.mxu0 0.0
    %4149 = vmatpush1.msra.mxu0 0.0
    %4150 = vmatprep.subr.mxu0 0.0
    %4151 = vmatpush1.msra.mxu0 0.0
    %4152 = vmatprep.subr.mxu0 0.0
    %4153 = vmatpush1.msra.mxu0 0.0
    %4154 = vmatprep.subr.mxu0 0.0
    %4155 = vmatpush1.msra.mxu0 0.0
    %4156 = vmatprep.subr.mxu0 0.0
    %4157 = vmatpush1.msra.mxu0 0.0
    %4158 = vmatprep.subr.mxu0 0.0
    %4159 = vmatpush1.msra.mxu0 0.0
    %4160 = vmatprep.mubr.f32.mxu0 0.0
    %4161 = vmatmul.mubr.f32.gmra.mrb[0].mxu0 %v4091
    %v4162 = vpop.f32.mrb[0].mxu0
    %v4163 = vadd.f32 0.0, %v4162
    %v4164 = vpop.f32.mrb[0].mxu0
    %4165 = vmatprep.mubr.f32.mxu0 0.0
    %4166 = vmatmul.mubr.f32.gmra.mrb[0].mxu0 %v4094
    %v4167 = vpop.f32.mrb[0].mxu0
    %v4168 = vadd.f32 0.0, %v4167
    %v4169 = vpop.f32.mrb[0].mxu0
    %4170 = vdwg.mxu0
    %v4171 = vcombine.low %v3920, %v4082
    %v4172 = vcombine.high %v3920, %v4082
    %v4174 = vunpack.c.l.s4 1983009808
    %v4175 = vunpack.c.0.s8 %v4174
    %v4176 = vlaneseq
    %v4177 = vshrl.u32 %v4176, 7
    %v4178 = vsub.s32 %v4175, %v4177
    %v4179 = vrot.slane %v4171, %v4178
    %v4181 = vunpack.c.l.s4 1983009808
    %v4182 = vunpack.c.0.s8 %v4181
    %v4183 = vlaneseq
    %v4184 = vshrl.u32 %v4183, 7
    %v4185 = vsub.s32 %v4182, %v4184
    %v4186 = vrot.slane %v4172, %v4185
    %v4187 = vcombine.low %v4001, %v4163
    %v4188 = vcombine.high %v4001, %v4163
    %v4190 = vunpack.c.l.s4 1983009808
    %v4191 = vunpack.c.0.s8 %v4190
    %v4192 = vlaneseq
    %v4193 = vshrl.u32 %v4192, 7
    %v4194 = vsub.s32 %v4191, %v4193
    %v4195 = vrot.slane %v4187, %v4194
    %v4197 = vunpack.c.l.s4 1983009808
    %v4198 = vunpack.c.0.s8 %v4197
    %v4199 = vlaneseq
    %v4200 = vshrl.u32 %v4199, 7
    %v4201 = vsub.s32 %v4198, %v4200
    %v4202 = vrot.slane %v4188, %v4201
    %v4203 = vcombine.low %v4179, %v4195
    %v4204 = vcombine.high %v4179, %v4195
    %v4206 = vunpack.c.l.s4 1934713408
    %v4207 = vunpack.c.0.s8 %v4206
    %v4208 = vlaneseq
    %v4209 = vshrl.u32 %v4208, 7
    %v4210 = vsub.s32 %v4207, %v4209
    %v4211 = vrot.slane %v4203, %v4210
    %v4213 = vunpack.c.l.s4 1934713408
    %v4214 = vunpack.c.0.s8 %v4213
    %v4215 = vlaneseq
    %v4216 = vshrl.u32 %v4215, 7
    %v4217 = vsub.s32 %v4214, %v4216
    %v4218 = vrot.slane %v4204, %v4217
    %v4219 = vcombine.low %v4186, %v4202
    %v4220 = vcombine.high %v4186, %v4202
    %v4222 = vunpack.c.l.s4 1934713408
    %v4223 = vunpack.c.0.s8 %v4222
    %v4224 = vlaneseq
    %v4225 = vshrl.u32 %v4224, 7
    %v4226 = vsub.s32 %v4223, %v4225
    %v4227 = vrot.slane %v4219, %v4226
    %v4229 = vunpack.c.l.s4 1934713408
    %v4230 = vunpack.c.0.s8 %v4229
    %v4231 = vlaneseq
    %v4232 = vshrl.u32 %v4231, 7
    %v4233 = vsub.s32 %v4230, %v4232
    %v4234 = vrot.slane %v4220, %v4233
    %v4235 = vcombine.high %v4211, 0.0
    %v4236 = vcombine.high %v4218, 0.0
    %v4237 = vcombine.high %v4227, 0.0
    %v4238 = vcombine.high %v4234, 0.0
    %v4239 = vcombine.low %v3925, %v4087
    %v4240 = vcombine.high %v3925, %v4087
    %v4242 = vunpack.c.l.s4 1983009808
    %v4243 = vunpack.c.0.s8 %v4242
    %v4244 = vlaneseq
    %v4245 = vshrl.u32 %v4244, 7
    %v4246 = vsub.s32 %v4243, %v4245
    %v4247 = vrot.slane %v4239, %v4246
    %v4249 = vunpack.c.l.s4 1983009808
    %v4250 = vunpack.c.0.s8 %v4249
    %v4251 = vlaneseq
    %v4252 = vshrl.u32 %v4251, 7
    %v4253 = vsub.s32 %v4250, %v4252
    %v4254 = vrot.slane %v4240, %v4253
    %v4255 = vcombine.low %v4006, %v4168
    %v4256 = vcombine.high %v4006, %v4168
    %v4258 = vunpack.c.l.s4 1983009808
    %v4259 = vunpack.c.0.s8 %v4258
    %v4260 = vlaneseq
    %v4261 = vshrl.u32 %v4260, 7
    %v4262 = vsub.s32 %v4259, %v4261
    %v4263 = vrot.slane %v4255, %v4262
    %v4265 = vunpack.c.l.s4 1983009808
    %v4266 = vunpack.c.0.s8 %v4265
    %v4267 = vlaneseq
    %v4268 = vshrl.u32 %v4267, 7
    %v4269 = vsub.s32 %v4266, %v4268
    %v4270 = vrot.slane %v4256, %v4269
    %v4271 = vcombine.low %v4247, %v4263
    %v4272 = vcombine.high %v4247, %v4263
    %v4274 = vunpack.c.l.s4 1934713408
    %v4275 = vunpack.c.0.s8 %v4274
    %v4276 = vlaneseq
    %v4277 = vshrl.u32 %v4276, 7
    %v4278 = vsub.s32 %v4275, %v4277
    %v4279 = vrot.slane %v4271, %v4278
    %v4281 = vunpack.c.l.s4 1934713408
    %v4282 = vunpack.c.0.s8 %v4281
    %v4283 = vlaneseq
    %v4284 = vshrl.u32 %v4283, 7
    %v4285 = vsub.s32 %v4282, %v4284
    %v4286 = vrot.slane %v4272, %v4285
    %v4287 = vcombine.low %v4254, %v4270
    %v4288 = vcombine.high %v4254, %v4270
    %v4290 = vunpack.c.l.s4 1934713408
    %v4291 = vunpack.c.0.s8 %v4290
    %v4292 = vlaneseq
    %v4293 = vshrl.u32 %v4292, 7
    %v4294 = vsub.s32 %v4291, %v4293
    %v4295 = vrot.slane %v4287, %v4294
    %v4297 = vunpack.c.l.s4 1934713408
    %v4298 = vunpack.c.0.s8 %v4297
    %v4299 = vlaneseq
    %v4300 = vshrl.u32 %v4299, 7
    %v4301 = vsub.s32 %v4298, %v4300
    %v4302 = vrot.slane %v4288, %v4301
    %v4303 = vcombine.high %v4279, 0.0
    %v4304 = vcombine.high %v4286, 0.0
    %v4305 = vcombine.high %v4295, 0.0
    %v4306 = vcombine.high %v4302, 0.0
    %v4307 = vcombine.low %v4211, %v4218
    %v4309 = vunpack.c.l.s4 1983009808
    %v4310 = vunpack.c.0.s8 %v4309
    %v4311 = vlaneseq
    %v4312 = vshrl.u32 %v4311, 7
    %v4313 = vsub.s32 %v4310, %v4312
    %v4314 = vrot.slane %v4307, %v4313
    %v4315 = vcombine.low %v4235, %v4236
    %v4317 = vunpack.c.l.s4 1983009808
    %v4318 = vunpack.c.0.s8 %v4317
    %v4319 = vlaneseq
    %v4320 = vshrl.u32 %v4319, 7
    %v4321 = vsub.s32 %v4318, %v4320
    %v4322 = vrot.slane %v4315, %v4321
    %v4323 = vcombine.low %v4227, %v4234
    %v4325 = vunpack.c.l.s4 1983009808
    %v4326 = vunpack.c.0.s8 %v4325
    %v4327 = vlaneseq
    %v4328 = vshrl.u32 %v4327, 7
    %v4329 = vsub.s32 %v4326, %v4328
    %v4330 = vrot.slane %v4323, %v4329
    %v4331 = vcombine.low %v4237, %v4238
    %v4333 = vunpack.c.l.s4 1983009808
    %v4334 = vunpack.c.0.s8 %v4333
    %v4335 = vlaneseq
    %v4336 = vshrl.u32 %v4335, 7
    %v4337 = vsub.s32 %v4334, %v4336
    %v4338 = vrot.slane %v4331, %v4337
    %v4339 = vcombine.low %v4314, %v4322
    %v4340 = vcombine.high %v4314, %v4322
    %v4342 = vunpack.c.l.s4 1934713408
    %v4343 = vunpack.c.0.s8 %v4342
    %v4344 = vlaneseq
    %v4345 = vshrl.u32 %v4344, 7
    %v4346 = vsub.s32 %v4343, %v4345
    %v4347 = vrot.slane %v4339, %v4346
    %v4349 = vunpack.c.l.s4 1934713408
    %v4350 = vunpack.c.0.s8 %v4349
    %v4351 = vlaneseq
    %v4352 = vshrl.u32 %v4351, 7
    %v4353 = vsub.s32 %v4350, %v4352
    %v4354 = vrot.slane %v4340, %v4353
    %v4355 = vcombine.low %v4330, %v4338
    %v4356 = vcombine.high %v4330, %v4338
    %v4358 = vunpack.c.l.s4 1934713408
    %v4359 = vunpack.c.0.s8 %v4358
    %v4360 = vlaneseq
    %v4361 = vshrl.u32 %v4360, 7
    %v4362 = vsub.s32 %v4359, %v4361
    %v4363 = vrot.slane %v4355, %v4362
    %v4365 = vunpack.c.l.s4 1934713408
    %v4366 = vunpack.c.0.s8 %v4365
    %v4367 = vlaneseq
    %v4368 = vshrl.u32 %v4367, 7
    %v4369 = vsub.s32 %v4366, %v4368
    %v4370 = vrot.slane %v4356, %v4369
    %v4371 = vcombine.low %v4347, %v4363
    %v4372 = vcombine.high %v4347, %v4363
    %v4373 = vcombine.low %v4354, %v4370
    %v4374 = vcombine.high %v4354, %v4370
    %v4375 = vcombine.low %v4279, %v4286
    %v4377 = vunpack.c.l.s4 1983009808
    %v4378 = vunpack.c.0.s8 %v4377
    %v4379 = vlaneseq
    %v4380 = vshrl.u32 %v4379, 7
    %v4381 = vsub.s32 %v4378, %v4380
    %v4382 = vrot.slane %v4375, %v4381
    %v4383 = vcombine.low %v4303, %v4304
    %v4385 = vunpack.c.l.s4 1983009808
    %v4386 = vunpack.c.0.s8 %v4385
    %v4387 = vlaneseq
    %v4388 = vshrl.u32 %v4387, 7
    %v4389 = vsub.s32 %v4386, %v4388
    %v4390 = vrot.slane %v4383, %v4389
    %v4391 = vcombine.low %v4295, %v4302
    %v4393 = vunpack.c.l.s4 1983009808
    %v4394 = vunpack.c.0.s8 %v4393
    %v4395 = vlaneseq
    %v4396 = vshrl.u32 %v4395, 7
    %v4397 = vsub.s32 %v4394, %v4396
    %v4398 = vrot.slane %v4391, %v4397
    %v4399 = vcombine.low %v4305, %v4306
    %v4401 = vunpack.c.l.s4 1983009808
    %v4402 = vunpack.c.0.s8 %v4401
    %v4403 = vlaneseq
    %v4404 = vshrl.u32 %v4403, 7
    %v4405 = vsub.s32 %v4402, %v4404
    %v4406 = vrot.slane %v4399, %v4405
    %v4407 = vcombine.low %v4382, %v4390
    %v4408 = vcombine.high %v4382, %v4390
    %v4410 = vunpack.c.l.s4 1934713408
    %v4411 = vunpack.c.0.s8 %v4410
    %v4412 = vlaneseq
    %v4413 = vshrl.u32 %v4412, 7
    %v4414 = vsub.s32 %v4411, %v4413
    %v4415 = vrot.slane %v4407, %v4414
    %v4417 = vunpack.c.l.s4 1934713408
    %v4418 = vunpack.c.0.s8 %v4417
    %v4419 = vlaneseq
    %v4420 = vshrl.u32 %v4419, 7
    %v4421 = vsub.s32 %v4418, %v4420
    %v4422 = vrot.slane %v4408, %v4421
    %v4423 = vcombine.low %v4398, %v4406
    %v4424 = vcombine.high %v4398, %v4406
    %v4426 = vunpack.c.l.s4 1934713408
    %v4427 = vunpack.c.0.s8 %v4426
    %v4428 = vlaneseq
    %v4429 = vshrl.u32 %v4428, 7
    %v4430 = vsub.s32 %v4427, %v4429
    %v4431 = vrot.slane %v4423, %v4430
    %v4433 = vunpack.c.l.s4 1934713408
    %v4434 = vunpack.c.0.s8 %v4433
    %v4435 = vlaneseq
    %v4436 = vshrl.u32 %v4435, 7
    %v4437 = vsub.s32 %v4434, %v4436
    %v4438 = vrot.slane %v4424, %v4437
    %v4439 = vcombine.low %v4415, %v4431
    %v4440 = vcombine.high %v4415, %v4431
    %v4441 = vcombine.low %v4422, %v4438
    %v4442 = vcombine.high %v4422, %v4438
    %4445 = vrot.lane.b32.xlu0 %v4372, 8
    %v4446 = vpop.permute.xlu0 %4445
    %4447 = vrot.lane.b32.xlu0 %v4440, 8
    %v4448 = vpop.permute.xlu0 %4447
    %4453 = vrot.lane.b32.xlu0 %v4373, 16
    %v4454 = vpop.permute.xlu0 %4453
    %4455 = vrot.lane.b32.xlu0 %v4441, 16
    %v4456 = vpop.permute.xlu0 %4455
    %4461 = vrot.lane.b32.xlu0 %v4374, 24
    %v4462 = vpop.permute.xlu0 %4461
    %4463 = vrot.lane.b32.xlu0 %v4442, 24
    %v4464 = vpop.permute.xlu0 %4463
    %v4467 = vsel %vm1111, %v4371, %v4446
    %v4468 = vsel %vm1111, %v4439, %v4448
    %v4469 = vsel %vm1460, %v4467, %v4454
    %v4470 = vsel %vm1460, %v4468, %v4456
    %v4471 = vsel %vm2173, %v4469, %v4462
    %v4472 = vsel %vm2173, %v4470, %v4464
    %v4473 = vpack.c.bf16 %v4472, %v4471
    %v4474 = vlaneseq
    %v4475 = vshrl.u32 %v4474, 7
    %v4476 = vsub.s32 1, %v4475
    %v4477 = vrot.slane %v149, %v4476
    %4478 = vrot.lane.b32.xlu0 %v2471, 32
    %v4479 = vpop.permute.xlu0 %4478
    %4480 = vrot.lane.b32.xlu0 %v2472, 32
    %v4481 = vpop.permute.xlu0 %4480
    %v4485 = vsel %vm174, %v4473, 0
    %4487 = vmatprep.subr.bf16.mxu0 0
    %4488 = vmatpush1.bf16.msra.mxu0 %v4479
    %4489 = vmatprep.subr.bf16.mxu0 0
    %4490 = vmatpush1.bf16.msra.mxu0 %v4481
    %4491 = vmatprep.subr.bf16.mxu0 0
    %4492 = vmatpush1.bf16.msra.mxu0 0
    %4493 = vmatprep.subr.bf16.mxu0 0
    %4494 = vmatpush1.bf16.msra.mxu0 0
    %4495 = vmatprep.subr.bf16.mxu0 0
    %4496 = vmatpush1.bf16.msra.mxu0 0
    %4497 = vmatprep.subr.bf16.mxu0 0
    %4498 = vmatpush1.bf16.msra.mxu0 0
    %4499 = vmatprep.subr.bf16.mxu0 0
    %4500 = vmatpush1.bf16.msra.mxu0 0
    %4501 = vmatprep.subr.bf16.mxu0 0
    %4502 = vmatpush1.bf16.msra.mxu0 0
    %4503 = vmatprep.subr.bf16.mxu0 0
    %4504 = vmatpush1.bf16.msra.mxu0 0
    %4505 = vmatprep.subr.bf16.mxu0 0
    %4506 = vmatpush1.bf16.msra.mxu0 0
    %4507 = vmatprep.subr.bf16.mxu0 0
    %4508 = vmatpush1.bf16.msra.mxu0 0
    %4509 = vmatprep.subr.bf16.mxu0 0
    %4510 = vmatpush1.bf16.msra.mxu0 0
    %4511 = vmatprep.subr.bf16.mxu0 0
    %4512 = vmatpush1.bf16.msra.mxu0 0
    %4513 = vmatprep.subr.bf16.mxu0 0
    %4514 = vmatpush1.bf16.msra.mxu0 0
    %4515 = vmatprep.subr.bf16.mxu0 0
    %4516 = vmatpush1.bf16.msra.mxu0 0
    %4517 = vmatprep.subr.bf16.mxu0 0
    %4518 = vmatpush1.bf16.msra.mxu0 0
    %4519 = vmatprep.mubr.bf16.mxu0 0
    %4520 = vmatmul.mubr.bf16.gmra.mrb[0].mxu0 %v4485
    %v4521 = vpop.f32.mrb[0].mxu0
    %v4522 = vadd.f32 %v4477, %v4521
    %v4523 = vpop.f32.mrb[0].mxu0
    %v4524 = vpop.f32.mrb[0].mxu0
    %v4525 = vadd.f32 %v4477, %v4524
    %v4526 = vpop.f32.mrb[0].mxu0
    %4527 = vdwg.mxu0
    %v4528 = vadd.f32 %v2451, %v4522
    %v4529 = vadd.f32 %v2452, %v4525
    %v4530 = vsel %vm174, %v4528, 0.0
    %4531 = vadd.xlane.f32.xlu0 %v4530
    %v4532 = vpop.xlane.xlu0 %4531
    %v4533 = vsel %vm174, %v4529, 0.0
    %4534 = vadd.xlane.f32.xlu0 %v4533
    %v4535 = vpop.xlane.xlu0 %4534
    %v4536 = vmul.f32 %v4532, %v2239
    %v4537 = vmul.f32 %v4535, %v2239
    %v4538 = vsub.f32 %v4528, %v4536
    %v4539 = vsub.f32 %v4529, %v4537
    %v4540 = vmul.f32 %v4538, %v4538
    %v4541 = vmul.f32 %v4539, %v4539
    %v4542 = vsel %vm174, %v4540, 0.0
    %4543 = vadd.xlane.f32.xlu0 %v4542
    %v4544 = vpop.xlane.xlu0 %4543
    %v4545 = vsel %vm174, %v4541, 0.0
    %4546 = vadd.xlane.f32.xlu0 %v4545
    %v4547 = vpop.xlane.xlu0 %4546
    %v4548 = vmul.f32 %v4544, %v2239
    %v4549 = vmul.f32 %v4547, %v2239
    %v4550 = vadd.f32 %v4548, 1e-05
    %v4551 = vadd.f32 %v4549, 1e-05
    %v4552 = vrsqrt.pop %v4550
    %v4553 = vrsqrt.pop %v4551
    %v4554 = vmul.f32 %v4538, %v4552
    %v4555 = vmul.f32 %v4539, %v4553
    %v4556 = vlaneseq
    %v4557 = vshrl.u32 %v4556, 7
    %v4558 = vsub.s32 4, %v4557
    %v4559 = vrot.slane %v149, %v4558
    %v4560 = vmul.f32 %v4554, %v4559
    %v4561 = vmul.f32 %v4555, %v4559
    %v4562 = vlaneseq
    %v4563 = vshrl.u32 %v4562, 7
    %v4564 = vsub.s32 5, %v4563
    %v4565 = vrot.slane %v149, %v4564
    %v4566 = vadd.f32 %v4560, %v4565
    %v4567 = vadd.f32 %v4561, %v4565
    %v4568 = vpack.c.bf16 %v4567, %v4566
    %v4569 = vlaneseq
    %v4570 = vshrl.u32 %v4569, 7
    %v4571 = vsub.s32 2, %v4570
    %v4572 = vrot.slane %v149, %v4571
    %v4573 = vunpack.c.h.b16 %v2454
    %v4574 = vunpack.c.h.b16 %v2455
    %v4575 = vunpack.c.h.b16 %v2456
    %v4576 = vunpack.c.h.b16 %v2457
    %v4577 = vpack.c.b16 %v4574, %v4573
    %v4578 = vpack.c.b16 %v4576, %v4575
    %v4582 = vsel %vm174, %v4568, 0
    %4584 = vmatprep.subr.bf16.mxu0 0
    %4585 = vmatpush1.bf16.msra.mxu0 %v4577
    %4586 = vmatprep.subr.bf16.mxu0 0
    %4587 = vmatpush1.bf16.msra.mxu0 %v4578
    %4588 = vmatprep.subr.bf16.mxu0 0
    %4589 = vmatpush1.bf16.msra.mxu0 0
    %4590 = vmatprep.subr.bf16.mxu0 0
    %4591 = vmatpush1.bf16.msra.mxu0 0
    %4592 = vmatprep.subr.bf16.mxu0 0
    %4593 = vmatpush1.bf16.msra.mxu0 0
    %4594 = vmatprep.subr.bf16.mxu0 0
    %4595 = vmatpush1.bf16.msra.mxu0 0
    %4596 = vmatprep.subr.bf16.mxu0 0
    %4597 = vmatpush1.bf16.msra.mxu0 0
    %4598 = vmatprep.subr.bf16.mxu0 0
    %4599 = vmatpush1.bf16.msra.mxu0 0
    %4600 = vmatprep.subr.bf16.mxu0 0
    %4601 = vmatpush1.bf16.msra.mxu0 0
    %4602 = vmatprep.subr.bf16.mxu0 0
    %4603 = vmatpush1.bf16.msra.mxu0 0
    %4604 = vmatprep.subr.bf16.mxu0 0
    %4605 = vmatpush1.bf16.msra.mxu0 0
    %4606 = vmatprep.subr.bf16.mxu0 0
    %4607 = vmatpush1.bf16.msra.mxu0 0
    %4608 = vmatprep.subr.bf16.mxu0 0
    %4609 = vmatpush1.bf16.msra.mxu0 0
    %4610 = vmatprep.subr.bf16.mxu0 0
    %4611 = vmatpush1.bf16.msra.mxu0 0
    %4612 = vmatprep.subr.bf16.mxu0 0
    %4613 = vmatpush1.bf16.msra.mxu0 0
    %4614 = vmatprep.subr.bf16.mxu0 0
    %4615 = vmatpush1.bf16.msra.mxu0 0
    %4616 = vmatprep.mubr.bf16.mxu0 0
    %4617 = vmatmul.mubr.bf16.gmra.mrb[0].mxu0 %v4582
    %v4618 = vpop.f32.mrb[0].mxu0
    %v4619 = vadd.f32 %v4572, %v4618
    %v4620 = vpop.f32.mrb[0].mxu0
    %v4621 = vpop.f32.mrb[0].mxu0
    %v4622 = vadd.f32 %v4572, %v4621
    %v4623 = vpop.f32.mrb[0].mxu0
    %4624 = vdwg.mxu0
    %v4625 = vmax.f32 %v4619, 0.0
    %v4626 = vmax.f32 %v4622, 0.0
    %v4627 = vpack.c.bf16 %v4626, %v4625
    %s4628 = scalar_lea.vmem %s4, 32
    %v4629 = vld [vmem:[%s4628] sm:$0xf]
    %v4630 = vld [vmem:[%s4628 + $0x4] sm:$0xf]
    %v4631 = vld [vmem:[%s4628 + $0x8] sm:$0xf]
    %v4632 = vld [vmem:[%s4628 + $0xc] sm:$0xf]
    %v4633 = vld [vmem:[%s4628 + $0x10] sm:$0xf]
    %v4634 = vld [vmem:[%s4628 + $0x14] sm:$0xf]
    %v4635 = vld [vmem:[%s4628 + $0x18] sm:$0xf]
    %v4636 = vld [vmem:[%s4628 + $0x1c] sm:$0xf]
    %v4637 = vlaneseq
    %v4638 = vshrl.u32 %v4637, 7
    %v4639 = vsub.s32 3, %v4638
    %v4640 = vrot.slane %v149, %v4639
    %v4649 = vunpack.c.l.b16 %v4629
    %v4650 = vunpack.c.l.b16 %v4630
    %v4651 = vunpack.c.l.b16 %v4631
    %v4652 = vunpack.c.l.b16 %v4632
    %v4653 = vunpack.c.l.b16 %v4633
    %v4654 = vunpack.c.l.b16 %v4634
    %v4655 = vunpack.c.l.b16 %v4635
    %v4656 = vunpack.c.l.b16 %v4636
    %v4657 = vpack.c.b16 %v4650, %v4649
    %v4658 = vpack.c.b16 %v4652, %v4651
    %v4659 = vpack.c.b16 %v4654, %v4653
    %v4660 = vpack.c.b16 %v4656, %v4655
    %v4666 = vsel %vm2368, %v4627, 0
    %4668 = vmatprep.subr.bf16.mxu0 0
    %4669 = vmatpush1.bf16.msra.mxu0 %v4657
    %4670 = vmatprep.subr.bf16.mxu0 0
    %4671 = vmatpush1.bf16.msra.mxu0 %v4658
    %4672 = vmatprep.subr.bf16.mxu0 0
    %4673 = vmatpush1.bf16.msra.mxu0 %v4659
    %4674 = vmatprep.subr.bf16.mxu0 0
    %4675 = vmatpush1.bf16.msra.mxu0 %v4660
    %4676 = vmatprep.subr.bf16.mxu0 0
    %4677 = vmatpush1.bf16.msra.mxu0 0
    %4678 = vmatprep.subr.bf16.mxu0 0
    %4679 = vmatpush1.bf16.msra.mxu0 0
    %4680 = vmatprep.subr.bf16.mxu0 0
    %4681 = vmatpush1.bf16.msra.mxu0 0
    %4682 = vmatprep.subr.bf16.mxu0 0
    %4683 = vmatpush1.bf16.msra.mxu0 0
    %4684 = vmatprep.subr.bf16.mxu0 0
    %4685 = vmatpush1.bf16.msra.mxu0 0
    %4686 = vmatprep.subr.bf16.mxu0 0
    %4687 = vmatpush1.bf16.msra.mxu0 0
    %4688 = vmatprep.subr.bf16.mxu0 0
    %4689 = vmatpush1.bf16.msra.mxu0 0
    %4690 = vmatprep.subr.bf16.mxu0 0
    %4691 = vmatpush1.bf16.msra.mxu0 0
    %4692 = vmatprep.subr.bf16.mxu0 0
    %4693 = vmatpush1.bf16.msra.mxu0 0
    %4694 = vmatprep.subr.bf16.mxu0 0
    %4695 = vmatpush1.bf16.msra.mxu0 0
    %4696 = vmatprep.subr.bf16.mxu0 0
    %4697 = vmatpush1.bf16.msra.mxu0 0
    %4698 = vmatprep.subr.bf16.mxu0 0
    %4699 = vmatpush1.bf16.msra.mxu0 0
    %4700 = vmatprep.mubr.bf16.mxu0 0
    %4701 = vmatmul.mubr.bf16.gmra.mrb[0].mxu0 %v4666
    %v4702 = vpop.f32.mrb[0].mxu0
    %v4703 = vadd.f32 %v4640, %v4702
    %v4704 = vpop.f32.mrb[0].mxu0
    %v4705 = vpop.f32.mrb[0].mxu0
    %v4706 = vadd.f32 %v4640, %v4705
    %v4707 = vpop.f32.mrb[0].mxu0
    %4708 = vdwg.mxu0
    %v4709 = vadd.f32 %v4566, %v4703
    %v4710 = vadd.f32 %v4567, %v4706
    %v4711 = vsel %vm174, %v4709, 0.0
    %4712 = vadd.xlane.f32.xlu0 %v4711
    %v4713 = vpop.xlane.xlu0 %4712
    %v4714 = vsel %vm174, %v4710, 0.0
    %4715 = vadd.xlane.f32.xlu0 %v4714
    %v4716 = vpop.xlane.xlu0 %4715
    %v4717 = vmul.f32 %v4713, %v2239
    %v4718 = vmul.f32 %v4716, %v2239
    %v4719 = vsub.f32 %v4709, %v4717
    %v4720 = vsub.f32 %v4710, %v4718
    %v4721 = vmul.f32 %v4719, %v4719
    %v4722 = vmul.f32 %v4720, %v4720
    %v4723 = vsel %vm174, %v4721, 0.0
    %4724 = vadd.xlane.f32.xlu0 %v4723
    %v4725 = vpop.xlane.xlu0 %4724
    %v4726 = vsel %vm174, %v4722, 0.0
    %4727 = vadd.xlane.f32.xlu0 %v4726
    %v4728 = vpop.xlane.xlu0 %4727
    %v4729 = vmul.f32 %v4725, %v2239
    %v4730 = vmul.f32 %v4728, %v2239
    %v4731 = vadd.f32 %v4729, 1e-05
    %v4732 = vadd.f32 %v4730, 1e-05
    %v4733 = vrsqrt.pop %v4731
    %v4734 = vrsqrt.pop %v4732
    %v4735 = vmul.f32 %v4719, %v4733
    %v4736 = vmul.f32 %v4720, %v4734
    %v4737 = vlaneseq
    %v4738 = vshrl.u32 %v4737, 7
    %v4739 = vsub.s32 6, %v4738
    %v4740 = vrot.slane %v149, %v4739
    %v4741 = vmul.f32 %v4735, %v4740
    %v4742 = vmul.f32 %v4736, %v4740
    %v4743 = vlaneseq
    %v4744 = vshrl.u32 %v4743, 7
    %v4745 = vsub.s32 7, %v4744
    %v4746 = vrot.slane %v149, %v4745
    %v4747 = vadd.f32 %v4741, %v4746
    %v4748 = vadd.f32 %v4742, %v4746
    %v4749 = vsel %vm174, %v4747, 0.0
    %v4750 = vrot.slane %v4749, 4
    %v4751 = vadd.f32 %v4749, %v4750
    %v4752 = vrot.slane %v4751, 2
    %v4753 = vadd.f32 %v4751, %v4752
    %v4754 = vrot.slane %v4753, 1
    %v4755 = vadd.f32 %v4753, %v4754
    %v4756 = vsel %vm174, %v4748, 0.0
    %v4757 = vrot.slane %v4756, 4
    %v4758 = vadd.f32 %v4756, %v4757
    %v4759 = vrot.slane %v4758, 2
    %v4760 = vadd.f32 %v4758, %v4759
    %v4761 = vrot.slane %v4760, 1
    %v4762 = vadd.f32 %v4760, %v4761
    %v4763 = vrcp.pop 8.0
    %v4764 = vmul.f32 %v4755, %v4763
    %v4765 = vmul.f32 %v4762, %v4763
    %v4766 = vpack.c.bf16 %v4764, %v4764
    %v4767 = vpack.c.bf16 %v4765, %v4765
    %v4768 = vld [vmem:[%s6] sm:$0xf]
    %v4769 = vld [vmem:[%s6 + $0x4] sm:$0xf]
    %v4770 = vld [vmem:[%s6 + $0x8] sm:$0xf]
    %v4771 = vld [vmem:[%s6 + $0xc] sm:$0xf]
    %v4772 = vlaneseq
    %v4773 = vshrl.u32 %v4772, 7
    %v4774 = vsub.s32 0, %v4773
    %v4775 = vrot.slane %v150, %v4774
    %v4778 = vunpack.c.l.b16 %v4766
    %v4779 = vunpack.c.l.b16 %v4767
    %vm4780 = vcmask 1041409
    %v4781 = vsel %vm4780, %v4779, %v4778
    %v4782 = vpack.c.b16 %v4781, %v4781
    %v4787 = vunpack.c.l.b16 %v4768
    %v4788 = vunpack.c.l.b16 %v4769
    %v4789 = vunpack.c.l.b16 %v4770
    %v4790 = vunpack.c.l.b16 %v4771
    %v4791 = vpack.c.b16 %v4788, %v4787
    %v4792 = vpack.c.b16 %v4790, %v4789
    %v4796 = vsel %vm174, %v4782, 0
    %4798 = vmatprep.subr.bf16.mxu0 0
    %4799 = vmatpush1.bf16.msra.mxu0 %v4791
    %4800 = vmatprep.subr.bf16.mxu0 0
    %4801 = vmatpush1.bf16.msra.mxu0 %v4792
    %4802 = vmatprep.subr.bf16.mxu0 0
    %4803 = vmatpush1.bf16.msra.mxu0 0
    %4804 = vmatprep.subr.bf16.mxu0 0
    %4805 = vmatpush1.bf16.msra.mxu0 0
    %4806 = vmatprep.subr.bf16.mxu0 0
    %4807 = vmatpush1.bf16.msra.mxu0 0
    %4808 = vmatprep.subr.bf16.mxu0 0
    %4809 = vmatpush1.bf16.msra.mxu0 0
    %4810 = vmatprep.subr.bf16.mxu0 0
    %4811 = vmatpush1.bf16.msra.mxu0 0
    %4812 = vmatprep.subr.bf16.mxu0 0
    %4813 = vmatpush1.bf16.msra.mxu0 0
    %4814 = vmatprep.subr.bf16.mxu0 0
    %4815 = vmatpush1.bf16.msra.mxu0 0
    %4816 = vmatprep.subr.bf16.mxu0 0
    %4817 = vmatpush1.bf16.msra.mxu0 0
    %4818 = vmatprep.subr.bf16.mxu0 0
    %4819 = vmatpush1.bf16.msra.mxu0 0
    %4820 = vmatprep.subr.bf16.mxu0 0
    %4821 = vmatpush1.bf16.msra.mxu0 0
    %4822 = vmatprep.subr.bf16.mxu0 0
    %4823 = vmatpush1.bf16.msra.mxu0 0
    %4824 = vmatprep.subr.bf16.mxu0 0
    %4825 = vmatpush1.bf16.msra.mxu0 0
    %4826 = vmatprep.subr.bf16.mxu0 0
    %4827 = vmatpush1.bf16.msra.mxu0 0
    %4828 = vmatprep.subr.bf16.mxu0 0
    %4829 = vmatpush1.bf16.msra.mxu0 0
    %4830 = vmatprep.mubr.bf16.mxu0 0
    %4831 = vmatmul.mubr.bf16.gmra.mrb[0].mxu0 %v4796
    %v4832 = vpop.f32.mrb[0].mxu0
    %v4833 = vadd.f32 %v4775, %v4832
    %v4834 = vpop.f32.mrb[0].mxu0
    %v4835 = vpop.f32.mrb[0].mxu0
    %v4836 = vpop.f32.mrb[0].mxu0
    %4837 = vdwg.mxu0
    %4838 = vst [vmem:[#allocation2] sm:$0x3] %v4833
    // Predicated region
    $region30: #{tpu_custom_call.1} parent=1 // pred_check
      _
    $region31: #{tpu_custom_call.1} parent=1 // pred_check_branch
      %4840 = sbr.rel (0) target = $region33
    $region32: #{tpu_custom_call.1} parent=1 // pred_region
      %s4842 = ssub.s32 32, 32
      %4843 = vsyncadd [#allocation3], %s4842
      %s4845 = sshll.u32 [#allocation2], 4
      %s4846 = int_to_ptr.vmem [resolvable:$true] %s4845
      %4848 = dma.vmem_to_hbm [thread:$0]  %s4846, 32, %s7, [#allocation3]
    $region33: #{tpu_custom_call.1} parent=1 // pred_fallthru
      _
    // Predicated region
    $region34: #{tpu_custom_call.1} parent=1 // pred_check
      _
    $region35: #{tpu_custom_call.1} parent=1 // pred_check_branch
      %4850 = sbr.rel (0) target = $region37
    $region36: #{tpu_custom_call.1} parent=1 // pred_region
      %4851 = dma.done [#allocation3], 32
    $region37: #{tpu_custom_call.1} parent=1 // pred_fallthru
      _
    %4852 = vsyncpa [#allocation3], 1

</llo_original>
